<compile_context>
chip_gen: v5e
topology: v5e:2x2
jax: 0.10.0
libtpu: 0.0.40
codegen_flags: <defaults>
</compile_context>

<pallas_src>
import functools

import jax
import jax.numpy as jnp
from jax import lax
from jax.experimental import pallas as pl
from jax.experimental.pallas import tpu as pltpu

NEG_INF = -1e30  # large finite negative (avoids -inf - -inf NaN hazards)


def _rmsnorm(v, g, eps):
    # v: (T, E) f32, g: (1, E) f32 -- statistics kept in f32.
    means = jnp.mean(v * v, axis=-1, keepdims=True)
    return v * lax.rsqrt(means + eps) * g


def _rope(t, cos, sin_signed, hd):
    # rotate_half via a half-width lane roll (XLU slot); the "-x2" sign is
    # pre-folded into sin_signed by the wrapper (no negate/concat relayout).
    return t * cos + pltpu.roll(t, shift=hd // 2, axis=1) * sin_signed


# ---------------------------------------------------------------------------
# Pass 1: RMSNorm + fused QKV projection + RoPE, once per sequence tile.
# Outputs bf16 Q (pre-scaled by 1/sqrt(hd)), K, V caches of shape (B, S, E).
# ---------------------------------------------------------------------------
def _qkv_kernel(x_ref, wqkv_ref, cos_ref, sin_ref, g1_ref,
                q_ref, k_ref, v_ref, *, n_heads: int, hd: int,
                eps: float, scale: float):
    E = n_heads * hd
    x = x_ref[...].astype(jnp.float32)                     # (T, E)
    xn = _rmsnorm(x, g1_ref[...], eps).astype(jnp.bfloat16)
    # One fused (T, E) x (E, 3E) MXU pass for Q|K|V (f32 accumulation).
    qkv = jnp.dot(xn, wqkv_ref[...], preferred_element_type=jnp.float32)

    cos = cos_ref[...]
    sin = sin_ref[...]
    q_heads, k_heads = [], []
    for h in range(n_heads):
        q_h = qkv[:, h * hd:(h + 1) * hd]
        k_h = qkv[:, E + h * hd:E + (h + 1) * hd]
        q_heads.append((_rope(q_h, cos, sin, hd) * scale).astype(jnp.bfloat16))
        k_heads.append(_rope(k_h, cos, sin, hd).astype(jnp.bfloat16))

    q_ref[...] = jnp.concatenate(q_heads, axis=-1)
    k_ref[...] = jnp.concatenate(k_heads, axis=-1)
    v_ref[...] = qkv[:, 2 * E:].astype(jnp.bfloat16)


# ---------------------------------------------------------------------------
# Pass 2: flash attention over the precomputed bf16 K/V + output projection +
# residual + RMSNorm + SwiGLU FF + residual, per (batch, Q-tile) grid point.
# ---------------------------------------------------------------------------
def _attn_ff_kernel(x_ref, q_ref, k_ref, v_ref, wo_ref, w12_ref, w3_ref,
                    g2_ref, o_ref, *, n_heads: int, hd: int, hidden: int,
                    eps: float, tile_s: int):
    qi = pl.program_id(1)

    x_q = x_ref[...].astype(jnp.float32)                   # (T, E) residual
    # Pre-RoPE'd, pre-scaled bf16 Q slabs, one per head (hd lanes each).
    q_heads = [q_ref[:, h * hd:(h + 1) * hd] for h in range(n_heads)]

    # NOTE: for large n_heads the per-head (m, l, acc) state should live in
    # VMEM scratch refs indexed by head; at small head counts the unrolled
    # python carry keeps everything in vregs.
    def flash_update(carry, k_tile, v_tile, allowed):
        new = []
        for h in range(n_heads):
            m_p, l_p, acc_p = carry[h]
            k_h = k_tile[:, h * hd:(h + 1) * hd]
            v_h = v_tile[:, h * hd:(h + 1) * hd]
            # (T, T) scores: contract last dims (no explicit transpose).
            s_h = lax.dot_general(q_heads[h], k_h, (((1,), (1,)), ((), ())),
                                  preferred_element_type=jnp.float32)
            if allowed is not None:
                s_h = jnp.where(allowed, s_h, NEG_INF)
            m_h = jnp.maximum(m_p, jnp.max(s_h, axis=-1, keepdims=True))
            alpha = jnp.exp(m_p - m_h)
            p_h = jnp.exp(s_h - m_h)
            l_h = alpha * l_p + jnp.sum(p_h, axis=-1, keepdims=True)
            acc_h = alpha * acc_p + jnp.dot(p_h.astype(jnp.bfloat16), v_h,
                                            preferred_element_type=jnp.float32)
            new.append((m_h, l_h, acc_h))
        return tuple(new)

    def off_diag_step(ki, carry):
        k_start = pl.multiple_of(ki * tile_s, tile_s)
        return flash_update(carry,
                            k_ref[pl.ds(k_start, tile_s), :],
                            v_ref[pl.ds(k_start, tile_s), :],
                            allowed=None)                   # fully allowed

    init = tuple(
        (jnp.full((tile_s, 1), NEG_INF, jnp.float32),
         jnp.zeros((tile_s, 1), jnp.float32),
         jnp.zeros((tile_s, hd), jnp.float32))
        for _ in range(n_heads))

    # Off-diagonal KV tiles 0..qi-1 need no causal mask.
    carry = lax.fori_loop(0, qi, off_diag_step, init)

    # Diagonal tile: the only one where the causal mask bites.
    d_start = pl.multiple_of(qi * tile_s, tile_s)
    rows = lax.broadcasted_iota(jnp.int32, (tile_s, tile_s), 0)
    cols = lax.broadcasted_iota(jnp.int32, (tile_s, tile_s), 1)
    carry = flash_update(carry,
                         k_ref[pl.ds(d_start, tile_s), :],
                         v_ref[pl.ds(d_start, tile_s), :],
                         allowed=rows >= cols)

    # Softmax denominator applied once per head on the (T, hd) context.
    ctx = jnp.concatenate(
        [carry[h][2] * pl.reciprocal(carry[h][1], approx=True)
         for h in range(n_heads)], axis=-1)                 # (T, E)

    att = jnp.dot(ctx.astype(jnp.bfloat16), wo_ref[...],
                  preferred_element_type=jnp.float32)
    x1 = x_q + att

    # ---------------- feed-forward branch ----------------
    xn2 = _rmsnorm(x1, g2_ref[...], eps).astype(jnp.bfloat16)
    h12 = jnp.dot(xn2, w12_ref[...],
                  preferred_element_type=jnp.float32)       # fused fc1|fc2
    h1 = h12[:, :hidden]
    h2 = h12[:, hidden:]
    hswi = (h1 * jax.nn.sigmoid(h1)) * h2                   # SiLU(fc1) * fc2
    ff = jnp.dot(hswi.astype(jnp.bfloat16), w3_ref[...],
                 preferred_element_type=jnp.float32)

    o_ref[...] = (x1 + ff).astype(o_ref.dtype)


# ---------------------------------------------------------------------------
def transformer_block_llama2(x, params, *, n_heads: int, eps: float = 1e-5,
                             tile_s: int = 256):
    """x: (B, S, E) float32.  params: dict of f32 weights (see make_params).

    tile_s=256 fills the 256-wide v6e/v7x MXU; use tile_s=128 on v5e.
    """
    B, S, E = x.shape
    assert E % n_heads == 0
    hd = E // n_heads
    assert hd % 2 == 0
    hidden = params['w1'].shape[1]

    # tile_s must be a multiple of 128 (lane-dense score / P@V matmuls).
    tile_s = max(128, (tile_s // 128) * 128)
    tile_s = min(tile_s, ((S + 127) // 128) * 128)
    n_q = -(-S // tile_s)
    S_pad = n_q * tile_s
    # Zero-pad the sequence instead of falling back to a full-S tile; padded
    # rows are causally invisible to real queries and are sliced off below.
    x_p = x if S_pad == S else jnp.pad(x, ((0, 0), (0, S_pad - S), (0, 0)))

    scale = 1.0 / float(hd) ** 0.5

    # bf16 weight copies for MXU-native matmuls (f32 accumulation in-kernel).
    wqkv = params['wqkv'].astype(jnp.bfloat16)                   # fused q|k|v
    wo = params['wproj'].astype(jnp.bfloat16)
    w12 = jnp.concatenate([params['w1'], params['w2']],
                          axis=1).astype(jnp.bfloat16)           # fused fc1|fc2
    w3 = params['w3'].astype(jnp.bfloat16)
    g1, g2 = params['g1'], params['g2']

    # RoPE tables; fold the "-x2" rotation sign into sin so the in-kernel
    # rotate is a pure XLU lane roll.
    cos, sin = params['cos'], params['sin']
    if cos.shape[0] < S_pad:                                     # pad tables
        extra = S_pad - cos.shape[0]
        cos = jnp.concatenate([cos, jnp.ones((extra, hd), cos.dtype)], axis=0)
        sin = jnp.concatenate([sin, jnp.zeros((extra, hd), sin.dtype)], axis=0)
    cos = cos[:S_pad].astype(jnp.float32)
    sign = jnp.concatenate([-jnp.ones((hd // 2,), jnp.float32),
                            jnp.ones((hd // 2,), jnp.float32)])
    sin_signed = sin[:S_pad].astype(jnp.float32) * sign[None, :]

    def vmem_limit(block_bytes):
        # 2x for double-buffered auto-pipelined blocks + compute headroom,
        # clamped so the request is valid on every generation (v7x: 64 MiB).
        return int(min(max(2 * block_bytes + 16 * 2**20, 24 * 2**20),
                       48 * 2**20))

    tile_spec = pl.BlockSpec((None, tile_s, E), lambda b, i: (b, i, 0))

    # ---- pass 1: RMSNorm + fused QKV projection + RoPE (bf16 caches) ----
    qkv_bytes = (tile_s * E * 4 + E * 3 * E * 2 + 2 * tile_s * hd * 4 + E * 4
                 + 3 * tile_s * E * 2)
    qkv_fn = functools.partial(_qkv_kernel, n_heads=n_heads, hd=hd, eps=eps,
                               scale=scale)
    q, k, v = pl.pallas_call(
        qkv_fn,
        out_shape=tuple(jax.ShapeDtypeStruct((B, S_pad, E), jnp.bfloat16)
                        for _ in range(3)),
        grid_spec=pltpu.PrefetchScalarGridSpec(
            num_scalar_prefetch=0,
            grid=(B, n_q),
            in_specs=[
                tile_spec,                                        # x tile
                pl.BlockSpec((E, 3 * E), lambda b, i: (0, 0)),    # wqkv
                pl.BlockSpec((tile_s, hd), lambda b, i: (i, 0)),  # cos
                pl.BlockSpec((tile_s, hd), lambda b, i: (i, 0)),  # sin (signed)
                pl.BlockSpec((1, E), lambda b, i: (0, 0)),        # norm1 weight
            ],
            out_specs=(tile_spec, tile_spec, tile_spec),
        ),
        compiler_params=pltpu.CompilerParams(
            dimension_semantics=("parallel", "parallel"),
            vmem_limit_bytes=vmem_limit(qkv_bytes)),
    )(x_p, wqkv, cos, sin_signed, g1)

    # ---- pass 2: flash attention over precomputed K/V + residual + FF ----
    # NOTE: at real Llama2 sizes K/V and w12/w3 should be streamed from HBM
    # (memory_space=pl.ANY + make_async_copy / emit_pipeline) rather than held
    # as resident bf16 VMEM blocks; at these shapes resident blocks are best.
    attn_bytes = (tile_s * E * 4 + tile_s * E * 2 + 2 * S_pad * E * 2
                  + E * E * 2 + E * 2 * hidden * 2 + hidden * E * 2 + E * 4
                  + tile_s * E * 4)
    attn_fn = functools.partial(_attn_ff_kernel, n_heads=n_heads, hd=hd,
                                hidden=hidden, eps=eps, tile_s=tile_s)
    out = pl.pallas_call(
        attn_fn,
        out_shape=jax.ShapeDtypeStruct((B, S_pad, E), x.dtype),
        grid_spec=pltpu.PrefetchScalarGridSpec(
            num_scalar_prefetch=0,
            grid=(B, n_q),            # batch-major: balanced megacore split
            in_specs=[
                tile_spec,                                            # x (residual)
                tile_spec,                                            # q tile (bf16)
                pl.BlockSpec((None, S_pad, E), lambda b, i: (b, 0, 0)),  # K (bf16)
                pl.BlockSpec((None, S_pad, E), lambda b, i: (b, 0, 0)),  # V (bf16)
                pl.BlockSpec((E, E), lambda b, i: (0, 0)),            # wo
                pl.BlockSpec((E, 2 * hidden), lambda b, i: (0, 0)),   # fc1|fc2
                pl.BlockSpec((hidden, E), lambda b, i: (0, 0)),       # fc3
                pl.BlockSpec((1, E), lambda b, i: (0, 0)),            # norm2 weight
            ],
            out_specs=tile_spec,
        ),
        compiler_params=pltpu.CompilerParams(
            dimension_semantics=("parallel", "parallel"),
            vmem_limit_bytes=vmem_limit(attn_bytes)),
    )(x_p, q, k, v, wo, w12, w3, g2)

    return out if S_pad == S else out[:, :S]


# ---------------------------------------------------------------------------
# Pure-JAX f32 reference (mirrors the PyTorch forward) for verification.
# ---------------------------------------------------------------------------
def reference_block(x, params, *, n_heads: int, eps: float = 1e-5):
    B, S, E = x.shape
    hd = E // n_heads

    def rmsnorm(v, g):
        means = jnp.mean(v * v, axis=-1, keepdims=True)
        return v * lax.rsqrt(means + eps) * g

    shortcut = x
    xn = rmsnorm(x, params['g1'][0])
    qkv = xn @ params['wqkv']                         # (B,S,3E)
    qkv = qkv.reshape(B, S, 3, n_heads, hd).transpose(2, 0, 3, 1, 4)
    q, k, v = qkv[0], qkv[1], qkv[2]                  # (B,H,S,hd)

    cos = params['cos'][:S][None, None]               # (1,1,S,hd)
    sin = params['sin'][:S][None, None]

    def rope(t):
        t1, t2 = t[..., :hd // 2], t[..., hd // 2:]
        rot = jnp.concatenate([-t2, t1], axis=-1)
        return t * cos + rot * sin

    q, k = rope(q), rope(k)
    scores = jnp.einsum('bhqd,bhkd->bhqk', q, k) / jnp.sqrt(jnp.float32(hd))
    mask = jnp.tril(jnp.ones((S, S), dtype=bool))
    scores = jnp.where(mask, scores, -jnp.inf)
    attn = jax.nn.softmax(scores, axis=-1)
    ctx = jnp.einsum('bhqk,bhkd->bhqd', attn, v)
    ctx = ctx.transpose(0, 2, 1, 3).reshape(B, S, E)
    x1 = shortcut + ctx @ params['wproj']

    xn2 = rmsnorm(x1, params['g2'][0])
    h1 = xn2 @ params['w1']
    h2 = xn2 @ params['w2']
    h = (h1 * jax.nn.sigmoid(h1)) * h2
    return x1 + h @ params['w3']


# ---------------------------------------------------------------------------
def make_params(key, *, emb_dim, hidden_dim, n_heads, context_length,
                theta=10000.0):
    hd = emb_dim // n_heads
    ks = jax.random.split(key, 5)
    scale = 0.02
    params = {
        'wqkv': scale * jax.random.normal(ks[0], (emb_dim, 3 * emb_dim), jnp.float32),
        'wproj': scale * jax.random.normal(ks[1], (emb_dim, emb_dim), jnp.float32),
        'w1': scale * jax.random.normal(ks[2], (emb_dim, hidden_dim), jnp.float32),
        'w2': scale * jax.random.normal(ks[3], (emb_dim, hidden_dim), jnp.float32),
        'w3': scale * jax.random.normal(ks[4], (hidden_dim, emb_dim), jnp.float32),
        'g1': jnp.ones((1, emb_dim), jnp.float32),
        'g2': jnp.ones((1, emb_dim), jnp.float32),
    }
    # RoPE tables (precompute_rope_params)
    inv_freq = 1.0 / (theta ** (jnp.arange(hd // 2, dtype=jnp.float32) / (hd // 2)))
    pos = jnp.arange(context_length, dtype=jnp.float32)
    angles = pos[:, None] * inv_freq[None, :]
    angles = jnp.concatenate([angles, angles], axis=1)       # (ctx, hd)
    params['cos'] = jnp.cos(angles)
    params['sin'] = jnp.sin(angles)
    return params


if __name__ == "__main__":
    # Small, lane-aligned shapes matching the module defaults where possible:
    # context_length=512, hidden_dim=768, emb_dim=256; n_heads=2 keeps
    # head_dim = 128 (one full lane vreg per head slab).
    B, S = 2, 512
    EMB, HID, HEADS = 256, 768, 2

    key = jax.random.PRNGKey(0)
    kx, kp, kx2 = jax.random.split(key, 3)
    x = jax.random.normal(kx, (B, S, EMB), jnp.float32)
    params = make_params(kp, emb_dim=EMB, hidden_dim=HID, n_heads=HEADS,
                         context_length=S)

    # Main run: tile_s=256 fills the 256-wide v6e/v7x MXU.
    out = jax.block_until_ready(
        transformer_block_llama2(x, params, n_heads=HEADS, tile_s=256))
    ref = jax.block_until_ready(reference_block(x, params, n_heads=HEADS))
    assert out.shape == (B, S, EMB)
    # Kernel runs matmuls with bf16 operands (f32 accumulation), so compare
    # against the f32 reference at bf16-appropriate tolerance.
    assert jnp.allclose(out, ref, rtol=2e-2, atol=2e-2), "mismatch vs reference"

    # Ragged sequence length exercises the zero-padding path (S=320 -> 384).
    B2, S2 = 1, 320
    x2 = jax.random.normal(kx2, (B2, S2, EMB), jnp.float32)
    out2 = jax.block_until_ready(
        transformer_block_llama2(x2, params, n_heads=HEADS, tile_s=128))
    ref2 = jax.block_until_ready(reference_block(x2, params, n_heads=HEADS))
    assert out2.shape == (B2, S2, EMB)
    assert jnp.allclose(out2, ref2, rtol=2e-2, atol=2e-2), "mismatch (padded)"

    print("KERNEL_OK")
</pallas_src>

<mosaic_0001>
module attributes {stable_mosaic.version = 11 : i64} {
  func.func @_qkv_kernel(%arg0: i32, %arg1: i32, %arg2: memref<1x256x256xf32, #tpu.memory_space<vmem>>, %arg3: memref<256x768xbf16, #tpu.memory_space<vmem>>, %arg4: memref<256x128xf32, #tpu.memory_space<vmem>>, %arg5: memref<256x128xf32, #tpu.memory_space<vmem>>, %arg6: memref<1x256xf32, #tpu.memory_space<vmem>>, %arg7: memref<1x256x256xbf16, #tpu.memory_space<vmem>>, %arg8: memref<1x256x256xbf16, #tpu.memory_space<vmem>>, %arg9: memref<1x256x256xbf16, #tpu.memory_space<vmem>>) attributes {dimension_semantics = [#tpu.dimension_semantics<parallel>, #tpu.dimension_semantics<parallel>], iteration_bounds = array<i64: 2, 2>, scalar_prefetch = 0 : i64, scratch_operands = 0 : i64, tpu.core_type = #tpu.core_type<tc>, window_params = [{transform_indices = @transform_0, window_bounds = array<i64: 1, 256, 256>}, {pipeline_mode = #tpu.pipeline_mode<synchronous>, transform_indices = @transform_1, window_bounds = array<i64: 256, 768>}, {transform_indices = @transform_2, window_bounds = array<i64: 256, 128>}, {transform_indices = @transform_3, window_bounds = array<i64: 256, 128>}, {pipeline_mode = #tpu.pipeline_mode<synchronous>, transform_indices = @transform_4, window_bounds = array<i64: 1, 256>}, {transform_indices = @transform_5, window_bounds = array<i64: 1, 256, 256>}, {transform_indices = @transform_6, window_bounds = array<i64: 1, 256, 256>}, {transform_indices = @transform_7, window_bounds = array<i64: 1, 256, 256>}]} {
    %c0 = arith.constant 0 : index
    %c0_0 = arith.constant 0 : index
    %c0_1 = arith.constant 0 : index
    %0 = vector.load %arg2[%c0, %c0_0, %c0_1] : memref<1x256x256xf32, #tpu.memory_space<vmem>>, vector<1x256x256xf32>
    %1 = vector.shape_cast %0 : vector<1x256x256xf32> to vector<256x256xf32>
    %c0_2 = arith.constant 0 : index
    %c0_3 = arith.constant 0 : index
    %2 = vector.load %arg6[%c0_2, %c0_3] : memref<1x256xf32, #tpu.memory_space<vmem>>, vector<1x256xf32>
    %3 = arith.mulf %1, %1 : vector<256x256xf32>
    %cst = arith.constant dense<0.000000e+00> : vector<256xf32>
    %4 = vector.multi_reduction <add>, %3, %cst [1] : vector<256x256xf32> to vector<256xf32>
    %5 = vector.shape_cast %4 : vector<256xf32> to vector<256x1xf32>
    %cst_4 = arith.constant 2.560000e+02 : f32
    %6 = vector.broadcast %cst_4 : f32 to vector<256x1xf32>
    %7 = arith.divf %5, %6 : vector<256x1xf32>
    %cst_5 = arith.constant 9.99999974E-6 : f32
    %8 = vector.broadcast %cst_5 : f32 to vector<256x1xf32>
    %9 = arith.addf %7, %8 : vector<256x1xf32>
    %10 = math.rsqrt %9 : vector<256x1xf32>
    %11 = vector.broadcast %10 : vector<256x1xf32> to vector<256x256xf32>
    %12 = arith.mulf %1, %11 : vector<256x256xf32>
    %13 = vector.broadcast %2 : vector<1x256xf32> to vector<256x256xf32>
    %14 = arith.mulf %12, %13 : vector<256x256xf32>
    %15 = arith.truncf %14 : vector<256x256xf32> to vector<256x256xbf16>
    %c0_6 = arith.constant 0 : index
    %c0_7 = arith.constant 0 : index
    %16 = vector.load %arg3[%c0_6, %c0_7] : memref<256x768xbf16, #tpu.memory_space<vmem>>, vector<256x768xbf16>
    %cst_8 = arith.constant dense<0.000000e+00> : vector<256x768xf32>
    %17 = tpu.matmul %15, %16, %cst_8 {dimension_numbers = #tpu.dot_dimension_numbers<[1], [0], [0], [1], [0, 0, 1, 1], [], []>} : vector<256x256xbf16>, vector<256x768xbf16>, vector<256x768xf32> -> vector<256x768xf32>
    %c0_9 = arith.constant 0 : index
    %c0_10 = arith.constant 0 : index
    %18 = vector.load %arg4[%c0_9, %c0_10] : memref<256x128xf32, #tpu.memory_space<vmem>>, vector<256x128xf32>
    %c0_11 = arith.constant 0 : index
    %c0_12 = arith.constant 0 : index
    %19 = vector.load %arg5[%c0_11, %c0_12] : memref<256x128xf32, #tpu.memory_space<vmem>>, vector<256x128xf32>
    %20 = vector.extract_strided_slice %17 {offsets = [0, 0], sizes = [256, 128], strides = [1, 1]} : vector<256x768xf32> to vector<256x128xf32>
    %21 = vector.extract_strided_slice %17 {offsets = [0, 256], sizes = [256, 128], strides = [1, 1]} : vector<256x768xf32> to vector<256x128xf32>
    %22 = arith.mulf %20, %18 : vector<256x128xf32>
    %c64_i32 = arith.constant 64 : i32
    %23 = tpu.dynamic_rotate %20 by %c64_i32 dim 1 : vector<256x128xf32>, i32 -> vector<256x128xf32>
    %24 = arith.mulf %23, %19 : vector<256x128xf32>
    %25 = arith.addf %22, %24 : vector<256x128xf32>
    %cst_13 = arith.constant 0.0883883461 : f32
    %26 = vector.broadcast %cst_13 : f32 to vector<256x128xf32>
    %27 = arith.mulf %25, %26 : vector<256x128xf32>
    %28 = arith.truncf %27 : vector<256x128xf32> to vector<256x128xbf16>
    %29 = arith.mulf %21, %18 : vector<256x128xf32>
    %c64_i32_14 = arith.constant 64 : i32
    %30 = tpu.dynamic_rotate %21 by %c64_i32_14 dim 1 : vector<256x128xf32>, i32 -> vector<256x128xf32>
    %31 = arith.mulf %30, %19 : vector<256x128xf32>
    %32 = arith.addf %29, %31 : vector<256x128xf32>
    %33 = arith.truncf %32 : vector<256x128xf32> to vector<256x128xbf16>
    %34 = vector.extract_strided_slice %17 {offsets = [0, 128], sizes = [256, 128], strides = [1, 1]} : vector<256x768xf32> to vector<256x128xf32>
    %35 = vector.extract_strided_slice %17 {offsets = [0, 384], sizes = [256, 128], strides = [1, 1]} : vector<256x768xf32> to vector<256x128xf32>
    %36 = arith.mulf %34, %18 : vector<256x128xf32>
    %c64_i32_15 = arith.constant 64 : i32
    %37 = tpu.dynamic_rotate %34 by %c64_i32_15 dim 1 : vector<256x128xf32>, i32 -> vector<256x128xf32>
    %38 = arith.mulf %37, %19 : vector<256x128xf32>
    %39 = arith.addf %36, %38 : vector<256x128xf32>
    %cst_16 = arith.constant 0.0883883461 : f32
    %40 = vector.broadcast %cst_16 : f32 to vector<256x128xf32>
    %41 = arith.mulf %39, %40 : vector<256x128xf32>
    %42 = arith.truncf %41 : vector<256x128xf32> to vector<256x128xbf16>
    %43 = arith.mulf %35, %18 : vector<256x128xf32>
    %c64_i32_17 = arith.constant 64 : i32
    %44 = tpu.dynamic_rotate %35 by %c64_i32_17 dim 1 : vector<256x128xf32>, i32 -> vector<256x128xf32>
    %45 = arith.mulf %44, %19 : vector<256x128xf32>
    %46 = arith.addf %43, %45 : vector<256x128xf32>
    %47 = arith.truncf %46 : vector<256x128xf32> to vector<256x128xbf16>
    %48 = tpu.concatenate %28, %42 in 1 : vector<256x128xbf16>, vector<256x128xbf16> -> vector<256x256xbf16>
    %c0_18 = arith.constant 0 : index
    %c0_19 = arith.constant 0 : index
    %c0_20 = arith.constant 0 : index
    %49 = vector.load %arg7[%c0_18, %c0_19, %c0_20] : memref<1x256x256xbf16, #tpu.memory_space<vmem>>, vector<1x256x256xbf16>
    %50 = vector.shape_cast %49 : vector<1x256x256xbf16> to vector<256x256xbf16>
    %51 = vector.shape_cast %48 : vector<256x256xbf16> to vector<1x256x256xbf16>
    tpu.vector_store %arg7[%c0_18, %c0_19, %c0_20], %51 {strides = array<i32>} : memref<1x256x256xbf16, #tpu.memory_space<vmem>>, vector<1x256x256xbf16>,
    %52 = tpu.concatenate %33, %47 in 1 : vector<256x128xbf16>, vector<256x128xbf16> -> vector<256x256xbf16>
    %c0_21 = arith.constant 0 : index
    %c0_22 = arith.constant 0 : index
    %c0_23 = arith.constant 0 : index
    %53 = vector.load %arg8[%c0_21, %c0_22, %c0_23] : memref<1x256x256xbf16, #tpu.memory_space<vmem>>, vector<1x256x256xbf16>
    %54 = vector.shape_cast %53 : vector<1x256x256xbf16> to vector<256x256xbf16>
    %55 = vector.shape_cast %52 : vector<256x256xbf16> to vector<1x256x256xbf16>
    tpu.vector_store %arg8[%c0_21, %c0_22, %c0_23], %55 {strides = array<i32>} : memref<1x256x256xbf16, #tpu.memory_space<vmem>>, vector<1x256x256xbf16>,
    %56 = vector.extract_strided_slice %17 {offsets = [0, 512], sizes = [256, 256], strides = [1, 1]} : vector<256x768xf32> to vector<256x256xf32>
    %57 = arith.truncf %56 : vector<256x256xf32> to vector<256x256xbf16>
    %c0_24 = arith.constant 0 : index
    %c0_25 = arith.constant 0 : index
    %c0_26 = arith.constant 0 : index
    %58 = vector.load %arg9[%c0_24, %c0_25, %c0_26] : memref<1x256x256xbf16, #tpu.memory_space<vmem>>, vector<1x256x256xbf16>
    %59 = vector.shape_cast %58 : vector<1x256x256xbf16> to vector<256x256xbf16>
    %60 = vector.shape_cast %57 : vector<256x256xbf16> to vector<1x256x256xbf16>
    tpu.vector_store %arg9[%c0_24, %c0_25, %c0_26], %60 {strides = array<i32>} : memref<1x256x256xbf16, #tpu.memory_space<vmem>>, vector<1x256x256xbf16>,
    return
  }
  func.func @transform_0(%arg0: i32, %arg1: i32) -> (i32, i32, i32) {
    %c0_i32 = arith.constant 0 : i32
    %c0_i32_0 = arith.constant 0 : i32
    return %arg0, %arg1, %c0_i32 : i32, i32, i32
  }
  func.func @transform_1(%arg0: i32, %arg1: i32) -> (i32, i32) {
    %c0_i32 = arith.constant 0 : i32
    %c0_i32_0 = arith.constant 0 : i32
    %c0_i32_1 = arith.constant 0 : i32
    return %c0_i32, %c0_i32_0 : i32, i32
  }
  func.func @transform_2(%arg0: i32, %arg1: i32) -> (i32, i32) {
    %c0_i32 = arith.constant 0 : i32
    %c0_i32_0 = arith.constant 0 : i32
    return %arg1, %c0_i32 : i32, i32
  }
  func.func @transform_3(%arg0: i32, %arg1: i32) -> (i32, i32) {
    %c0_i32 = arith.constant 0 : i32
    %c0_i32_0 = arith.constant 0 : i32
    return %arg1, %c0_i32 : i32, i32
  }
  func.func @transform_4(%arg0: i32, %arg1: i32) -> (i32, i32) {
    %c0_i32 = arith.constant 0 : i32
    %c0_i32_0 = arith.constant 0 : i32
    %c0_i32_1 = arith.constant 0 : i32
    return %c0_i32, %c0_i32_0 : i32, i32
  }
  func.func @transform_5(%arg0: i32, %arg1: i32) -> (i32, i32, i32) {
    %c0_i32 = arith.constant 0 : i32
    %c0_i32_0 = arith.constant 0 : i32
    return %arg0, %arg1, %c0_i32 : i32, i32, i32
  }
  func.func @transform_6(%arg0: i32, %arg1: i32) -> (i32, i32, i32) {
    %c0_i32 = arith.constant 0 : i32
    %c0_i32_0 = arith.constant 0 : i32
    return %arg0, %arg1, %c0_i32 : i32, i32, i32
  }
  func.func @transform_7(%arg0: i32, %arg1: i32) -> (i32, i32, i32) {
    %c0_i32 = arith.constant 0 : i32
    %c0_i32_0 = arith.constant 0 : i32
    return %arg0, %arg1, %c0_i32 : i32, i32, i32
  }
}

</mosaic_0001>

<llo_original>
// kernel: tpu_custom_call.1
$region0: #{tpu_custom_call.1}
  #allocation0 [shape = 'u32[]', space=smem, size = 0x4, offset = 0x4, fixed_abs, tag = 'smem constant byte address 0x4 - core index']
  #allocation1 [shape = 'u32[72,128]{1,0:T(1,128)}', space=vmem, size = 0x9000, scoped, tag = 'internal scratch']
  %s0 = inlined_call_operand.hbm [shape: f32[2,512,256], index: 0, kind: input, shape index: {}]
  %s1 = inlined_call_operand.hbm [shape: bf16[256,768], index: 1, kind: input, shape index: {}]
  %s2 = inlined_call_operand.hbm [shape: f32[512,128], index: 2, kind: input, shape index: {}]
  %s3 = inlined_call_operand.hbm [shape: f32[512,128], index: 3, kind: input, shape index: {}]
  %s4 = inlined_call_operand.vmem [shape: f32[1,256], index: 4, kind: input, shape index: {}]
  %s5 = inlined_call_operand.hbm [shape: bf16[2,512,256], index: 5, kind: output, shape index: {0}]
  %s6 = inlined_call_operand.hbm [shape: bf16[2,512,256], index: 6, kind: output, shape index: {1}]
  %s7 = inlined_call_operand.hbm [shape: bf16[2,512,256], index: 7, kind: output, shape index: {2}]
  %8 = xla_tuple %s5, %s6, %s7
  %s9 = sld [smem:[#allocation0]]
  $region85: #{tpu_custom_call.1} parent=0
    _
  %s11 = ssub.s32 1, %s9
  %s12 = scalar_select 0, %s11, %s9
  $region1: #{tpu_custom_call.1} parent=0
    #allocation2 [shape = 'u8[524288]{0}', space=vmem, size = 0x80000, scoped, tag = 'input window, operand 0']
    #allocation3 [shape = 's32[2]{0}', space=sflag, size = 0x8, scoped, tag = 'scoped memory for tpu_custom_call.1']
    #allocation4 [shape = 's32[2]{0}', space=sflag, size = 0x8, scoped, tag = 'scoped memory for tpu_custom_call.1']
    #allocation5 [shape = 'u8[393216]{0}', space=vmem, size = 0x60000, scoped, tag = 'input window, operand 1, single buffered']
    #allocation6 [shape = 's32[1]{0}', space=sflag, size = 0x4, scoped, tag = 'scoped memory for tpu_custom_call.1']
    #allocation7 [shape = 'u8[262144]{0}', space=vmem, size = 0x40000, scoped, tag = 'input window, operand 2']
    #allocation8 [shape = 'u8[262144]{0}', space=vmem, size = 0x40000, scoped, tag = 'input window, operand 3']
    #allocation9 [shape = 'u8[262144]{0}', space=vmem, size = 0x40000, scoped, tag = 'output window, operand 0']
    #allocation10 [shape = 'u8[262144]{0}', space=vmem, size = 0x40000, scoped, tag = 'output window, operand 1']
    #allocation11 [shape = 's32[2]{0}', space=sflag, size = 0x8, scoped, tag = 'scoped memory for tpu_custom_call.1']
    #allocation12 [shape = 'u8[262144]{0}', space=vmem, size = 0x40000, scoped, tag = 'output window, operand 2']
    %13 = vsyncpa [#allocation3], 0
    %s14 = scalar_lea.sflag [#allocation3], 1
    %15 = vsyncpa %s14, 0
    %16 = vsyncpa [#allocation6], 0
    %17 = vsyncpa [#allocation4], 0
    %s18 = scalar_lea.sflag [#allocation4], 1
    %19 = vsyncpa %s18, 0
    %20 = vsyncpa [#allocation11], 0
    %s21 = scalar_lea.sflag [#allocation11], 1
    %22 = vsyncpa %s21, 0
    loop: start=0, step=1, limit=6
    $region2: #{tpu_custom_call.1} parent=1 // loop_pre_header
      _
    $region3: #{tpu_custom_call.1} parent=1 // loop_header
      %s24 = sphi 0, %s28
      %p25 = scmp.ge.s32.totalorder %s24, 6
      %s31 = sphi 0, %s43
      %s32 = sphi 0, %s39
      %s33 = sphi 0, %s31
      %s34 = sphi 0, %s32
      %s35 = sphi 0, %s33
      %s36 = sphi 0, %s34
      %s48 = sphi 0, %s50
      %s51 = sphi 0, %s48
      %s52 = sphi 0, %s51
      %s68 = sphi 0, %s52
      %s72 = sphi 0, %s72
      %s74 = sphi 0, %s72
      %s75 = sphi 0, %s74
      %s89 = sphi 0, %s75
      %s95 = sphi 0, %s97
      %s98 = sphi 0, %s95
      %s99 = sphi 0, %s98
      %s115 = sphi 0, %s99
      %s121 = sphi 0, %s123
      %s124 = sphi 0, %s121
      %s125 = sphi 0, %s124
      %s141 = sphi 0, %s125
      %s145 = sphi 0, %s145
      %s147 = sphi 0, %s145
      %s148 = sphi 0, %s147
      %s162 = sphi 0, %s148
      %s170 = sphi 0, %s172
      %s173 = sphi 0, %s170
      %s174 = sphi 0, %s173
      %s190 = sphi 0, %s174
      %s198 = sphi 0, %s200
      %s201 = sphi 0, %s198
      %s202 = sphi 0, %s201
      %s218 = sphi 0, %s202
      %s226 = sphi 0, %s228
      %s229 = sphi 0, %s226
      %s230 = sphi 0, %s229
      %s246 = sphi 0, %s230
    $region4: #{tpu_custom_call.1} parent=1 // loop_header_branch
      %27 = sbr.rel (%p25) target = $region8
    $region5: #{tpu_custom_call.1} parent=1 // loop_body
      %s29 = ssub.s32 %s24, 1
      %s30 = ssub.s32 %s24, 2
      %s37 = sadd.s32 1, %s32
      %p38 = scmp.ge.s32.totalorder %s37, 2
      %s39 = scalar_select %p38, 0, %s37
      %s40 = sadd.s32 1, %s31
      %s41 = scalar_select %p38, %s40, %s31
      %p42 = scmp.ge.s32.totalorder %s41, 2
      %s43 = scalar_select %p42, 0, %s41
      %s44 = ssub.s32 %s31, %s43
      %s45 = ssub.s32 %s32, %s39
      %s46 = sor.u32 %s44, %s45
      %p47 = scmp.eq.s32.totalorder %s46, 0
      %s49 = sadd.s32 %s48, 1
      %s50 = scalar_select %p47, %s48, %s49
      %p53 = pneg %p47
      %p54 = scmp.eq.s32.totalorder %s24, 3
      %p55 = por %p53, %p54
      %p56 = scmp.ne.s32.totalorder %s48, %s51
      %p57 = scmp.eq.s32.totalorder %s24, 0
      %p58 = por %p56, %p57
      %p59 = scmp.ne.s32.totalorder %s48, %s51
      %p60 = scmp.eq.s32.totalorder %s29, 3
      %p61 = por %p59, %p60
      %p62 = scmp.ne.s32.totalorder %s51, %s52
      %p63 = scmp.eq.s32.totalorder %s29, 0
      %p64 = por %p62, %p63
      %p65 = scmp.ne.s32.totalorder %s51, %s52
      %p66 = scmp.eq.s32.totalorder %s30, 3
      %p67 = por %p65, %p66
      %p69 = scmp.ne.s32.totalorder %s52, %s68
      %p70 = scmp.eq.s32.totalorder %s30, 0
      %p71 = por %p69, %p70
      %s73 = sadd.s32 %s72, 1
      %p76 = scmp.eq.s32.totalorder %s24, 3
      %p77 = scmp.ne.s32.totalorder %s72, %s74
      %p78 = scmp.eq.s32.totalorder %s24, 0
      %p79 = por %p77, %p78
      %p80 = scmp.ne.s32.totalorder %s72, %s74
      %p81 = scmp.eq.s32.totalorder %s29, 3
      %p82 = por %p80, %p81
      %p83 = scmp.ne.s32.totalorder %s74, %s75
      %p84 = scmp.eq.s32.totalorder %s29, 0
      %p85 = por %p83, %p84
      %p86 = scmp.ne.s32.totalorder %s74, %s75
      %p87 = scmp.eq.s32.totalorder %s30, 3
      %p88 = por %p86, %p87
      %p90 = scmp.ne.s32.totalorder %s75, %s89
      %p91 = scmp.eq.s32.totalorder %s30, 0
      %p92 = por %p90, %p91
      %s93 = ssub.s32 %s32, %s39
      %p94 = scmp.eq.s32.totalorder %s93, 0
      %s96 = sadd.s32 %s95, 1
      %s97 = scalar_select %p94, %s95, %s96
      %p100 = pneg %p94
      %p101 = scmp.eq.s32.totalorder %s24, 3
      %p102 = por %p100, %p101
      %p103 = scmp.ne.s32.totalorder %s95, %s98
      %p104 = scmp.eq.s32.totalorder %s24, 0
      %p105 = por %p103, %p104
      %p106 = scmp.ne.s32.totalorder %s95, %s98
      %p107 = scmp.eq.s32.totalorder %s29, 3
      %p108 = por %p106, %p107
      %p109 = scmp.ne.s32.totalorder %s98, %s99
      %p110 = scmp.eq.s32.totalorder %s29, 0
      %p111 = por %p109, %p110
      %p112 = scmp.ne.s32.totalorder %s98, %s99
      %p113 = scmp.eq.s32.totalorder %s30, 3
      %p114 = por %p112, %p113
      %p116 = scmp.ne.s32.totalorder %s99, %s115
      %p117 = scmp.eq.s32.totalorder %s30, 0
      %p118 = por %p116, %p117
      %s119 = ssub.s32 %s32, %s39
      %p120 = scmp.eq.s32.totalorder %s119, 0
      %s122 = sadd.s32 %s121, 1
      %s123 = scalar_select %p120, %s121, %s122
      %p126 = pneg %p120
      %p127 = scmp.eq.s32.totalorder %s24, 3
      %p128 = por %p126, %p127
      %p129 = scmp.ne.s32.totalorder %s121, %s124
      %p130 = scmp.eq.s32.totalorder %s24, 0
      %p131 = por %p129, %p130
      %p132 = scmp.ne.s32.totalorder %s121, %s124
      %p133 = scmp.eq.s32.totalorder %s29, 3
      %p134 = por %p132, %p133
      %p135 = scmp.ne.s32.totalorder %s124, %s125
      %p136 = scmp.eq.s32.totalorder %s29, 0
      %p137 = por %p135, %p136
      %p138 = scmp.ne.s32.totalorder %s124, %s125
      %p139 = scmp.eq.s32.totalorder %s30, 3
      %p140 = por %p138, %p139
      %p142 = scmp.ne.s32.totalorder %s125, %s141
      %p143 = scmp.eq.s32.totalorder %s30, 0
      %p144 = por %p142, %p143
      %s146 = sadd.s32 %s145, 1
      %p149 = scmp.eq.s32.totalorder %s24, 3
      %p150 = scmp.ne.s32.totalorder %s145, %s147
      %p151 = scmp.eq.s32.totalorder %s24, 0
      %p152 = por %p150, %p151
      %p153 = scmp.ne.s32.totalorder %s145, %s147
      %p154 = scmp.eq.s32.totalorder %s29, 3
      %p155 = por %p153, %p154
      %p156 = scmp.ne.s32.totalorder %s147, %s148
      %p157 = scmp.eq.s32.totalorder %s29, 0
      %p158 = por %p156, %p157
      %p159 = scmp.ne.s32.totalorder %s147, %s148
      %p160 = scmp.eq.s32.totalorder %s30, 3
      %p161 = por %p159, %p160
      %p163 = scmp.ne.s32.totalorder %s148, %s162
      %p164 = scmp.eq.s32.totalorder %s30, 0
      %p165 = por %p163, %p164
      %s166 = ssub.s32 %s31, %s43
      %s167 = ssub.s32 %s32, %s39
      %s168 = sor.u32 %s166, %s167
      %p169 = scmp.eq.s32.totalorder %s168, 0
      %s171 = sadd.s32 %s170, 1
      %s172 = scalar_select %p169, %s170, %s171
      %p175 = pneg %p169
      %p176 = scmp.eq.s32.totalorder %s24, 3
      %p177 = por %p175, %p176
      %p178 = scmp.ne.s32.totalorder %s170, %s173
      %p179 = scmp.eq.s32.totalorder %s24, 0
      %p180 = por %p178, %p179
      %p181 = scmp.ne.s32.totalorder %s170, %s173
      %p182 = scmp.eq.s32.totalorder %s29, 3
      %p183 = por %p181, %p182
      %p184 = scmp.ne.s32.totalorder %s173, %s174
      %p185 = scmp.eq.s32.totalorder %s29, 0
      %p186 = por %p184, %p185
      %p187 = scmp.ne.s32.totalorder %s173, %s174
      %p188 = scmp.eq.s32.totalorder %s30, 3
      %p189 = por %p187, %p188
      %p191 = scmp.ne.s32.totalorder %s174, %s190
      %p192 = scmp.eq.s32.totalorder %s30, 0
      %p193 = por %p191, %p192
      %s194 = ssub.s32 %s31, %s43
      %s195 = ssub.s32 %s32, %s39
      %s196 = sor.u32 %s194, %s195
      %p197 = scmp.eq.s32.totalorder %s196, 0
      %s199 = sadd.s32 %s198, 1
      %s200 = scalar_select %p197, %s198, %s199
      %p203 = pneg %p197
      %p204 = scmp.eq.s32.totalorder %s24, 3
      %p205 = por %p203, %p204
      %p206 = scmp.ne.s32.totalorder %s198, %s201
      %p207 = scmp.eq.s32.totalorder %s24, 0
      %p208 = por %p206, %p207
      %p209 = scmp.ne.s32.totalorder %s198, %s201
      %p210 = scmp.eq.s32.totalorder %s29, 3
      %p211 = por %p209, %p210
      %p212 = scmp.ne.s32.totalorder %s201, %s202
      %p213 = scmp.eq.s32.totalorder %s29, 0
      %p214 = por %p212, %p213
      %p215 = scmp.ne.s32.totalorder %s201, %s202
      %p216 = scmp.eq.s32.totalorder %s30, 3
      %p217 = por %p215, %p216
      %p219 = scmp.ne.s32.totalorder %s202, %s218
      %p220 = scmp.eq.s32.totalorder %s30, 0
      %p221 = por %p219, %p220
      %s222 = ssub.s32 %s31, %s43
      %s223 = ssub.s32 %s32, %s39
      %s224 = sor.u32 %s222, %s223
      %p225 = scmp.eq.s32.totalorder %s224, 0
      %s227 = sadd.s32 %s226, 1
      %s228 = scalar_select %p225, %s226, %s227
      %p231 = pneg %p225
      %p232 = scmp.eq.s32.totalorder %s24, 3
      %p233 = por %p231, %p232
      %p234 = scmp.ne.s32.totalorder %s226, %s229
      %p235 = scmp.eq.s32.totalorder %s24, 0
      %p236 = por %p234, %p235
      %p237 = scmp.ne.s32.totalorder %s226, %s229
      %p238 = scmp.eq.s32.totalorder %s29, 3
      %p239 = por %p237, %p238
      %p240 = scmp.ne.s32.totalorder %s229, %s230
      %p241 = scmp.eq.s32.totalorder %s29, 0
      %p242 = por %p240, %p241
      %p243 = scmp.ne.s32.totalorder %s229, %s230
      %p244 = scmp.eq.s32.totalorder %s30, 3
      %p245 = por %p243, %p244
      %p247 = scmp.ne.s32.totalorder %s230, %s246
      %p248 = scmp.eq.s32.totalorder %s30, 0
      %p249 = por %p247, %p248
      %p250 = scmp.le.s32.totalorder 1, %s24
      %p251 = scmp.lt.s32.totalorder %s24, 5
      %p252 = pnand %p250, %p251
      %p253 = pneg %p252
      // Predicated region
      $region9: #{tpu_custom_call.1} parent=5 // pred_check
        _
      $region10: #{tpu_custom_call.1} parent=5 // pred_check_branch
        %255 = sbr.rel (%p252) target = $region12
      $region11: #{tpu_custom_call.1} parent=5 // pred_region
        %s256 = ssub.s32 %s24, 1
        // Predicated region
        $region13: #{tpu_custom_call.1} parent=11 // pred_check
          %p257 = pneg %p85
        $region14: #{tpu_custom_call.1} parent=11 // pred_check_branch
          %259 = sbr.rel (%p257) target = $region16
        $region15: #{tpu_custom_call.1} parent=11 // pred_region
          %261 = vsyncadd [#allocation6], 0
          %s262 = sshll.u32 %s1, 4
          %s263 = int_to_ptr.hbm [resolvable:$true] %s262
          %s264 = sshll.u32 [#allocation5], 4
          %s265 = int_to_ptr.vmem [resolvable:$true] %s264
          %270 = dma.hbm_to_vmem [thread:$0]  %s263, 12288, %s265, [#allocation6], 384, 384, 24
        $region16: #{tpu_custom_call.1} parent=11 // pred_fallthru
          _
        // Predicated region
        $region17: #{tpu_custom_call.1} parent=11 // pred_check
          %p271 = pneg %p158
        $region18: #{tpu_custom_call.1} parent=11 // pred_check_branch
          %273 = sbr.rel (%p271) target = $region20
        $region19: #{tpu_custom_call.1} parent=11 // pred_region
          _
        $region20: #{tpu_custom_call.1} parent=11 // pred_fallthru
          _
      $region12: #{tpu_custom_call.1} parent=5 // pred_fallthru
        _
      %p274 = scmp.lt.s32.totalorder %s24, 4
      // Predicated region
      $region21: #{tpu_custom_call.1} parent=5 // pred_check
        %p275 = pneg %p274
      $region22: #{tpu_custom_call.1} parent=5 // pred_check_branch
        %277 = sbr.rel (%p275) target = $region24
      $region23: #{tpu_custom_call.1} parent=5 // pred_region
        // Predicated region
        $region25: #{tpu_custom_call.1} parent=23 // pred_check
          %p278 = pneg %p58
        $region26: #{tpu_custom_call.1} parent=23 // pred_check_branch
          %280 = sbr.rel (%p278) target = $region28
        $region27: #{tpu_custom_call.1} parent=23 // pred_region
          %s281 = sand.u32 %s24, 1
          %s282 = scalar_lea.sflag [#allocation3], %s281
          %s283 = sand.u32 %s48, 1
          %s284 = smul.addr %s283, 512
          %s285 = scalar_lea.vmem [#allocation2], %s284
          %s286 = smul.u32 32, %s32
          %288 = vsyncadd %s282, 0
          %s289 = smul.addr %s286, 2
          %s290 = smul.addr %s31, 128
          %s291 = sadd.s32 %s289, %s290
          %s292 = smul.addr %s291, 8
          %s293 = scalar_lea.hbm %s0, %s292
          %s294 = sshll.u32 %s293, 4
          %s295 = int_to_ptr.hbm [resolvable:$true] %s294
          %s296 = sshll.u32 %s285, 4
          %s297 = int_to_ptr.vmem [resolvable:$true] %s296
          %302 = dma.hbm_to_vmem [thread:$0]  %s295, 8192, %s297, %s282, 256, 256, 16
        $region28: #{tpu_custom_call.1} parent=23 // pred_fallthru
          _
        // Predicated region
        $region29: #{tpu_custom_call.1} parent=23 // pred_check
          %p303 = pneg %p105
        $region30: #{tpu_custom_call.1} parent=23 // pred_check_branch
          %305 = sbr.rel (%p303) target = $region32
        $region31: #{tpu_custom_call.1} parent=23 // pred_region
          %s306 = sand.u32 %s24, 1
          %s307 = scalar_lea.sflag [#allocation3], %s306
          %s308 = sand.u32 %s95, 1
          %s309 = smul.addr %s308, 256
          %s310 = scalar_lea.vmem [#allocation7], %s309
          %s311 = smul.u32 32, %s32
          %313 = vsyncadd %s307, 0
          %s314 = smul.addr %s311, 8
          %s315 = scalar_lea.hbm %s2, %s314
          %s316 = sshll.u32 %s315, 4
          %s317 = int_to_ptr.hbm [resolvable:$true] %s316
          %s318 = sshll.u32 %s310, 4
          %s319 = int_to_ptr.vmem [resolvable:$true] %s318
          %324 = dma.hbm_to_vmem [thread:$0]  %s317, 4096, %s319, %s307, 128, 128, 8
        $region32: #{tpu_custom_call.1} parent=23 // pred_fallthru
          _
        // Predicated region
        $region33: #{tpu_custom_call.1} parent=23 // pred_check
          %p325 = pneg %p131
        $region34: #{tpu_custom_call.1} parent=23 // pred_check_branch
          %327 = sbr.rel (%p325) target = $region36
        $region35: #{tpu_custom_call.1} parent=23 // pred_region
          %s328 = sand.u32 %s24, 1
          %s329 = scalar_lea.sflag [#allocation3], %s328
          %s330 = sand.u32 %s121, 1
          %s331 = smul.addr %s330, 256
          %s332 = scalar_lea.vmem [#allocation8], %s331
          %s333 = smul.u32 32, %s32
          %335 = vsyncadd %s329, 0
          %s336 = smul.addr %s333, 8
          %s337 = scalar_lea.hbm %s3, %s336
          %s338 = sshll.u32 %s337, 4
          %s339 = int_to_ptr.hbm [resolvable:$true] %s338
          %s340 = sshll.u32 %s332, 4
          %s341 = int_to_ptr.vmem [resolvable:$true] %s340
          %346 = dma.hbm_to_vmem [thread:$0]  %s339, 4096, %s341, %s329, 128, 128, 8
        $region36: #{tpu_custom_call.1} parent=23 // pred_fallthru
          _
      $region24: #{tpu_custom_call.1} parent=5 // pred_fallthru
        _
      %p347 = scmp.le.s32.totalorder 1, %s24
      %p348 = scmp.lt.s32.totalorder %s24, 5
      %p349 = pnand %p347, %p348
      %p350 = pneg %p349
      // Predicated region
      $region37: #{tpu_custom_call.1} parent=5 // pred_check
        _
      $region38: #{tpu_custom_call.1} parent=5 // pred_check_branch
        %352 = sbr.rel (%p349) target = $region40
      $region39: #{tpu_custom_call.1} parent=5 // pred_region
        %s353 = ssub.s32 %s24, 1
        %s354 = sand.u32 %s29, 1
        %s355 = scalar_lea.sflag [#allocation3], %s354
        %s356 = sand.u32 %s51, 1
        %s357 = smul.addr %s356, 512
        %s358 = scalar_lea.vmem [#allocation2], %s357
        // Predicated region
        $region41: #{tpu_custom_call.1} parent=39 // pred_check
          %p359 = pneg %p64
        $region42: #{tpu_custom_call.1} parent=39 // pred_check_branch
          %361 = sbr.rel (%p359) target = $region44
        $region43: #{tpu_custom_call.1} parent=39 // pred_region
          %363 = dma.done %s355, 8192
        $region44: #{tpu_custom_call.1} parent=39 // pred_fallthru
          _
        // Predicated region
        $region45: #{tpu_custom_call.1} parent=39 // pred_check
          %p364 = pneg %p85
        $region46: #{tpu_custom_call.1} parent=39 // pred_check_branch
          %366 = sbr.rel (%p364) target = $region48
        $region47: #{tpu_custom_call.1} parent=39 // pred_region
          %368 = dma.done [#allocation6], 12288
        $region48: #{tpu_custom_call.1} parent=39 // pred_fallthru
          _
        %s369 = sand.u32 %s29, 1
        %s370 = scalar_lea.sflag [#allocation3], %s369
        %s371 = sand.u32 %s98, 1
        %s372 = smul.addr %s371, 256
        %s373 = scalar_lea.vmem [#allocation7], %s372
        // Predicated region
        $region49: #{tpu_custom_call.1} parent=39 // pred_check
          %p374 = pneg %p111
        $region50: #{tpu_custom_call.1} parent=39 // pred_check_branch
          %376 = sbr.rel (%p374) target = $region52
        $region51: #{tpu_custom_call.1} parent=39 // pred_region
          %378 = dma.done %s370, 4096
        $region52: #{tpu_custom_call.1} parent=39 // pred_fallthru
          _
        %s379 = sand.u32 %s29, 1
        %s380 = scalar_lea.sflag [#allocation3], %s379
        %s381 = sand.u32 %s124, 1
        %s382 = smul.addr %s381, 256
        %s383 = scalar_lea.vmem [#allocation8], %s382
        // Predicated region
        $region53: #{tpu_custom_call.1} parent=39 // pred_check
          %p384 = pneg %p137
        $region54: #{tpu_custom_call.1} parent=39 // pred_check_branch
          %386 = sbr.rel (%p384) target = $region56
        $region55: #{tpu_custom_call.1} parent=39 // pred_region
          %388 = dma.done %s380, 4096
        $region56: #{tpu_custom_call.1} parent=39 // pred_fallthru
          _
        %s389 = sand.u32 %s29, 1
        %s390 = scalar_lea.sflag [#allocation3], %s389
        %s391 = sand.u32 %s51, 1
        %s392 = smul.addr %s391, 512
        %s393 = scalar_lea.vmem [#allocation2], %s392
        %p394 = pneg %p64
        %p395 = pneg %p61
        %p396 = pneg %p85
        %p397 = pneg %p82
        %s398 = sand.u32 %s29, 1
        %s399 = scalar_lea.sflag [#allocation3], %s398
        %s400 = sand.u32 %s98, 1
        %s401 = smul.addr %s400, 256
        %s402 = scalar_lea.vmem [#allocation7], %s401
        %p403 = pneg %p111
        %p404 = pneg %p108
        %s405 = sand.u32 %s29, 1
        %s406 = scalar_lea.sflag [#allocation3], %s405
        %s407 = sand.u32 %s124, 1
        %s408 = smul.addr %s407, 256
        %s409 = scalar_lea.vmem [#allocation8], %s408
        %p410 = pneg %p137
        %p411 = pneg %p134
        %p412 = pneg %p158
        %p413 = pneg %p155
        %p414 = pneg %p186
        %p415 = pneg %p183
        %s416 = sand.u32 %s173, 1
        %s417 = scalar_lea.sflag [#allocation4], %s416
        %s418 = sand.u32 %s173, 1
        %s419 = smul.addr %s418, 256
        %s420 = scalar_lea.vmem [#allocation9], %s419
        %p421 = pneg %p214
        %p422 = pneg %p211
        %s423 = sand.u32 %s29, 1
        %s424 = scalar_lea.sflag [#allocation11], %s423
        %s425 = sand.u32 %s201, 1
        %s426 = smul.addr %s425, 256
        %s427 = scalar_lea.vmem [#allocation10], %s426
        %p428 = pneg %p242
        %p429 = pneg %p239
        %s430 = sand.u32 %s29, 1
        %s431 = scalar_lea.sflag [#allocation11], %s430
        %s432 = sand.u32 %s229, 1
        %s433 = smul.addr %s432, 256
        %s434 = scalar_lea.vmem [#allocation12], %s433
        %s435 = smul.u32 32, %s34
        %s436 = smul.u32 32, %s34
        %s437 = smul.u32 32, %s34
        %s438 = smul.u32 32, %s34
        %s439 = smul.u32 32, %s34
        %s440 = smul.u32 32, %s34
        %v441 = vld [vmem:[%s358] sm:$0xff]
        %v442 = vld [vmem:[%s358 + $0x8] sm:$0xff]
        %v443 = vld [vmem:[%s358 + $0x10] sm:$0xff]
        %v444 = vld [vmem:[%s358 + $0x18] sm:$0xff]
        %v445 = vld [vmem:[%s358 + $0x20] sm:$0xff]
        %v446 = vld [vmem:[%s358 + $0x28] sm:$0xff]
        %v447 = vld [vmem:[%s358 + $0x30] sm:$0xff]
        %v448 = vld [vmem:[%s358 + $0x38] sm:$0xff]
        %v449 = vld [vmem:[%s358 + $0x40] sm:$0xff]
        %v450 = vld [vmem:[%s358 + $0x48] sm:$0xff]
        %v451 = vld [vmem:[%s358 + $0x50] sm:$0xff]
        %v452 = vld [vmem:[%s358 + $0x58] sm:$0xff]
        %v453 = vld [vmem:[%s358 + $0x60] sm:$0xff]
        %v454 = vld [vmem:[%s358 + $0x68] sm:$0xff]
        %v455 = vld [vmem:[%s358 + $0x70] sm:$0xff]
        %v456 = vld [vmem:[%s358 + $0x78] sm:$0xff]
        %v457 = vld [vmem:[%s358 + $0x80] sm:$0xff]
        %v458 = vld [vmem:[%s358 + $0x88] sm:$0xff]
        %v459 = vld [vmem:[%s358 + $0x90] sm:$0xff]
        %v460 = vld [vmem:[%s358 + $0x98] sm:$0xff]
        %v461 = vld [vmem:[%s358 + $0xa0] sm:$0xff]
        %v462 = vld [vmem:[%s358 + $0xa8] sm:$0xff]
        %v463 = vld [vmem:[%s358 + $0xb0] sm:$0xff]
        %v464 = vld [vmem:[%s358 + $0xb8] sm:$0xff]
        %v465 = vld [vmem:[%s358 + $0xc0] sm:$0xff]
        %v466 = vld [vmem:[%s358 + $0xc8] sm:$0xff]
        %v467 = vld [vmem:[%s358 + $0xd0] sm:$0xff]
        %v468 = vld [vmem:[%s358 + $0xd8] sm:$0xff]
        %v469 = vld [vmem:[%s358 + $0xe0] sm:$0xff]
        %v470 = vld [vmem:[%s358 + $0xe8] sm:$0xff]
        %v471 = vld [vmem:[%s358 + $0xf0] sm:$0xff]
        %v472 = vld [vmem:[%s358 + $0xf8] sm:$0xff]
        %v473 = vld [vmem:[%s358 + $0x100] sm:$0xff]
        %v474 = vld [vmem:[%s358 + $0x108] sm:$0xff]
        %v475 = vld [vmem:[%s358 + $0x110] sm:$0xff]
        %v476 = vld [vmem:[%s358 + $0x118] sm:$0xff]
        %v477 = vld [vmem:[%s358 + $0x120] sm:$0xff]
        %v478 = vld [vmem:[%s358 + $0x128] sm:$0xff]
        %v479 = vld [vmem:[%s358 + $0x130] sm:$0xff]
        %v480 = vld [vmem:[%s358 + $0x138] sm:$0xff]
        %v481 = vld [vmem:[%s358 + $0x140] sm:$0xff]
        %v482 = vld [vmem:[%s358 + $0x148] sm:$0xff]
        %v483 = vld [vmem:[%s358 + $0x150] sm:$0xff]
        %v484 = vld [vmem:[%s358 + $0x158] sm:$0xff]
        %v485 = vld [vmem:[%s358 + $0x160] sm:$0xff]
        %v486 = vld [vmem:[%s358 + $0x168] sm:$0xff]
        %v487 = vld [vmem:[%s358 + $0x170] sm:$0xff]
        %v488 = vld [vmem:[%s358 + $0x178] sm:$0xff]
        %v489 = vld [vmem:[%s358 + $0x180] sm:$0xff]
        %v490 = vld [vmem:[%s358 + $0x188] sm:$0xff]
        %v491 = vld [vmem:[%s358 + $0x190] sm:$0xff]
        %v492 = vld [vmem:[%s358 + $0x198] sm:$0xff]
        %v493 = vld [vmem:[%s358 + $0x1a0] sm:$0xff]
        %v494 = vld [vmem:[%s358 + $0x1a8] sm:$0xff]
        %v495 = vld [vmem:[%s358 + $0x1b0] sm:$0xff]
        %v496 = vld [vmem:[%s358 + $0x1b8] sm:$0xff]
        %v497 = vld [vmem:[%s358 + $0x1c0] sm:$0xff]
        %v498 = vld [vmem:[%s358 + $0x1c8] sm:$0xff]
        %v499 = vld [vmem:[%s358 + $0x1d0] sm:$0xff]
        %v500 = vld [vmem:[%s358 + $0x1d8] sm:$0xff]
        %v501 = vld [vmem:[%s358 + $0x1e0] sm:$0xff]
        %v502 = vld [vmem:[%s358 + $0x1e8] sm:$0xff]
        %v503 = vld [vmem:[%s358 + $0x1f0] sm:$0xff]
        %v504 = vld [vmem:[%s358 + $0x1f8] sm:$0xff]
        %v505 = vld [vmem:[%s4] sm:$0x3]
        %v506 = vmul.f32 %v441, %v441
        %v507 = vmul.f32 %v442, %v442
        %v508 = vmul.f32 %v443, %v443
        %v509 = vmul.f32 %v444, %v444
        %v510 = vmul.f32 %v445, %v445
        %v511 = vmul.f32 %v446, %v446
        %v512 = vmul.f32 %v447, %v447
        %v513 = vmul.f32 %v448, %v448
        %v514 = vmul.f32 %v449, %v449
        %v515 = vmul.f32 %v450, %v450
        %v516 = vmul.f32 %v451, %v451
        %v517 = vmul.f32 %v452, %v452
        %v518 = vmul.f32 %v453, %v453
        %v519 = vmul.f32 %v454, %v454
        %v520 = vmul.f32 %v455, %v455
        %v521 = vmul.f32 %v456, %v456
        %v522 = vmul.f32 %v457, %v457
        %v523 = vmul.f32 %v458, %v458
        %v524 = vmul.f32 %v459, %v459
        %v525 = vmul.f32 %v460, %v460
        %v526 = vmul.f32 %v461, %v461
        %v527 = vmul.f32 %v462, %v462
        %v528 = vmul.f32 %v463, %v463
        %v529 = vmul.f32 %v464, %v464
        %v530 = vmul.f32 %v465, %v465
        %v531 = vmul.f32 %v466, %v466
        %v532 = vmul.f32 %v467, %v467
        %v533 = vmul.f32 %v468, %v468
        %v534 = vmul.f32 %v469, %v469
        %v535 = vmul.f32 %v470, %v470
        %v536 = vmul.f32 %v471, %v471
        %v537 = vmul.f32 %v472, %v472
        %v538 = vmul.f32 %v473, %v473
        %v539 = vmul.f32 %v474, %v474
        %v540 = vmul.f32 %v475, %v475
        %v541 = vmul.f32 %v476, %v476
        %v542 = vmul.f32 %v477, %v477
        %v543 = vmul.f32 %v478, %v478
        %v544 = vmul.f32 %v479, %v479
        %v545 = vmul.f32 %v480, %v480
        %v546 = vmul.f32 %v481, %v481
        %v547 = vmul.f32 %v482, %v482
        %v548 = vmul.f32 %v483, %v483
        %v549 = vmul.f32 %v484, %v484
        %v550 = vmul.f32 %v485, %v485
        %v551 = vmul.f32 %v486, %v486
        %v552 = vmul.f32 %v487, %v487
        %v553 = vmul.f32 %v488, %v488
        %v554 = vmul.f32 %v489, %v489
        %v555 = vmul.f32 %v490, %v490
        %v556 = vmul.f32 %v491, %v491
        %v557 = vmul.f32 %v492, %v492
        %v558 = vmul.f32 %v493, %v493
        %v559 = vmul.f32 %v494, %v494
        %v560 = vmul.f32 %v495, %v495
        %v561 = vmul.f32 %v496, %v496
        %v562 = vmul.f32 %v497, %v497
        %v563 = vmul.f32 %v498, %v498
        %v564 = vmul.f32 %v499, %v499
        %v565 = vmul.f32 %v500, %v500
        %v566 = vmul.f32 %v501, %v501
        %v567 = vmul.f32 %v502, %v502
        %v568 = vmul.f32 %v503, %v503
        %v569 = vmul.f32 %v504, %v504
        %v570 = vadd.f32 %v506, %v507
        %571 = vadd.xlane.f32.xlu0 %v570
        %v572 = vpop.xlane.xlu0 %571
        %v573 = vadd.f32 %v508, %v509
        %574 = vadd.xlane.f32.xlu0 %v573
        %v575 = vpop.xlane.xlu0 %574
        %v576 = vadd.f32 %v510, %v511
        %577 = vadd.xlane.f32.xlu0 %v576
        %v578 = vpop.xlane.xlu0 %577
        %v579 = vadd.f32 %v512, %v513
        %580 = vadd.xlane.f32.xlu0 %v579
        %v581 = vpop.xlane.xlu0 %580
        %v582 = vadd.f32 %v514, %v515
        %583 = vadd.xlane.f32.xlu0 %v582
        %v584 = vpop.xlane.xlu0 %583
        %v585 = vadd.f32 %v516, %v517
        %586 = vadd.xlane.f32.xlu0 %v585
        %v587 = vpop.xlane.xlu0 %586
        %v588 = vadd.f32 %v518, %v519
        %589 = vadd.xlane.f32.xlu0 %v588
        %v590 = vpop.xlane.xlu0 %589
        %v591 = vadd.f32 %v520, %v521
        %592 = vadd.xlane.f32.xlu0 %v591
        %v593 = vpop.xlane.xlu0 %592
        %v594 = vadd.f32 %v522, %v523
        %595 = vadd.xlane.f32.xlu0 %v594
        %v596 = vpop.xlane.xlu0 %595
        %v597 = vadd.f32 %v524, %v525
        %598 = vadd.xlane.f32.xlu0 %v597
        %v599 = vpop.xlane.xlu0 %598
        %v600 = vadd.f32 %v526, %v527
        %601 = vadd.xlane.f32.xlu0 %v600
        %v602 = vpop.xlane.xlu0 %601
        %v603 = vadd.f32 %v528, %v529
        %604 = vadd.xlane.f32.xlu0 %v603
        %v605 = vpop.xlane.xlu0 %604
        %v606 = vadd.f32 %v530, %v531
        %607 = vadd.xlane.f32.xlu0 %v606
        %v608 = vpop.xlane.xlu0 %607
        %v609 = vadd.f32 %v532, %v533
        %610 = vadd.xlane.f32.xlu0 %v609
        %v611 = vpop.xlane.xlu0 %610
        %v612 = vadd.f32 %v534, %v535
        %613 = vadd.xlane.f32.xlu0 %v612
        %v614 = vpop.xlane.xlu0 %613
        %v615 = vadd.f32 %v536, %v537
        %616 = vadd.xlane.f32.xlu0 %v615
        %v617 = vpop.xlane.xlu0 %616
        %v618 = vadd.f32 %v538, %v539
        %619 = vadd.xlane.f32.xlu0 %v618
        %v620 = vpop.xlane.xlu0 %619
        %v621 = vadd.f32 %v540, %v541
        %622 = vadd.xlane.f32.xlu0 %v621
        %v623 = vpop.xlane.xlu0 %622
        %v624 = vadd.f32 %v542, %v543
        %625 = vadd.xlane.f32.xlu0 %v624
        %v626 = vpop.xlane.xlu0 %625
        %v627 = vadd.f32 %v544, %v545
        %628 = vadd.xlane.f32.xlu0 %v627
        %v629 = vpop.xlane.xlu0 %628
        %v630 = vadd.f32 %v546, %v547
        %631 = vadd.xlane.f32.xlu0 %v630
        %v632 = vpop.xlane.xlu0 %631
        %v633 = vadd.f32 %v548, %v549
        %634 = vadd.xlane.f32.xlu0 %v633
        %v635 = vpop.xlane.xlu0 %634
        %v636 = vadd.f32 %v550, %v551
        %637 = vadd.xlane.f32.xlu0 %v636
        %v638 = vpop.xlane.xlu0 %637
        %v639 = vadd.f32 %v552, %v553
        %640 = vadd.xlane.f32.xlu0 %v639
        %v641 = vpop.xlane.xlu0 %640
        %v642 = vadd.f32 %v554, %v555
        %643 = vadd.xlane.f32.xlu0 %v642
        %v644 = vpop.xlane.xlu0 %643
        %v645 = vadd.f32 %v556, %v557
        %646 = vadd.xlane.f32.xlu0 %v645
        %v647 = vpop.xlane.xlu0 %646
        %v648 = vadd.f32 %v558, %v559
        %649 = vadd.xlane.f32.xlu0 %v648
        %v650 = vpop.xlane.xlu0 %649
        %v651 = vadd.f32 %v560, %v561
        %652 = vadd.xlane.f32.xlu0 %v651
        %v653 = vpop.xlane.xlu0 %652
        %v654 = vadd.f32 %v562, %v563
        %655 = vadd.xlane.f32.xlu0 %v654
        %v656 = vpop.xlane.xlu0 %655
        %v657 = vadd.f32 %v564, %v565
        %658 = vadd.xlane.f32.xlu0 %v657
        %v659 = vpop.xlane.xlu0 %658
        %v660 = vadd.f32 %v566, %v567
        %661 = vadd.xlane.f32.xlu0 %v660
        %v662 = vpop.xlane.xlu0 %661
        %v663 = vadd.f32 %v568, %v569
        %664 = vadd.xlane.f32.xlu0 %v663
        %v665 = vpop.xlane.xlu0 %664
        %v666 = vrcp.pop 256.0
        %v667 = vmul.f32 256.0, %v666
        %v668 = vsub.f32 1.0, %v667
        %v669 = vmul.f32 %v666, %v668
        %v670 = vadd.f32 %v666, %v669
        %vm671 = vweird.f32 %v666
        %v672 = vsel %vm671, %v666, %v670
        %v673 = vmul.f32 %v572, %v672
        %v674 = vmul.f32 %v575, %v672
        %v675 = vmul.f32 %v578, %v672
        %v676 = vmul.f32 %v581, %v672
        %v677 = vmul.f32 %v584, %v672
        %v678 = vmul.f32 %v587, %v672
        %v679 = vmul.f32 %v590, %v672
        %v680 = vmul.f32 %v593, %v672
        %v681 = vmul.f32 %v596, %v672
        %v682 = vmul.f32 %v599, %v672
        %v683 = vmul.f32 %v602, %v672
        %v684 = vmul.f32 %v605, %v672
        %v685 = vmul.f32 %v608, %v672
        %v686 = vmul.f32 %v611, %v672
        %v687 = vmul.f32 %v614, %v672
        %v688 = vmul.f32 %v617, %v672
        %v689 = vmul.f32 %v620, %v672
        %v690 = vmul.f32 %v623, %v672
        %v691 = vmul.f32 %v626, %v672
        %v692 = vmul.f32 %v629, %v672
        %v693 = vmul.f32 %v632, %v672
        %v694 = vmul.f32 %v635, %v672
        %v695 = vmul.f32 %v638, %v672
        %v696 = vmul.f32 %v641, %v672
        %v697 = vmul.f32 %v644, %v672
        %v698 = vmul.f32 %v647, %v672
        %v699 = vmul.f32 %v650, %v672
        %v700 = vmul.f32 %v653, %v672
        %v701 = vmul.f32 %v656, %v672
        %v702 = vmul.f32 %v659, %v672
        %v703 = vmul.f32 %v662, %v672
        %v704 = vmul.f32 %v665, %v672
        %v705 = vadd.f32 %v673, 1e-05
        %v706 = vadd.f32 %v674, 1e-05
        %v707 = vadd.f32 %v675, 1e-05
        %v708 = vadd.f32 %v676, 1e-05
        %v709 = vadd.f32 %v677, 1e-05
        %v710 = vadd.f32 %v678, 1e-05
        %v711 = vadd.f32 %v679, 1e-05
        %v712 = vadd.f32 %v680, 1e-05
        %v713 = vadd.f32 %v681, 1e-05
        %v714 = vadd.f32 %v682, 1e-05
        %v715 = vadd.f32 %v683, 1e-05
        %v716 = vadd.f32 %v684, 1e-05
        %v717 = vadd.f32 %v685, 1e-05
        %v718 = vadd.f32 %v686, 1e-05
        %v719 = vadd.f32 %v687, 1e-05
        %v720 = vadd.f32 %v688, 1e-05
        %v721 = vadd.f32 %v689, 1e-05
        %v722 = vadd.f32 %v690, 1e-05
        %v723 = vadd.f32 %v691, 1e-05
        %v724 = vadd.f32 %v692, 1e-05
        %v725 = vadd.f32 %v693, 1e-05
        %v726 = vadd.f32 %v694, 1e-05
        %v727 = vadd.f32 %v695, 1e-05
        %v728 = vadd.f32 %v696, 1e-05
        %v729 = vadd.f32 %v697, 1e-05
        %v730 = vadd.f32 %v698, 1e-05
        %v731 = vadd.f32 %v699, 1e-05
        %v732 = vadd.f32 %v700, 1e-05
        %v733 = vadd.f32 %v701, 1e-05
        %v734 = vadd.f32 %v702, 1e-05
        %v735 = vadd.f32 %v703, 1e-05
        %v736 = vadd.f32 %v704, 1e-05
        %v737 = vrsqrt.pop %v705
        %v738 = vmul.f32 %v737, %v705
        %v739 = vmul.f32 %v738, %v737
        %v740 = vmul.f32 0.5, %v739
        %v741 = vsub.f32 1.5, %v740
        %v742 = vmul.f32 %v737, %v741
        %vm743 = vweird.f32 %v705
        %vm744 = vweird.f32 %v737
        %vm745 = vmor %vm743, %vm744
        %v746 = vsel %vm745, %v737, %v742
        %v747 = vrsqrt.pop %v706
        %v748 = vmul.f32 %v747, %v706
        %v749 = vmul.f32 %v748, %v747
        %v750 = vmul.f32 0.5, %v749
        %v751 = vsub.f32 1.5, %v750
        %v752 = vmul.f32 %v747, %v751
        %vm753 = vweird.f32 %v706
        %vm754 = vweird.f32 %v747
        %vm755 = vmor %vm753, %vm754
        %v756 = vsel %vm755, %v747, %v752
        %v757 = vrsqrt.pop %v707
        %v758 = vmul.f32 %v757, %v707
        %v759 = vmul.f32 %v758, %v757
        %v760 = vmul.f32 0.5, %v759
        %v761 = vsub.f32 1.5, %v760
        %v762 = vmul.f32 %v757, %v761
        %vm763 = vweird.f32 %v707
        %vm764 = vweird.f32 %v757
        %vm765 = vmor %vm763, %vm764
        %v766 = vsel %vm765, %v757, %v762
        %v767 = vrsqrt.pop %v708
        %v768 = vmul.f32 %v767, %v708
        %v769 = vmul.f32 %v768, %v767
        %v770 = vmul.f32 0.5, %v769
        %v771 = vsub.f32 1.5, %v770
        %v772 = vmul.f32 %v767, %v771
        %vm773 = vweird.f32 %v708
        %vm774 = vweird.f32 %v767
        %vm775 = vmor %vm773, %vm774
        %v776 = vsel %vm775, %v767, %v772
        %v777 = vrsqrt.pop %v709
        %v778 = vmul.f32 %v777, %v709
        %v779 = vmul.f32 %v778, %v777
        %v780 = vmul.f32 0.5, %v779
        %v781 = vsub.f32 1.5, %v780
        %v782 = vmul.f32 %v777, %v781
        %vm783 = vweird.f32 %v709
        %vm784 = vweird.f32 %v777
        %vm785 = vmor %vm783, %vm784
        %v786 = vsel %vm785, %v777, %v782
        %v787 = vrsqrt.pop %v710
        %v788 = vmul.f32 %v787, %v710
        %v789 = vmul.f32 %v788, %v787
        %v790 = vmul.f32 0.5, %v789
        %v791 = vsub.f32 1.5, %v790
        %v792 = vmul.f32 %v787, %v791
        %vm793 = vweird.f32 %v710
        %vm794 = vweird.f32 %v787
        %vm795 = vmor %vm793, %vm794
        %v796 = vsel %vm795, %v787, %v792
        %v797 = vrsqrt.pop %v711
        %v798 = vmul.f32 %v797, %v711
        %v799 = vmul.f32 %v798, %v797
        %v800 = vmul.f32 0.5, %v799
        %v801 = vsub.f32 1.5, %v800
        %v802 = vmul.f32 %v797, %v801
        %vm803 = vweird.f32 %v711
        %vm804 = vweird.f32 %v797
        %vm805 = vmor %vm803, %vm804
        %v806 = vsel %vm805, %v797, %v802
        %v807 = vrsqrt.pop %v712
        %v808 = vmul.f32 %v807, %v712
        %v809 = vmul.f32 %v808, %v807
        %v810 = vmul.f32 0.5, %v809
        %v811 = vsub.f32 1.5, %v810
        %v812 = vmul.f32 %v807, %v811
        %vm813 = vweird.f32 %v712
        %vm814 = vweird.f32 %v807
        %vm815 = vmor %vm813, %vm814
        %v816 = vsel %vm815, %v807, %v812
        %v817 = vrsqrt.pop %v713
        %v818 = vmul.f32 %v817, %v713
        %v819 = vmul.f32 %v818, %v817
        %v820 = vmul.f32 0.5, %v819
        %v821 = vsub.f32 1.5, %v820
        %v822 = vmul.f32 %v817, %v821
        %vm823 = vweird.f32 %v713
        %vm824 = vweird.f32 %v817
        %vm825 = vmor %vm823, %vm824
        %v826 = vsel %vm825, %v817, %v822
        %v827 = vrsqrt.pop %v714
        %v828 = vmul.f32 %v827, %v714
        %v829 = vmul.f32 %v828, %v827
        %v830 = vmul.f32 0.5, %v829
        %v831 = vsub.f32 1.5, %v830
        %v832 = vmul.f32 %v827, %v831
        %vm833 = vweird.f32 %v714
        %vm834 = vweird.f32 %v827
        %vm835 = vmor %vm833, %vm834
        %v836 = vsel %vm835, %v827, %v832
        %v837 = vrsqrt.pop %v715
        %v838 = vmul.f32 %v837, %v715
        %v839 = vmul.f32 %v838, %v837
        %v840 = vmul.f32 0.5, %v839
        %v841 = vsub.f32 1.5, %v840
        %v842 = vmul.f32 %v837, %v841
        %vm843 = vweird.f32 %v715
        %vm844 = vweird.f32 %v837
        %vm845 = vmor %vm843, %vm844
        %v846 = vsel %vm845, %v837, %v842
        %v847 = vrsqrt.pop %v716
        %v848 = vmul.f32 %v847, %v716
        %v849 = vmul.f32 %v848, %v847
        %v850 = vmul.f32 0.5, %v849
        %v851 = vsub.f32 1.5, %v850
        %v852 = vmul.f32 %v847, %v851
        %vm853 = vweird.f32 %v716
        %vm854 = vweird.f32 %v847
        %vm855 = vmor %vm853, %vm854
        %v856 = vsel %vm855, %v847, %v852
        %v857 = vrsqrt.pop %v717
        %v858 = vmul.f32 %v857, %v717
        %v859 = vmul.f32 %v858, %v857
        %v860 = vmul.f32 0.5, %v859
        %v861 = vsub.f32 1.5, %v860
        %v862 = vmul.f32 %v857, %v861
        %vm863 = vweird.f32 %v717
        %vm864 = vweird.f32 %v857
        %vm865 = vmor %vm863, %vm864
        %v866 = vsel %vm865, %v857, %v862
        %v867 = vrsqrt.pop %v718
        %v868 = vmul.f32 %v867, %v718
        %v869 = vmul.f32 %v868, %v867
        %v870 = vmul.f32 0.5, %v869
        %v871 = vsub.f32 1.5, %v870
        %v872 = vmul.f32 %v867, %v871
        %vm873 = vweird.f32 %v718
        %vm874 = vweird.f32 %v867
        %vm875 = vmor %vm873, %vm874
        %v876 = vsel %vm875, %v867, %v872
        %v877 = vrsqrt.pop %v719
        %v878 = vmul.f32 %v877, %v719
        %v879 = vmul.f32 %v878, %v877
        %v880 = vmul.f32 0.5, %v879
        %v881 = vsub.f32 1.5, %v880
        %v882 = vmul.f32 %v877, %v881
        %vm883 = vweird.f32 %v719
        %vm884 = vweird.f32 %v877
        %vm885 = vmor %vm883, %vm884
        %v886 = vsel %vm885, %v877, %v882
        %v887 = vrsqrt.pop %v720
        %v888 = vmul.f32 %v887, %v720
        %v889 = vmul.f32 %v888, %v887
        %v890 = vmul.f32 0.5, %v889
        %v891 = vsub.f32 1.5, %v890
        %v892 = vmul.f32 %v887, %v891
        %vm893 = vweird.f32 %v720
        %vm894 = vweird.f32 %v887
        %vm895 = vmor %vm893, %vm894
        %v896 = vsel %vm895, %v887, %v892
        %v897 = vrsqrt.pop %v721
        %v898 = vmul.f32 %v897, %v721
        %v899 = vmul.f32 %v898, %v897
        %v900 = vmul.f32 0.5, %v899
        %v901 = vsub.f32 1.5, %v900
        %v902 = vmul.f32 %v897, %v901
        %vm903 = vweird.f32 %v721
        %vm904 = vweird.f32 %v897
        %vm905 = vmor %vm903, %vm904
        %v906 = vsel %vm905, %v897, %v902
        %v907 = vrsqrt.pop %v722
        %v908 = vmul.f32 %v907, %v722
        %v909 = vmul.f32 %v908, %v907
        %v910 = vmul.f32 0.5, %v909
        %v911 = vsub.f32 1.5, %v910
        %v912 = vmul.f32 %v907, %v911
        %vm913 = vweird.f32 %v722
        %vm914 = vweird.f32 %v907
        %vm915 = vmor %vm913, %vm914
        %v916 = vsel %vm915, %v907, %v912
        %v917 = vrsqrt.pop %v723
        %v918 = vmul.f32 %v917, %v723
        %v919 = vmul.f32 %v918, %v917
        %v920 = vmul.f32 0.5, %v919
        %v921 = vsub.f32 1.5, %v920
        %v922 = vmul.f32 %v917, %v921
        %vm923 = vweird.f32 %v723
        %vm924 = vweird.f32 %v917
        %vm925 = vmor %vm923, %vm924
        %v926 = vsel %vm925, %v917, %v922
        %v927 = vrsqrt.pop %v724
        %v928 = vmul.f32 %v927, %v724
        %v929 = vmul.f32 %v928, %v927
        %v930 = vmul.f32 0.5, %v929
        %v931 = vsub.f32 1.5, %v930
        %v932 = vmul.f32 %v927, %v931
        %vm933 = vweird.f32 %v724
        %vm934 = vweird.f32 %v927
        %vm935 = vmor %vm933, %vm934
        %v936 = vsel %vm935, %v927, %v932
        %v937 = vrsqrt.pop %v725
        %v938 = vmul.f32 %v937, %v725
        %v939 = vmul.f32 %v938, %v937
        %v940 = vmul.f32 0.5, %v939
        %v941 = vsub.f32 1.5, %v940
        %v942 = vmul.f32 %v937, %v941
        %vm943 = vweird.f32 %v725
        %vm944 = vweird.f32 %v937
        %vm945 = vmor %vm943, %vm944
        %v946 = vsel %vm945, %v937, %v942
        %v947 = vrsqrt.pop %v726
        %v948 = vmul.f32 %v947, %v726
        %v949 = vmul.f32 %v948, %v947
        %v950 = vmul.f32 0.5, %v949
        %v951 = vsub.f32 1.5, %v950
        %v952 = vmul.f32 %v947, %v951
        %vm953 = vweird.f32 %v726
        %vm954 = vweird.f32 %v947
        %vm955 = vmor %vm953, %vm954
        %v956 = vsel %vm955, %v947, %v952
        %v957 = vrsqrt.pop %v727
        %v958 = vmul.f32 %v957, %v727
        %v959 = vmul.f32 %v958, %v957
        %v960 = vmul.f32 0.5, %v959
        %v961 = vsub.f32 1.5, %v960
        %v962 = vmul.f32 %v957, %v961
        %vm963 = vweird.f32 %v727
        %vm964 = vweird.f32 %v957
        %vm965 = vmor %vm963, %vm964
        %v966 = vsel %vm965, %v957, %v962
        %v967 = vrsqrt.pop %v728
        %v968 = vmul.f32 %v967, %v728
        %v969 = vmul.f32 %v968, %v967
        %v970 = vmul.f32 0.5, %v969
        %v971 = vsub.f32 1.5, %v970
        %v972 = vmul.f32 %v967, %v971
        %vm973 = vweird.f32 %v728
        %vm974 = vweird.f32 %v967
        %vm975 = vmor %vm973, %vm974
        %v976 = vsel %vm975, %v967, %v972
        %v977 = vrsqrt.pop %v729
        %v978 = vmul.f32 %v977, %v729
        %v979 = vmul.f32 %v978, %v977
        %v980 = vmul.f32 0.5, %v979
        %v981 = vsub.f32 1.5, %v980
        %v982 = vmul.f32 %v977, %v981
        %vm983 = vweird.f32 %v729
        %vm984 = vweird.f32 %v977
        %vm985 = vmor %vm983, %vm984
        %v986 = vsel %vm985, %v977, %v982
        %v987 = vrsqrt.pop %v730
        %v988 = vmul.f32 %v987, %v730
        %v989 = vmul.f32 %v988, %v987
        %v990 = vmul.f32 0.5, %v989
        %v991 = vsub.f32 1.5, %v990
        %v992 = vmul.f32 %v987, %v991
        %vm993 = vweird.f32 %v730
        %vm994 = vweird.f32 %v987
        %vm995 = vmor %vm993, %vm994
        %v996 = vsel %vm995, %v987, %v992
        %v997 = vrsqrt.pop %v731
        %v998 = vmul.f32 %v997, %v731
        %v999 = vmul.f32 %v998, %v997
        %v1000 = vmul.f32 0.5, %v999
        %v1001 = vsub.f32 1.5, %v1000
        %v1002 = vmul.f32 %v997, %v1001
        %vm1003 = vweird.f32 %v731
        %vm1004 = vweird.f32 %v997
        %vm1005 = vmor %vm1003, %vm1004
        %v1006 = vsel %vm1005, %v997, %v1002
        %v1007 = vrsqrt.pop %v732
        %v1008 = vmul.f32 %v1007, %v732
        %v1009 = vmul.f32 %v1008, %v1007
        %v1010 = vmul.f32 0.5, %v1009
        %v1011 = vsub.f32 1.5, %v1010
        %v1012 = vmul.f32 %v1007, %v1011
        %vm1013 = vweird.f32 %v732
        %vm1014 = vweird.f32 %v1007
        %vm1015 = vmor %vm1013, %vm1014
        %v1016 = vsel %vm1015, %v1007, %v1012
        %v1017 = vrsqrt.pop %v733
        %v1018 = vmul.f32 %v1017, %v733
        %v1019 = vmul.f32 %v1018, %v1017
        %v1020 = vmul.f32 0.5, %v1019
        %v1021 = vsub.f32 1.5, %v1020
        %v1022 = vmul.f32 %v1017, %v1021
        %vm1023 = vweird.f32 %v733
        %vm1024 = vweird.f32 %v1017
        %vm1025 = vmor %vm1023, %vm1024
        %v1026 = vsel %vm1025, %v1017, %v1022
        %v1027 = vrsqrt.pop %v734
        %v1028 = vmul.f32 %v1027, %v734
        %v1029 = vmul.f32 %v1028, %v1027
        %v1030 = vmul.f32 0.5, %v1029
        %v1031 = vsub.f32 1.5, %v1030
        %v1032 = vmul.f32 %v1027, %v1031
        %vm1033 = vweird.f32 %v734
        %vm1034 = vweird.f32 %v1027
        %vm1035 = vmor %vm1033, %vm1034
        %v1036 = vsel %vm1035, %v1027, %v1032
        %v1037 = vrsqrt.pop %v735
        %v1038 = vmul.f32 %v1037, %v735
        %v1039 = vmul.f32 %v1038, %v1037
        %v1040 = vmul.f32 0.5, %v1039
        %v1041 = vsub.f32 1.5, %v1040
        %v1042 = vmul.f32 %v1037, %v1041
        %vm1043 = vweird.f32 %v735
        %vm1044 = vweird.f32 %v1037
        %vm1045 = vmor %vm1043, %vm1044
        %v1046 = vsel %vm1045, %v1037, %v1042
        %v1047 = vrsqrt.pop %v736
        %v1048 = vmul.f32 %v1047, %v736
        %v1049 = vmul.f32 %v1048, %v1047
        %v1050 = vmul.f32 0.5, %v1049
        %v1051 = vsub.f32 1.5, %v1050
        %v1052 = vmul.f32 %v1047, %v1051
        %vm1053 = vweird.f32 %v736
        %vm1054 = vweird.f32 %v1047
        %vm1055 = vmor %vm1053, %vm1054
        %v1056 = vsel %vm1055, %v1047, %v1052
        %v1057 = vmul.f32 %v441, %v746
        %v1058 = vmul.f32 %v442, %v746
        %v1059 = vmul.f32 %v443, %v756
        %v1060 = vmul.f32 %v444, %v756
        %v1061 = vmul.f32 %v445, %v766
        %v1062 = vmul.f32 %v446, %v766
        %v1063 = vmul.f32 %v447, %v776
        %v1064 = vmul.f32 %v448, %v776
        %v1065 = vmul.f32 %v449, %v786
        %v1066 = vmul.f32 %v450, %v786
        %v1067 = vmul.f32 %v451, %v796
        %v1068 = vmul.f32 %v452, %v796
        %v1069 = vmul.f32 %v453, %v806
        %v1070 = vmul.f32 %v454, %v806
        %v1071 = vmul.f32 %v455, %v816
        %v1072 = vmul.f32 %v456, %v816
        %v1073 = vmul.f32 %v457, %v826
        %v1074 = vmul.f32 %v458, %v826
        %v1075 = vmul.f32 %v459, %v836
        %v1076 = vmul.f32 %v460, %v836
        %v1077 = vmul.f32 %v461, %v846
        %v1078 = vmul.f32 %v462, %v846
        %v1079 = vmul.f32 %v463, %v856
        %v1080 = vmul.f32 %v464, %v856
        %v1081 = vmul.f32 %v465, %v866
        %v1082 = vmul.f32 %v466, %v866
        %v1083 = vmul.f32 %v467, %v876
        %v1084 = vmul.f32 %v468, %v876
        %v1085 = vmul.f32 %v469, %v886
        %v1086 = vmul.f32 %v470, %v886
        %v1087 = vmul.f32 %v471, %v896
        %v1088 = vmul.f32 %v472, %v896
        %v1089 = vmul.f32 %v473, %v906
        %v1090 = vmul.f32 %v474, %v906
        %v1091 = vmul.f32 %v475, %v916
        %v1092 = vmul.f32 %v476, %v916
        %v1093 = vmul.f32 %v477, %v926
        %v1094 = vmul.f32 %v478, %v926
        %v1095 = vmul.f32 %v479, %v936
        %v1096 = vmul.f32 %v480, %v936
        %v1097 = vmul.f32 %v481, %v946
        %v1098 = vmul.f32 %v482, %v946
        %v1099 = vmul.f32 %v483, %v956
        %v1100 = vmul.f32 %v484, %v956
        %v1101 = vmul.f32 %v485, %v966
        %v1102 = vmul.f32 %v486, %v966
        %v1103 = vmul.f32 %v487, %v976
        %v1104 = vmul.f32 %v488, %v976
        %v1105 = vmul.f32 %v489, %v986
        %v1106 = vmul.f32 %v490, %v986
        %v1107 = vmul.f32 %v491, %v996
        %v1108 = vmul.f32 %v492, %v996
        %v1109 = vmul.f32 %v493, %v1006
        %v1110 = vmul.f32 %v494, %v1006
        %v1111 = vmul.f32 %v495, %v1016
        %v1112 = vmul.f32 %v496, %v1016
        %v1113 = vmul.f32 %v497, %v1026
        %v1114 = vmul.f32 %v498, %v1026
        %v1115 = vmul.f32 %v499, %v1036
        %v1116 = vmul.f32 %v500, %v1036
        %v1117 = vmul.f32 %v501, %v1046
        %v1118 = vmul.f32 %v502, %v1046
        %v1119 = vmul.f32 %v503, %v1056
        %v1120 = vmul.f32 %v504, %v1056
        %v1122 = vperm.slane %v505, 0
        %v1123 = vperm.slane %v505, 1
        %v1126 = vmul.f32 %v1057, %v1122
        %v1127 = vmul.f32 %v1058, %v1123
        %v1128 = vmul.f32 %v1059, %v1122
        %v1129 = vmul.f32 %v1060, %v1123
        %v1130 = vmul.f32 %v1061, %v1122
        %v1131 = vmul.f32 %v1062, %v1123
        %v1132 = vmul.f32 %v1063, %v1122
        %v1133 = vmul.f32 %v1064, %v1123
        %v1134 = vmul.f32 %v1065, %v1122
        %v1135 = vmul.f32 %v1066, %v1123
        %v1136 = vmul.f32 %v1067, %v1122
        %v1137 = vmul.f32 %v1068, %v1123
        %v1138 = vmul.f32 %v1069, %v1122
        %v1139 = vmul.f32 %v1070, %v1123
        %v1140 = vmul.f32 %v1071, %v1122
        %v1141 = vmul.f32 %v1072, %v1123
        %v1142 = vmul.f32 %v1073, %v1122
        %v1143 = vmul.f32 %v1074, %v1123
        %v1144 = vmul.f32 %v1075, %v1122
        %v1145 = vmul.f32 %v1076, %v1123
        %v1146 = vmul.f32 %v1077, %v1122
        %v1147 = vmul.f32 %v1078, %v1123
        %v1148 = vmul.f32 %v1079, %v1122
        %v1149 = vmul.f32 %v1080, %v1123
        %v1150 = vmul.f32 %v1081, %v1122
        %v1151 = vmul.f32 %v1082, %v1123
        %v1152 = vmul.f32 %v1083, %v1122
        %v1153 = vmul.f32 %v1084, %v1123
        %v1154 = vmul.f32 %v1085, %v1122
        %v1155 = vmul.f32 %v1086, %v1123
        %v1156 = vmul.f32 %v1087, %v1122
        %v1157 = vmul.f32 %v1088, %v1123
        %v1158 = vmul.f32 %v1089, %v1122
        %v1159 = vmul.f32 %v1090, %v1123
        %v1160 = vmul.f32 %v1091, %v1122
        %v1161 = vmul.f32 %v1092, %v1123
        %v1162 = vmul.f32 %v1093, %v1122
        %v1163 = vmul.f32 %v1094, %v1123
        %v1164 = vmul.f32 %v1095, %v1122
        %v1165 = vmul.f32 %v1096, %v1123
        %v1166 = vmul.f32 %v1097, %v1122
        %v1167 = vmul.f32 %v1098, %v1123
        %v1168 = vmul.f32 %v1099, %v1122
        %v1169 = vmul.f32 %v1100, %v1123
        %v1170 = vmul.f32 %v1101, %v1122
        %v1171 = vmul.f32 %v1102, %v1123
        %v1172 = vmul.f32 %v1103, %v1122
        %v1173 = vmul.f32 %v1104, %v1123
        %v1174 = vmul.f32 %v1105, %v1122
        %v1175 = vmul.f32 %v1106, %v1123
        %v1176 = vmul.f32 %v1107, %v1122
        %v1177 = vmul.f32 %v1108, %v1123
        %v1178 = vmul.f32 %v1109, %v1122
        %v1179 = vmul.f32 %v1110, %v1123
        %v1180 = vmul.f32 %v1111, %v1122
        %v1181 = vmul.f32 %v1112, %v1123
        %v1182 = vmul.f32 %v1113, %v1122
        %v1183 = vmul.f32 %v1114, %v1123
        %v1184 = vmul.f32 %v1115, %v1122
        %v1185 = vmul.f32 %v1116, %v1123
        %v1186 = vmul.f32 %v1117, %v1122
        %v1187 = vmul.f32 %v1118, %v1123
        %v1188 = vmul.f32 %v1119, %v1122
        %v1189 = vmul.f32 %v1120, %v1123
        %v1190 = vpack.c.bf16 %v1128, %v1126
        %v1191 = vpack.c.bf16 %v1129, %v1127
        %v1192 = vpack.c.bf16 %v1132, %v1130
        %v1193 = vpack.c.bf16 %v1133, %v1131
        %v1194 = vpack.c.bf16 %v1136, %v1134
        %v1195 = vpack.c.bf16 %v1137, %v1135
        %v1196 = vpack.c.bf16 %v1140, %v1138
        %v1197 = vpack.c.bf16 %v1141, %v1139
        %v1198 = vpack.c.bf16 %v1144, %v1142
        %v1199 = vpack.c.bf16 %v1145, %v1143
        %v1200 = vpack.c.bf16 %v1148, %v1146
        %v1201 = vpack.c.bf16 %v1149, %v1147
        %v1202 = vpack.c.bf16 %v1152, %v1150
        %v1203 = vpack.c.bf16 %v1153, %v1151
        %v1204 = vpack.c.bf16 %v1156, %v1154
        %v1205 = vpack.c.bf16 %v1157, %v1155
        %v1206 = vpack.c.bf16 %v1160, %v1158
        %v1207 = vpack.c.bf16 %v1161, %v1159
        %v1208 = vpack.c.bf16 %v1164, %v1162
        %v1209 = vpack.c.bf16 %v1165, %v1163
        %v1210 = vpack.c.bf16 %v1168, %v1166
        %v1211 = vpack.c.bf16 %v1169, %v1167
        %v1212 = vpack.c.bf16 %v1172, %v1170
        %v1213 = vpack.c.bf16 %v1173, %v1171
        %v1214 = vpack.c.bf16 %v1176, %v1174
        %v1215 = vpack.c.bf16 %v1177, %v1175
        %v1216 = vpack.c.bf16 %v1180, %v1178
        %v1217 = vpack.c.bf16 %v1181, %v1179
        %v1218 = vpack.c.bf16 %v1184, %v1182
        %v1219 = vpack.c.bf16 %v1185, %v1183
        %v1220 = vpack.c.bf16 %v1188, %v1186
        %v1221 = vpack.c.bf16 %v1189, %v1187
        %v1222 = vld [vmem:[#allocation5] sm:$0xff]
        %v1223 = vld [vmem:[#allocation5 + $0x8] sm:$0xff]
        %v1224 = vld [vmem:[#allocation5 + $0x10] sm:$0xff]
        %v1225 = vld [vmem:[#allocation5 + $0x18] sm:$0xff]
        %v1226 = vld [vmem:[#allocation5 + $0x20] sm:$0xff]
        %v1227 = vld [vmem:[#allocation5 + $0x28] sm:$0xff]
        %v1228 = vld [vmem:[#allocation5 + $0x30] sm:$0xff]
        %v1229 = vld [vmem:[#allocation5 + $0x38] sm:$0xff]
        %v1230 = vld [vmem:[#allocation5 + $0x40] sm:$0xff]
        %v1231 = vld [vmem:[#allocation5 + $0x48] sm:$0xff]
        %v1232 = vld [vmem:[#allocation5 + $0x50] sm:$0xff]
        %v1233 = vld [vmem:[#allocation5 + $0x58] sm:$0xff]
        %v1234 = vld [vmem:[#allocation5 + $0x60] sm:$0xff]
        %v1235 = vld [vmem:[#allocation5 + $0x68] sm:$0xff]
        %v1236 = vld [vmem:[#allocation5 + $0x70] sm:$0xff]
        %v1237 = vld [vmem:[#allocation5 + $0x78] sm:$0xff]
        %v1238 = vld [vmem:[#allocation5 + $0x80] sm:$0xff]
        %v1239 = vld [vmem:[#allocation5 + $0x88] sm:$0xff]
        %v1240 = vld [vmem:[#allocation5 + $0x90] sm:$0xff]
        %v1241 = vld [vmem:[#allocation5 + $0x98] sm:$0xff]
        %v1242 = vld [vmem:[#allocation5 + $0xa0] sm:$0xff]
        %v1243 = vld [vmem:[#allocation5 + $0xa8] sm:$0xff]
        %v1244 = vld [vmem:[#allocation5 + $0xb0] sm:$0xff]
        %v1245 = vld [vmem:[#allocation5 + $0xb8] sm:$0xff]
        %v1246 = vld [vmem:[#allocation5 + $0xc0] sm:$0xff]
        %v1247 = vld [vmem:[#allocation5 + $0xc8] sm:$0xff]
        %v1248 = vld [vmem:[#allocation5 + $0xd0] sm:$0xff]
        %v1249 = vld [vmem:[#allocation5 + $0xd8] sm:$0xff]
        %v1250 = vld [vmem:[#allocation5 + $0xe0] sm:$0xff]
        %v1251 = vld [vmem:[#allocation5 + $0xe8] sm:$0xff]
        %v1252 = vld [vmem:[#allocation5 + $0xf0] sm:$0xff]
        %v1253 = vld [vmem:[#allocation5 + $0xf8] sm:$0xff]
        %v1254 = vld [vmem:[#allocation5 + $0x100] sm:$0xff]
        %v1255 = vld [vmem:[#allocation5 + $0x108] sm:$0xff]
        %v1256 = vld [vmem:[#allocation5 + $0x110] sm:$0xff]
        %v1257 = vld [vmem:[#allocation5 + $0x118] sm:$0xff]
        %v1258 = vld [vmem:[#allocation5 + $0x120] sm:$0xff]
        %v1259 = vld [vmem:[#allocation5 + $0x128] sm:$0xff]
        %v1260 = vld [vmem:[#allocation5 + $0x130] sm:$0xff]
        %v1261 = vld [vmem:[#allocation5 + $0x138] sm:$0xff]
        %v1262 = vld [vmem:[#allocation5 + $0x140] sm:$0xff]
        %v1263 = vld [vmem:[#allocation5 + $0x148] sm:$0xff]
        %v1264 = vld [vmem:[#allocation5 + $0x150] sm:$0xff]
        %v1265 = vld [vmem:[#allocation5 + $0x158] sm:$0xff]
        %v1266 = vld [vmem:[#allocation5 + $0x160] sm:$0xff]
        %v1267 = vld [vmem:[#allocation5 + $0x168] sm:$0xff]
        %v1268 = vld [vmem:[#allocation5 + $0x170] sm:$0xff]
        %v1269 = vld [vmem:[#allocation5 + $0x178] sm:$0xff]
        %v1270 = vld [vmem:[#allocation5 + $0x180] sm:$0xff]
        %v1271 = vld [vmem:[#allocation5 + $0x188] sm:$0xff]
        %v1272 = vld [vmem:[#allocation5 + $0x190] sm:$0xff]
        %v1273 = vld [vmem:[#allocation5 + $0x198] sm:$0xff]
        %v1274 = vld [vmem:[#allocation5 + $0x1a0] sm:$0xff]
        %v1275 = vld [vmem:[#allocation5 + $0x1a8] sm:$0xff]
        %v1276 = vld [vmem:[#allocation5 + $0x1b0] sm:$0xff]
        %v1277 = vld [vmem:[#allocation5 + $0x1b8] sm:$0xff]
        %v1278 = vld [vmem:[#allocation5 + $0x1c0] sm:$0xff]
        %v1279 = vld [vmem:[#allocation5 + $0x1c8] sm:$0xff]
        %v1280 = vld [vmem:[#allocation5 + $0x1d0] sm:$0xff]
        %v1281 = vld [vmem:[#allocation5 + $0x1d8] sm:$0xff]
        %v1282 = vld [vmem:[#allocation5 + $0x1e0] sm:$0xff]
        %v1283 = vld [vmem:[#allocation5 + $0x1e8] sm:$0xff]
        %v1284 = vld [vmem:[#allocation5 + $0x1f0] sm:$0xff]
        %v1285 = vld [vmem:[#allocation5 + $0x1f8] sm:$0xff]
        %v1286 = vld [vmem:[#allocation5 + $0x200] sm:$0xff]
        %v1287 = vld [vmem:[#allocation5 + $0x208] sm:$0xff]
        %v1288 = vld [vmem:[#allocation5 + $0x210] sm:$0xff]
        %v1289 = vld [vmem:[#allocation5 + $0x218] sm:$0xff]
        %v1290 = vld [vmem:[#allocation5 + $0x220] sm:$0xff]
        %v1291 = vld [vmem:[#allocation5 + $0x228] sm:$0xff]
        %v1292 = vld [vmem:[#allocation5 + $0x230] sm:$0xff]
        %v1293 = vld [vmem:[#allocation5 + $0x238] sm:$0xff]
        %v1294 = vld [vmem:[#allocation5 + $0x240] sm:$0xff]
        %v1295 = vld [vmem:[#allocation5 + $0x248] sm:$0xff]
        %v1296 = vld [vmem:[#allocation5 + $0x250] sm:$0xff]
        %v1297 = vld [vmem:[#allocation5 + $0x258] sm:$0xff]
        %v1298 = vld [vmem:[#allocation5 + $0x260] sm:$0xff]
        %v1299 = vld [vmem:[#allocation5 + $0x268] sm:$0xff]
        %v1300 = vld [vmem:[#allocation5 + $0x270] sm:$0xff]
        %v1301 = vld [vmem:[#allocation5 + $0x278] sm:$0xff]
        %v1302 = vld [vmem:[#allocation5 + $0x280] sm:$0xff]
        %v1303 = vld [vmem:[#allocation5 + $0x288] sm:$0xff]
        %v1304 = vld [vmem:[#allocation5 + $0x290] sm:$0xff]
        %v1305 = vld [vmem:[#allocation5 + $0x298] sm:$0xff]
        %v1306 = vld [vmem:[#allocation5 + $0x2a0] sm:$0xff]
        %v1307 = vld [vmem:[#allocation5 + $0x2a8] sm:$0xff]
        %v1308 = vld [vmem:[#allocation5 + $0x2b0] sm:$0xff]
        %v1309 = vld [vmem:[#allocation5 + $0x2b8] sm:$0xff]
        %v1310 = vld [vmem:[#allocation5 + $0x2c0] sm:$0xff]
        %v1311 = vld [vmem:[#allocation5 + $0x2c8] sm:$0xff]
        %v1312 = vld [vmem:[#allocation5 + $0x2d0] sm:$0xff]
        %v1313 = vld [vmem:[#allocation5 + $0x2d8] sm:$0xff]
        %v1314 = vld [vmem:[#allocation5 + $0x2e0] sm:$0xff]
        %v1315 = vld [vmem:[#allocation5 + $0x2e8] sm:$0xff]
        %v1316 = vld [vmem:[#allocation5 + $0x2f0] sm:$0xff]
        %v1317 = vld [vmem:[#allocation5 + $0x2f8] sm:$0xff]
        %v1414 = vunpack.c.l.b16 %v1222
        %v1415 = vunpack.c.h.b16 %v1222
        %v1416 = vunpack.c.l.b16 %v1223
        %v1417 = vunpack.c.h.b16 %v1223
        %v1418 = vunpack.c.l.b16 %v1224
        %v1419 = vunpack.c.h.b16 %v1224
        %v1420 = vunpack.c.l.b16 %v1225
        %v1421 = vunpack.c.h.b16 %v1225
        %v1422 = vunpack.c.l.b16 %v1226
        %v1423 = vunpack.c.h.b16 %v1226
        %v1424 = vunpack.c.l.b16 %v1227
        %v1425 = vunpack.c.h.b16 %v1227
        %v1426 = vunpack.c.l.b16 %v1228
        %v1427 = vunpack.c.h.b16 %v1228
        %v1428 = vunpack.c.l.b16 %v1229
        %v1429 = vunpack.c.h.b16 %v1229
        %v1430 = vunpack.c.l.b16 %v1230
        %v1431 = vunpack.c.h.b16 %v1230
        %v1432 = vunpack.c.l.b16 %v1231
        %v1433 = vunpack.c.h.b16 %v1231
        %v1434 = vunpack.c.l.b16 %v1232
        %v1435 = vunpack.c.h.b16 %v1232
        %v1436 = vunpack.c.l.b16 %v1233
        %v1437 = vunpack.c.h.b16 %v1233
        %v1438 = vunpack.c.l.b16 %v1234
        %v1439 = vunpack.c.h.b16 %v1234
        %v1440 = vunpack.c.l.b16 %v1235
        %v1441 = vunpack.c.h.b16 %v1235
        %v1442 = vunpack.c.l.b16 %v1236
        %v1443 = vunpack.c.h.b16 %v1236
        %v1444 = vunpack.c.l.b16 %v1237
        %v1445 = vunpack.c.h.b16 %v1237
        %v1446 = vunpack.c.l.b16 %v1238
        %v1447 = vunpack.c.h.b16 %v1238
        %v1448 = vunpack.c.l.b16 %v1239
        %v1449 = vunpack.c.h.b16 %v1239
        %v1450 = vunpack.c.l.b16 %v1240
        %v1451 = vunpack.c.h.b16 %v1240
        %v1452 = vunpack.c.l.b16 %v1241
        %v1453 = vunpack.c.h.b16 %v1241
        %v1454 = vunpack.c.l.b16 %v1242
        %v1455 = vunpack.c.h.b16 %v1242
        %v1456 = vunpack.c.l.b16 %v1243
        %v1457 = vunpack.c.h.b16 %v1243
        %v1458 = vunpack.c.l.b16 %v1244
        %v1459 = vunpack.c.h.b16 %v1244
        %v1460 = vunpack.c.l.b16 %v1245
        %v1461 = vunpack.c.h.b16 %v1245
        %v1462 = vunpack.c.l.b16 %v1246
        %v1463 = vunpack.c.h.b16 %v1246
        %v1464 = vunpack.c.l.b16 %v1247
        %v1465 = vunpack.c.h.b16 %v1247
        %v1466 = vunpack.c.l.b16 %v1248
        %v1467 = vunpack.c.h.b16 %v1248
        %v1468 = vunpack.c.l.b16 %v1249
        %v1469 = vunpack.c.h.b16 %v1249
        %v1470 = vunpack.c.l.b16 %v1250
        %v1471 = vunpack.c.h.b16 %v1250
        %v1472 = vunpack.c.l.b16 %v1251
        %v1473 = vunpack.c.h.b16 %v1251
        %v1474 = vunpack.c.l.b16 %v1252
        %v1475 = vunpack.c.h.b16 %v1252
        %v1476 = vunpack.c.l.b16 %v1253
        %v1477 = vunpack.c.h.b16 %v1253
        %v1478 = vunpack.c.l.b16 %v1254
        %v1479 = vunpack.c.h.b16 %v1254
        %v1480 = vunpack.c.l.b16 %v1255
        %v1481 = vunpack.c.h.b16 %v1255
        %v1482 = vunpack.c.l.b16 %v1256
        %v1483 = vunpack.c.h.b16 %v1256
        %v1484 = vunpack.c.l.b16 %v1257
        %v1485 = vunpack.c.h.b16 %v1257
        %v1486 = vunpack.c.l.b16 %v1258
        %v1487 = vunpack.c.h.b16 %v1258
        %v1488 = vunpack.c.l.b16 %v1259
        %v1489 = vunpack.c.h.b16 %v1259
        %v1490 = vunpack.c.l.b16 %v1260
        %v1491 = vunpack.c.h.b16 %v1260
        %v1492 = vunpack.c.l.b16 %v1261
        %v1493 = vunpack.c.h.b16 %v1261
        %v1494 = vunpack.c.l.b16 %v1262
        %v1495 = vunpack.c.h.b16 %v1262
        %v1496 = vunpack.c.l.b16 %v1263
        %v1497 = vunpack.c.h.b16 %v1263
        %v1498 = vunpack.c.l.b16 %v1264
        %v1499 = vunpack.c.h.b16 %v1264
        %v1500 = vunpack.c.l.b16 %v1265
        %v1501 = vunpack.c.h.b16 %v1265
        %v1502 = vunpack.c.l.b16 %v1266
        %v1503 = vunpack.c.h.b16 %v1266
        %v1504 = vunpack.c.l.b16 %v1267
        %v1505 = vunpack.c.h.b16 %v1267
        %v1506 = vunpack.c.l.b16 %v1268
        %v1507 = vunpack.c.h.b16 %v1268
        %v1508 = vunpack.c.l.b16 %v1269
        %v1509 = vunpack.c.h.b16 %v1269
        %v1510 = vunpack.c.l.b16 %v1270
        %v1511 = vunpack.c.h.b16 %v1270
        %v1512 = vunpack.c.l.b16 %v1271
        %v1513 = vunpack.c.h.b16 %v1271
        %v1514 = vunpack.c.l.b16 %v1272
        %v1515 = vunpack.c.h.b16 %v1272
        %v1516 = vunpack.c.l.b16 %v1273
        %v1517 = vunpack.c.h.b16 %v1273
        %v1518 = vunpack.c.l.b16 %v1274
        %v1519 = vunpack.c.h.b16 %v1274
        %v1520 = vunpack.c.l.b16 %v1275
        %v1521 = vunpack.c.h.b16 %v1275
        %v1522 = vunpack.c.l.b16 %v1276
        %v1523 = vunpack.c.h.b16 %v1276
        %v1524 = vunpack.c.l.b16 %v1277
        %v1525 = vunpack.c.h.b16 %v1277
        %v1526 = vunpack.c.l.b16 %v1278
        %v1527 = vunpack.c.h.b16 %v1278
        %v1528 = vunpack.c.l.b16 %v1279
        %v1529 = vunpack.c.h.b16 %v1279
        %v1530 = vunpack.c.l.b16 %v1280
        %v1531 = vunpack.c.h.b16 %v1280
        %v1532 = vunpack.c.l.b16 %v1281
        %v1533 = vunpack.c.h.b16 %v1281
        %v1534 = vunpack.c.l.b16 %v1282
        %v1535 = vunpack.c.h.b16 %v1282
        %v1536 = vunpack.c.l.b16 %v1283
        %v1537 = vunpack.c.h.b16 %v1283
        %v1538 = vunpack.c.l.b16 %v1284
        %v1539 = vunpack.c.h.b16 %v1284
        %v1540 = vunpack.c.l.b16 %v1285
        %v1541 = vunpack.c.h.b16 %v1285
        %v1542 = vunpack.c.l.b16 %v1286
        %v1543 = vunpack.c.h.b16 %v1286
        %v1544 = vunpack.c.l.b16 %v1287
        %v1545 = vunpack.c.h.b16 %v1287
        %v1546 = vunpack.c.l.b16 %v1288
        %v1547 = vunpack.c.h.b16 %v1288
        %v1548 = vunpack.c.l.b16 %v1289
        %v1549 = vunpack.c.h.b16 %v1289
        %v1550 = vunpack.c.l.b16 %v1290
        %v1551 = vunpack.c.h.b16 %v1290
        %v1552 = vunpack.c.l.b16 %v1291
        %v1553 = vunpack.c.h.b16 %v1291
        %v1554 = vunpack.c.l.b16 %v1292
        %v1555 = vunpack.c.h.b16 %v1292
        %v1556 = vunpack.c.l.b16 %v1293
        %v1557 = vunpack.c.h.b16 %v1293
        %v1558 = vunpack.c.l.b16 %v1294
        %v1559 = vunpack.c.h.b16 %v1294
        %v1560 = vunpack.c.l.b16 %v1295
        %v1561 = vunpack.c.h.b16 %v1295
        %v1562 = vunpack.c.l.b16 %v1296
        %v1563 = vunpack.c.h.b16 %v1296
        %v1564 = vunpack.c.l.b16 %v1297
        %v1565 = vunpack.c.h.b16 %v1297
        %v1566 = vunpack.c.l.b16 %v1298
        %v1567 = vunpack.c.h.b16 %v1298
        %v1568 = vunpack.c.l.b16 %v1299
        %v1569 = vunpack.c.h.b16 %v1299
        %v1570 = vunpack.c.l.b16 %v1300
        %v1571 = vunpack.c.h.b16 %v1300
        %v1572 = vunpack.c.l.b16 %v1301
        %v1573 = vunpack.c.h.b16 %v1301
        %v1574 = vunpack.c.l.b16 %v1302
        %v1575 = vunpack.c.h.b16 %v1302
        %v1576 = vunpack.c.l.b16 %v1303
        %v1577 = vunpack.c.h.b16 %v1303
        %v1578 = vunpack.c.l.b16 %v1304
        %v1579 = vunpack.c.h.b16 %v1304
        %v1580 = vunpack.c.l.b16 %v1305
        %v1581 = vunpack.c.h.b16 %v1305
        %v1582 = vunpack.c.l.b16 %v1306
        %v1583 = vunpack.c.h.b16 %v1306
        %v1584 = vunpack.c.l.b16 %v1307
        %v1585 = vunpack.c.h.b16 %v1307
        %v1586 = vunpack.c.l.b16 %v1308
        %v1587 = vunpack.c.h.b16 %v1308
        %v1588 = vunpack.c.l.b16 %v1309
        %v1589 = vunpack.c.h.b16 %v1309
        %v1590 = vunpack.c.l.b16 %v1310
        %v1591 = vunpack.c.h.b16 %v1310
        %v1592 = vunpack.c.l.b16 %v1311
        %v1593 = vunpack.c.h.b16 %v1311
        %v1594 = vunpack.c.l.b16 %v1312
        %v1595 = vunpack.c.h.b16 %v1312
        %v1596 = vunpack.c.l.b16 %v1313
        %v1597 = vunpack.c.h.b16 %v1313
        %v1598 = vunpack.c.l.b16 %v1314
        %v1599 = vunpack.c.h.b16 %v1314
        %v1600 = vunpack.c.l.b16 %v1315
        %v1601 = vunpack.c.h.b16 %v1315
        %v1602 = vunpack.c.l.b16 %v1316
        %v1603 = vunpack.c.h.b16 %v1316
        %v1604 = vunpack.c.l.b16 %v1317
        %v1605 = vunpack.c.h.b16 %v1317
        %v1606 = vpack.c.b16 %v1420, %v1414
        %v1607 = vpack.c.b16 %v1421, %v1415
        %v1608 = vpack.c.b16 %v1422, %v1416
        %v1609 = vpack.c.b16 %v1423, %v1417
        %v1610 = vpack.c.b16 %v1424, %v1418
        %v1611 = vpack.c.b16 %v1425, %v1419
        %v1612 = vpack.c.b16 %v1432, %v1426
        %v1613 = vpack.c.b16 %v1433, %v1427
        %v1614 = vpack.c.b16 %v1434, %v1428
        %v1615 = vpack.c.b16 %v1435, %v1429
        %v1616 = vpack.c.b16 %v1436, %v1430
        %v1617 = vpack.c.b16 %v1437, %v1431
        %v1618 = vpack.c.b16 %v1444, %v1438
        %v1619 = vpack.c.b16 %v1445, %v1439
        %v1620 = vpack.c.b16 %v1446, %v1440
        %v1621 = vpack.c.b16 %v1447, %v1441
        %v1622 = vpack.c.b16 %v1448, %v1442
        %v1623 = vpack.c.b16 %v1449, %v1443
        %v1624 = vpack.c.b16 %v1456, %v1450
        %v1625 = vpack.c.b16 %v1457, %v1451
        %v1626 = vpack.c.b16 %v1458, %v1452
        %v1627 = vpack.c.b16 %v1459, %v1453
        %v1628 = vpack.c.b16 %v1460, %v1454
        %v1629 = vpack.c.b16 %v1461, %v1455
        %v1630 = vpack.c.b16 %v1468, %v1462
        %v1631 = vpack.c.b16 %v1469, %v1463
        %v1632 = vpack.c.b16 %v1470, %v1464
        %v1633 = vpack.c.b16 %v1471, %v1465
        %v1634 = vpack.c.b16 %v1472, %v1466
        %v1635 = vpack.c.b16 %v1473, %v1467
        %v1636 = vpack.c.b16 %v1480, %v1474
        %v1637 = vpack.c.b16 %v1481, %v1475
        %v1638 = vpack.c.b16 %v1482, %v1476
        %v1639 = vpack.c.b16 %v1483, %v1477
        %v1640 = vpack.c.b16 %v1484, %v1478
        %v1641 = vpack.c.b16 %v1485, %v1479
        %v1642 = vpack.c.b16 %v1492, %v1486
        %v1643 = vpack.c.b16 %v1493, %v1487
        %v1644 = vpack.c.b16 %v1494, %v1488
        %v1645 = vpack.c.b16 %v1495, %v1489
        %v1646 = vpack.c.b16 %v1496, %v1490
        %v1647 = vpack.c.b16 %v1497, %v1491
        %v1648 = vpack.c.b16 %v1504, %v1498
        %v1649 = vpack.c.b16 %v1505, %v1499
        %v1650 = vpack.c.b16 %v1506, %v1500
        %v1651 = vpack.c.b16 %v1507, %v1501
        %v1652 = vpack.c.b16 %v1508, %v1502
        %v1653 = vpack.c.b16 %v1509, %v1503
        %v1654 = vpack.c.b16 %v1516, %v1510
        %v1655 = vpack.c.b16 %v1517, %v1511
        %v1656 = vpack.c.b16 %v1518, %v1512
        %v1657 = vpack.c.b16 %v1519, %v1513
        %v1658 = vpack.c.b16 %v1520, %v1514
        %v1659 = vpack.c.b16 %v1521, %v1515
        %v1660 = vpack.c.b16 %v1528, %v1522
        %v1661 = vpack.c.b16 %v1529, %v1523
        %v1662 = vpack.c.b16 %v1530, %v1524
        %v1663 = vpack.c.b16 %v1531, %v1525
        %v1664 = vpack.c.b16 %v1532, %v1526
        %v1665 = vpack.c.b16 %v1533, %v1527
        %v1666 = vpack.c.b16 %v1540, %v1534
        %v1667 = vpack.c.b16 %v1541, %v1535
        %v1668 = vpack.c.b16 %v1542, %v1536
        %v1669 = vpack.c.b16 %v1543, %v1537
        %v1670 = vpack.c.b16 %v1544, %v1538
        %v1671 = vpack.c.b16 %v1545, %v1539
        %v1672 = vpack.c.b16 %v1552, %v1546
        %v1673 = vpack.c.b16 %v1553, %v1547
        %v1674 = vpack.c.b16 %v1554, %v1548
        %v1675 = vpack.c.b16 %v1555, %v1549
        %v1676 = vpack.c.b16 %v1556, %v1550
        %v1677 = vpack.c.b16 %v1557, %v1551
        %v1678 = vpack.c.b16 %v1564, %v1558
        %v1679 = vpack.c.b16 %v1565, %v1559
        %v1680 = vpack.c.b16 %v1566, %v1560
        %v1681 = vpack.c.b16 %v1567, %v1561
        %v1682 = vpack.c.b16 %v1568, %v1562
        %v1683 = vpack.c.b16 %v1569, %v1563
        %v1684 = vpack.c.b16 %v1576, %v1570
        %v1685 = vpack.c.b16 %v1577, %v1571
        %v1686 = vpack.c.b16 %v1578, %v1572
        %v1687 = vpack.c.b16 %v1579, %v1573
        %v1688 = vpack.c.b16 %v1580, %v1574
        %v1689 = vpack.c.b16 %v1581, %v1575
        %v1690 = vpack.c.b16 %v1588, %v1582
        %v1691 = vpack.c.b16 %v1589, %v1583
        %v1692 = vpack.c.b16 %v1590, %v1584
        %v1693 = vpack.c.b16 %v1591, %v1585
        %v1694 = vpack.c.b16 %v1592, %v1586
        %v1695 = vpack.c.b16 %v1593, %v1587
        %v1696 = vpack.c.b16 %v1600, %v1594
        %v1697 = vpack.c.b16 %v1601, %v1595
        %v1698 = vpack.c.b16 %v1602, %v1596
        %v1699 = vpack.c.b16 %v1603, %v1597
        %v1700 = vpack.c.b16 %v1604, %v1598
        %v1701 = vpack.c.b16 %v1605, %v1599
        %1798 = vmatpush.bf16.msra.mxu0 %v1648
        %1799 = vmatpush.bf16.msra.mxu0 %v1642
        %1800 = vmatpush.bf16.msra.mxu0 %v1636
        %1801 = vmatpush.bf16.msra.mxu0 %v1630
        %1802 = vmatpush.bf16.msra.mxu0 %v1624
        %1803 = vmatpush.bf16.msra.mxu0 %v1618
        %1804 = vmatpush.bf16.msra.mxu0 %v1612
        %1805 = vmatpush.bf16.msra.mxu0 %v1606
        %1806 = vmatmul.bf16.gmra.mxu0 %v1190
        %v1807 = vpop.f32.mrf.mxu0
        %v1808 = vadd.f32 0.0, %v1807
        %v1809 = vpop.f32.mrf.mxu0
        %v1810 = vadd.f32 0.0, %v1809
        %1811 = vmatmul.bf16.gmra.mxu0 %v1192
        %v1812 = vpop.f32.mrf.mxu0
        %v1813 = vadd.f32 0.0, %v1812
        %v1814 = vpop.f32.mrf.mxu0
        %v1815 = vadd.f32 0.0, %v1814
        %1816 = vmatmul.bf16.gmra.mxu0 %v1194
        %v1817 = vpop.f32.mrf.mxu0
        %v1818 = vadd.f32 0.0, %v1817
        %v1819 = vpop.f32.mrf.mxu0
        %v1820 = vadd.f32 0.0, %v1819
        %1821 = vmatmul.bf16.gmra.mxu0 %v1196
        %v1822 = vpop.f32.mrf.mxu0
        %v1823 = vadd.f32 0.0, %v1822
        %v1824 = vpop.f32.mrf.mxu0
        %v1825 = vadd.f32 0.0, %v1824
        %1826 = vmatmul.bf16.gmra.mxu0 %v1198
        %v1827 = vpop.f32.mrf.mxu0
        %v1828 = vadd.f32 0.0, %v1827
        %v1829 = vpop.f32.mrf.mxu0
        %v1830 = vadd.f32 0.0, %v1829
        %1831 = vmatmul.bf16.gmra.mxu0 %v1200
        %v1832 = vpop.f32.mrf.mxu0
        %v1833 = vadd.f32 0.0, %v1832
        %v1834 = vpop.f32.mrf.mxu0
        %v1835 = vadd.f32 0.0, %v1834
        %1836 = vmatmul.bf16.gmra.mxu0 %v1202
        %v1837 = vpop.f32.mrf.mxu0
        %v1838 = vadd.f32 0.0, %v1837
        %v1839 = vpop.f32.mrf.mxu0
        %v1840 = vadd.f32 0.0, %v1839
        %1841 = vmatmul.bf16.gmra.mxu0 %v1204
        %v1842 = vpop.f32.mrf.mxu0
        %v1843 = vadd.f32 0.0, %v1842
        %v1844 = vpop.f32.mrf.mxu0
        %v1845 = vadd.f32 0.0, %v1844
        %1846 = vmatmul.bf16.gmra.mxu0 %v1206
        %v1847 = vpop.f32.mrf.mxu0
        %v1848 = vadd.f32 0.0, %v1847
        %v1849 = vpop.f32.mrf.mxu0
        %v1850 = vadd.f32 0.0, %v1849
        %1851 = vmatmul.bf16.gmra.mxu0 %v1208
        %v1852 = vpop.f32.mrf.mxu0
        %v1853 = vadd.f32 0.0, %v1852
        %v1854 = vpop.f32.mrf.mxu0
        %v1855 = vadd.f32 0.0, %v1854
        %1856 = vmatmul.bf16.gmra.mxu0 %v1210
        %v1857 = vpop.f32.mrf.mxu0
        %v1858 = vadd.f32 0.0, %v1857
        %v1859 = vpop.f32.mrf.mxu0
        %v1860 = vadd.f32 0.0, %v1859
        %1861 = vmatmul.bf16.gmra.mxu0 %v1212
        %v1862 = vpop.f32.mrf.mxu0
        %v1863 = vadd.f32 0.0, %v1862
        %v1864 = vpop.f32.mrf.mxu0
        %v1865 = vadd.f32 0.0, %v1864
        %1866 = vmatmul.bf16.gmra.mxu0 %v1214
        %v1867 = vpop.f32.mrf.mxu0
        %v1868 = vadd.f32 0.0, %v1867
        %v1869 = vpop.f32.mrf.mxu0
        %v1870 = vadd.f32 0.0, %v1869
        %1871 = vmatmul.bf16.gmra.mxu0 %v1216
        %v1872 = vpop.f32.mrf.mxu0
        %v1873 = vadd.f32 0.0, %v1872
        %v1874 = vpop.f32.mrf.mxu0
        %v1875 = vadd.f32 0.0, %v1874
        %1876 = vmatmul.bf16.gmra.mxu0 %v1218
        %v1877 = vpop.f32.mrf.mxu0
        %v1878 = vadd.f32 0.0, %v1877
        %v1879 = vpop.f32.mrf.mxu0
        %v1880 = vadd.f32 0.0, %v1879
        %1881 = vmatmul.bf16.gmra.mxu0 %v1220
        %v1882 = vpop.f32.mrf.mxu0
        %v1883 = vadd.f32 0.0, %v1882
        %v1884 = vpop.f32.mrf.mxu0
        %v1885 = vadd.f32 0.0, %v1884
        %1886 = vdwg.mxu0
        %1887 = vmatpush.bf16.msra.mxu0 %v1696
        %1888 = vmatpush.bf16.msra.mxu0 %v1690
        %1889 = vmatpush.bf16.msra.mxu0 %v1684
        %1890 = vmatpush.bf16.msra.mxu0 %v1678
        %1891 = vmatpush.bf16.msra.mxu0 %v1672
        %1892 = vmatpush.bf16.msra.mxu0 %v1666
        %1893 = vmatpush.bf16.msra.mxu0 %v1660
        %1894 = vmatpush.bf16.msra.mxu0 %v1654
        %1895 = vmatmul.bf16.gmra.mxu0 %v1191
        %v1896 = vpop.f32.mrf.mxu0
        %v1897 = vadd.f32 %v1808, %v1896
        %v1898 = vpop.f32.mrf.mxu0
        %v1899 = vadd.f32 %v1810, %v1898
        %1900 = vmatmul.bf16.gmra.mxu0 %v1193
        %v1901 = vpop.f32.mrf.mxu0
        %v1902 = vadd.f32 %v1813, %v1901
        %v1903 = vpop.f32.mrf.mxu0
        %v1904 = vadd.f32 %v1815, %v1903
        %1905 = vmatmul.bf16.gmra.mxu0 %v1195
        %v1906 = vpop.f32.mrf.mxu0
        %v1907 = vadd.f32 %v1818, %v1906
        %v1908 = vpop.f32.mrf.mxu0
        %v1909 = vadd.f32 %v1820, %v1908
        %1910 = vmatmul.bf16.gmra.mxu0 %v1197
        %v1911 = vpop.f32.mrf.mxu0
        %v1912 = vadd.f32 %v1823, %v1911
        %v1913 = vpop.f32.mrf.mxu0
        %v1914 = vadd.f32 %v1825, %v1913
        %1915 = vmatmul.bf16.gmra.mxu0 %v1199
        %v1916 = vpop.f32.mrf.mxu0
        %v1917 = vadd.f32 %v1828, %v1916
        %v1918 = vpop.f32.mrf.mxu0
        %v1919 = vadd.f32 %v1830, %v1918
        %1920 = vmatmul.bf16.gmra.mxu0 %v1201
        %v1921 = vpop.f32.mrf.mxu0
        %v1922 = vadd.f32 %v1833, %v1921
        %v1923 = vpop.f32.mrf.mxu0
        %v1924 = vadd.f32 %v1835, %v1923
        %1925 = vmatmul.bf16.gmra.mxu0 %v1203
        %v1926 = vpop.f32.mrf.mxu0
        %v1927 = vadd.f32 %v1838, %v1926
        %v1928 = vpop.f32.mrf.mxu0
        %v1929 = vadd.f32 %v1840, %v1928
        %1930 = vmatmul.bf16.gmra.mxu0 %v1205
        %v1931 = vpop.f32.mrf.mxu0
        %v1932 = vadd.f32 %v1843, %v1931
        %v1933 = vpop.f32.mrf.mxu0
        %v1934 = vadd.f32 %v1845, %v1933
        %1935 = vmatmul.bf16.gmra.mxu0 %v1207
        %v1936 = vpop.f32.mrf.mxu0
        %v1937 = vadd.f32 %v1848, %v1936
        %v1938 = vpop.f32.mrf.mxu0
        %v1939 = vadd.f32 %v1850, %v1938
        %1940 = vmatmul.bf16.gmra.mxu0 %v1209
        %v1941 = vpop.f32.mrf.mxu0
        %v1942 = vadd.f32 %v1853, %v1941
        %v1943 = vpop.f32.mrf.mxu0
        %v1944 = vadd.f32 %v1855, %v1943
        %1945 = vmatmul.bf16.gmra.mxu0 %v1211
        %v1946 = vpop.f32.mrf.mxu0
        %v1947 = vadd.f32 %v1858, %v1946
        %v1948 = vpop.f32.mrf.mxu0
        %v1949 = vadd.f32 %v1860, %v1948
        %1950 = vmatmul.bf16.gmra.mxu0 %v1213
        %v1951 = vpop.f32.mrf.mxu0
        %v1952 = vadd.f32 %v1863, %v1951
        %v1953 = vpop.f32.mrf.mxu0
        %v1954 = vadd.f32 %v1865, %v1953
        %1955 = vmatmul.bf16.gmra.mxu0 %v1215
        %v1956 = vpop.f32.mrf.mxu0
        %v1957 = vadd.f32 %v1868, %v1956
        %v1958 = vpop.f32.mrf.mxu0
        %v1959 = vadd.f32 %v1870, %v1958
        %1960 = vmatmul.bf16.gmra.mxu0 %v1217
        %v1961 = vpop.f32.mrf.mxu0
        %v1962 = vadd.f32 %v1873, %v1961
        %v1963 = vpop.f32.mrf.mxu0
        %v1964 = vadd.f32 %v1875, %v1963
        %1965 = vmatmul.bf16.gmra.mxu0 %v1219
        %v1966 = vpop.f32.mrf.mxu0
        %v1967 = vadd.f32 %v1878, %v1966
        %v1968 = vpop.f32.mrf.mxu0
        %v1969 = vadd.f32 %v1880, %v1968
        %1970 = vmatmul.bf16.gmra.mxu0 %v1221
        %v1971 = vpop.f32.mrf.mxu0
        %v1972 = vadd.f32 %v1883, %v1971
        %v1973 = vpop.f32.mrf.mxu0
        %v1974 = vadd.f32 %v1885, %v1973
        %1975 = vdwg.mxu0
        %1976 = vmatpush.bf16.msra.mxu0 %v1649
        %1977 = vmatpush.bf16.msra.mxu0 %v1643
        %1978 = vmatpush.bf16.msra.mxu0 %v1637
        %1979 = vmatpush.bf16.msra.mxu0 %v1631
        %1980 = vmatpush.bf16.msra.mxu0 %v1625
        %1981 = vmatpush.bf16.msra.mxu0 %v1619
        %1982 = vmatpush.bf16.msra.mxu0 %v1613
        %1983 = vmatpush.bf16.msra.mxu0 %v1607
        %1984 = vmatmul.bf16.gmra.mxu0 %v1190
        %v1985 = vpop.f32.mrf.mxu0
        %v1986 = vadd.f32 0.0, %v1985
        %v1987 = vpop.f32.mrf.mxu0
        %v1988 = vadd.f32 0.0, %v1987
        %1989 = vmatmul.bf16.gmra.mxu0 %v1192
        %v1990 = vpop.f32.mrf.mxu0
        %v1991 = vadd.f32 0.0, %v1990
        %v1992 = vpop.f32.mrf.mxu0
        %v1993 = vadd.f32 0.0, %v1992
        %1994 = vmatmul.bf16.gmra.mxu0 %v1194
        %v1995 = vpop.f32.mrf.mxu0
        %v1996 = vadd.f32 0.0, %v1995
        %v1997 = vpop.f32.mrf.mxu0
        %v1998 = vadd.f32 0.0, %v1997
        %1999 = vmatmul.bf16.gmra.mxu0 %v1196
        %v2000 = vpop.f32.mrf.mxu0
        %v2001 = vadd.f32 0.0, %v2000
        %v2002 = vpop.f32.mrf.mxu0
        %v2003 = vadd.f32 0.0, %v2002
        %2004 = vmatmul.bf16.gmra.mxu0 %v1198
        %v2005 = vpop.f32.mrf.mxu0
        %v2006 = vadd.f32 0.0, %v2005
        %v2007 = vpop.f32.mrf.mxu0
        %v2008 = vadd.f32 0.0, %v2007
        %2009 = vmatmul.bf16.gmra.mxu0 %v1200
        %v2010 = vpop.f32.mrf.mxu0
        %v2011 = vadd.f32 0.0, %v2010
        %v2012 = vpop.f32.mrf.mxu0
        %v2013 = vadd.f32 0.0, %v2012
        %2014 = vmatmul.bf16.gmra.mxu0 %v1202
        %v2015 = vpop.f32.mrf.mxu0
        %v2016 = vadd.f32 0.0, %v2015
        %v2017 = vpop.f32.mrf.mxu0
        %v2018 = vadd.f32 0.0, %v2017
        %2019 = vmatmul.bf16.gmra.mxu0 %v1204
        %v2020 = vpop.f32.mrf.mxu0
        %v2021 = vadd.f32 0.0, %v2020
        %v2022 = vpop.f32.mrf.mxu0
        %v2023 = vadd.f32 0.0, %v2022
        %2024 = vmatmul.bf16.gmra.mxu0 %v1206
        %v2025 = vpop.f32.mrf.mxu0
        %v2026 = vadd.f32 0.0, %v2025
        %v2027 = vpop.f32.mrf.mxu0
        %v2028 = vadd.f32 0.0, %v2027
        %2029 = vmatmul.bf16.gmra.mxu0 %v1208
        %v2030 = vpop.f32.mrf.mxu0
        %v2031 = vadd.f32 0.0, %v2030
        %v2032 = vpop.f32.mrf.mxu0
        %v2033 = vadd.f32 0.0, %v2032
        %2034 = vmatmul.bf16.gmra.mxu0 %v1210
        %v2035 = vpop.f32.mrf.mxu0
        %v2036 = vadd.f32 0.0, %v2035
        %v2037 = vpop.f32.mrf.mxu0
        %v2038 = vadd.f32 0.0, %v2037
        %2039 = vmatmul.bf16.gmra.mxu0 %v1212
        %v2040 = vpop.f32.mrf.mxu0
        %v2041 = vadd.f32 0.0, %v2040
        %v2042 = vpop.f32.mrf.mxu0
        %v2043 = vadd.f32 0.0, %v2042
        %2044 = vmatmul.bf16.gmra.mxu0 %v1214
        %v2045 = vpop.f32.mrf.mxu0
        %v2046 = vadd.f32 0.0, %v2045
        %v2047 = vpop.f32.mrf.mxu0
        %v2048 = vadd.f32 0.0, %v2047
        %2049 = vmatmul.bf16.gmra.mxu0 %v1216
        %v2050 = vpop.f32.mrf.mxu0
        %v2051 = vadd.f32 0.0, %v2050
        %v2052 = vpop.f32.mrf.mxu0
        %v2053 = vadd.f32 0.0, %v2052
        %2054 = vmatmul.bf16.gmra.mxu0 %v1218
        %v2055 = vpop.f32.mrf.mxu0
        %v2056 = vadd.f32 0.0, %v2055
        %v2057 = vpop.f32.mrf.mxu0
        %v2058 = vadd.f32 0.0, %v2057
        %2059 = vmatmul.bf16.gmra.mxu0 %v1220
        %v2060 = vpop.f32.mrf.mxu0
        %v2061 = vadd.f32 0.0, %v2060
        %v2062 = vpop.f32.mrf.mxu0
        %v2063 = vadd.f32 0.0, %v2062
        %2064 = vdwg.mxu0
        %2065 = vmatpush.bf16.msra.mxu0 %v1697
        %2066 = vmatpush.bf16.msra.mxu0 %v1691
        %2067 = vmatpush.bf16.msra.mxu0 %v1685
        %2068 = vmatpush.bf16.msra.mxu0 %v1679
        %2069 = vmatpush.bf16.msra.mxu0 %v1673
        %2070 = vmatpush.bf16.msra.mxu0 %v1667
        %2071 = vmatpush.bf16.msra.mxu0 %v1661
        %2072 = vmatpush.bf16.msra.mxu0 %v1655
        %2073 = vmatmul.bf16.gmra.mxu0 %v1191
        %v2074 = vpop.f32.mrf.mxu0
        %v2075 = vadd.f32 %v1986, %v2074
        %v2076 = vpop.f32.mrf.mxu0
        %v2077 = vadd.f32 %v1988, %v2076
        %2078 = vmatmul.bf16.gmra.mxu0 %v1193
        %v2079 = vpop.f32.mrf.mxu0
        %v2080 = vadd.f32 %v1991, %v2079
        %v2081 = vpop.f32.mrf.mxu0
        %v2082 = vadd.f32 %v1993, %v2081
        %2083 = vmatmul.bf16.gmra.mxu0 %v1195
        %v2084 = vpop.f32.mrf.mxu0
        %v2085 = vadd.f32 %v1996, %v2084
        %v2086 = vpop.f32.mrf.mxu0
        %v2087 = vadd.f32 %v1998, %v2086
        %2088 = vmatmul.bf16.gmra.mxu0 %v1197
        %v2089 = vpop.f32.mrf.mxu0
        %v2090 = vadd.f32 %v2001, %v2089
        %v2091 = vpop.f32.mrf.mxu0
        %v2092 = vadd.f32 %v2003, %v2091
        %2093 = vmatmul.bf16.gmra.mxu0 %v1199
        %v2094 = vpop.f32.mrf.mxu0
        %v2095 = vadd.f32 %v2006, %v2094
        %v2096 = vpop.f32.mrf.mxu0
        %v2097 = vadd.f32 %v2008, %v2096
        %2098 = vmatmul.bf16.gmra.mxu0 %v1201
        %v2099 = vpop.f32.mrf.mxu0
        %v2100 = vadd.f32 %v2011, %v2099
        %v2101 = vpop.f32.mrf.mxu0
        %v2102 = vadd.f32 %v2013, %v2101
        %2103 = vmatmul.bf16.gmra.mxu0 %v1203
        %v2104 = vpop.f32.mrf.mxu0
        %v2105 = vadd.f32 %v2016, %v2104
        %v2106 = vpop.f32.mrf.mxu0
        %v2107 = vadd.f32 %v2018, %v2106
        %2108 = vmatmul.bf16.gmra.mxu0 %v1205
        %v2109 = vpop.f32.mrf.mxu0
        %v2110 = vadd.f32 %v2021, %v2109
        %v2111 = vpop.f32.mrf.mxu0
        %v2112 = vadd.f32 %v2023, %v2111
        %2113 = vmatmul.bf16.gmra.mxu0 %v1207
        %v2114 = vpop.f32.mrf.mxu0
        %v2115 = vadd.f32 %v2026, %v2114
        %v2116 = vpop.f32.mrf.mxu0
        %v2117 = vadd.f32 %v2028, %v2116
        %2118 = vmatmul.bf16.gmra.mxu0 %v1209
        %v2119 = vpop.f32.mrf.mxu0
        %v2120 = vadd.f32 %v2031, %v2119
        %v2121 = vpop.f32.mrf.mxu0
        %v2122 = vadd.f32 %v2033, %v2121
        %2123 = vmatmul.bf16.gmra.mxu0 %v1211
        %v2124 = vpop.f32.mrf.mxu0
        %v2125 = vadd.f32 %v2036, %v2124
        %v2126 = vpop.f32.mrf.mxu0
        %v2127 = vadd.f32 %v2038, %v2126
        %2128 = vmatmul.bf16.gmra.mxu0 %v1213
        %v2129 = vpop.f32.mrf.mxu0
        %v2130 = vadd.f32 %v2041, %v2129
        %v2131 = vpop.f32.mrf.mxu0
        %v2132 = vadd.f32 %v2043, %v2131
        %2133 = vmatmul.bf16.gmra.mxu0 %v1215
        %v2134 = vpop.f32.mrf.mxu0
        %v2135 = vadd.f32 %v2046, %v2134
        %v2136 = vpop.f32.mrf.mxu0
        %v2137 = vadd.f32 %v2048, %v2136
        %2138 = vmatmul.bf16.gmra.mxu0 %v1217
        %v2139 = vpop.f32.mrf.mxu0
        %v2140 = vadd.f32 %v2051, %v2139
        %v2141 = vpop.f32.mrf.mxu0
        %v2142 = vadd.f32 %v2053, %v2141
        %2143 = vmatmul.bf16.gmra.mxu0 %v1219
        %v2144 = vpop.f32.mrf.mxu0
        %v2145 = vadd.f32 %v2056, %v2144
        %v2146 = vpop.f32.mrf.mxu0
        %v2147 = vadd.f32 %v2058, %v2146
        %2148 = vmatmul.bf16.gmra.mxu0 %v1221
        %v2149 = vpop.f32.mrf.mxu0
        %v2150 = vadd.f32 %v2061, %v2149
        %v2151 = vpop.f32.mrf.mxu0
        %v2152 = vadd.f32 %v2063, %v2151
        %2153 = vdwg.mxu0
        %2154 = vmatpush.bf16.msra.mxu0 %v1650
        %2155 = vmatpush.bf16.msra.mxu0 %v1644
        %2156 = vmatpush.bf16.msra.mxu0 %v1638
        %2157 = vmatpush.bf16.msra.mxu0 %v1632
        %2158 = vmatpush.bf16.msra.mxu0 %v1626
        %2159 = vmatpush.bf16.msra.mxu0 %v1620
        %2160 = vmatpush.bf16.msra.mxu0 %v1614
        %2161 = vmatpush.bf16.msra.mxu0 %v1608
        %2162 = vmatmul.bf16.gmra.mxu0 %v1190
        %v2163 = vpop.f32.mrf.mxu0
        %v2164 = vadd.f32 0.0, %v2163
        %v2165 = vpop.f32.mrf.mxu0
        %v2166 = vadd.f32 0.0, %v2165
        %2167 = vmatmul.bf16.gmra.mxu0 %v1192
        %v2168 = vpop.f32.mrf.mxu0
        %v2169 = vadd.f32 0.0, %v2168
        %v2170 = vpop.f32.mrf.mxu0
        %v2171 = vadd.f32 0.0, %v2170
        %2172 = vmatmul.bf16.gmra.mxu0 %v1194
        %v2173 = vpop.f32.mrf.mxu0
        %v2174 = vadd.f32 0.0, %v2173
        %v2175 = vpop.f32.mrf.mxu0
        %v2176 = vadd.f32 0.0, %v2175
        %2177 = vmatmul.bf16.gmra.mxu0 %v1196
        %v2178 = vpop.f32.mrf.mxu0
        %v2179 = vadd.f32 0.0, %v2178
        %v2180 = vpop.f32.mrf.mxu0
        %v2181 = vadd.f32 0.0, %v2180
        %2182 = vmatmul.bf16.gmra.mxu0 %v1198
        %v2183 = vpop.f32.mrf.mxu0
        %v2184 = vadd.f32 0.0, %v2183
        %v2185 = vpop.f32.mrf.mxu0
        %v2186 = vadd.f32 0.0, %v2185
        %2187 = vmatmul.bf16.gmra.mxu0 %v1200
        %v2188 = vpop.f32.mrf.mxu0
        %v2189 = vadd.f32 0.0, %v2188
        %v2190 = vpop.f32.mrf.mxu0
        %v2191 = vadd.f32 0.0, %v2190
        %2192 = vmatmul.bf16.gmra.mxu0 %v1202
        %v2193 = vpop.f32.mrf.mxu0
        %v2194 = vadd.f32 0.0, %v2193
        %v2195 = vpop.f32.mrf.mxu0
        %v2196 = vadd.f32 0.0, %v2195
        %2197 = vmatmul.bf16.gmra.mxu0 %v1204
        %v2198 = vpop.f32.mrf.mxu0
        %v2199 = vadd.f32 0.0, %v2198
        %v2200 = vpop.f32.mrf.mxu0
        %v2201 = vadd.f32 0.0, %v2200
        %2202 = vmatmul.bf16.gmra.mxu0 %v1206
        %v2203 = vpop.f32.mrf.mxu0
        %v2204 = vadd.f32 0.0, %v2203
        %v2205 = vpop.f32.mrf.mxu0
        %v2206 = vadd.f32 0.0, %v2205
        %2207 = vmatmul.bf16.gmra.mxu0 %v1208
        %v2208 = vpop.f32.mrf.mxu0
        %v2209 = vadd.f32 0.0, %v2208
        %v2210 = vpop.f32.mrf.mxu0
        %v2211 = vadd.f32 0.0, %v2210
        %2212 = vmatmul.bf16.gmra.mxu0 %v1210
        %v2213 = vpop.f32.mrf.mxu0
        %v2214 = vadd.f32 0.0, %v2213
        %v2215 = vpop.f32.mrf.mxu0
        %v2216 = vadd.f32 0.0, %v2215
        %2217 = vmatmul.bf16.gmra.mxu0 %v1212
        %v2218 = vpop.f32.mrf.mxu0
        %v2219 = vadd.f32 0.0, %v2218
        %v2220 = vpop.f32.mrf.mxu0
        %v2221 = vadd.f32 0.0, %v2220
        %2222 = vmatmul.bf16.gmra.mxu0 %v1214
        %v2223 = vpop.f32.mrf.mxu0
        %v2224 = vadd.f32 0.0, %v2223
        %v2225 = vpop.f32.mrf.mxu0
        %v2226 = vadd.f32 0.0, %v2225
        %2227 = vmatmul.bf16.gmra.mxu0 %v1216
        %v2228 = vpop.f32.mrf.mxu0
        %v2229 = vadd.f32 0.0, %v2228
        %v2230 = vpop.f32.mrf.mxu0
        %v2231 = vadd.f32 0.0, %v2230
        %2232 = vmatmul.bf16.gmra.mxu0 %v1218
        %v2233 = vpop.f32.mrf.mxu0
        %v2234 = vadd.f32 0.0, %v2233
        %v2235 = vpop.f32.mrf.mxu0
        %v2236 = vadd.f32 0.0, %v2235
        %2237 = vmatmul.bf16.gmra.mxu0 %v1220
        %v2238 = vpop.f32.mrf.mxu0
        %v2239 = vadd.f32 0.0, %v2238
        %v2240 = vpop.f32.mrf.mxu0
        %v2241 = vadd.f32 0.0, %v2240
        %2242 = vdwg.mxu0
        %2243 = vmatpush.bf16.msra.mxu0 %v1698
        %2244 = vmatpush.bf16.msra.mxu0 %v1692
        %2245 = vmatpush.bf16.msra.mxu0 %v1686
        %2246 = vmatpush.bf16.msra.mxu0 %v1680
        %2247 = vmatpush.bf16.msra.mxu0 %v1674
        %2248 = vmatpush.bf16.msra.mxu0 %v1668
        %2249 = vmatpush.bf16.msra.mxu0 %v1662
        %2250 = vmatpush.bf16.msra.mxu0 %v1656
        %2251 = vmatmul.bf16.gmra.mxu0 %v1191
        %v2252 = vpop.f32.mrf.mxu0
        %v2253 = vadd.f32 %v2164, %v2252
        %v2254 = vpop.f32.mrf.mxu0
        %v2255 = vadd.f32 %v2166, %v2254
        %2256 = vmatmul.bf16.gmra.mxu0 %v1193
        %v2257 = vpop.f32.mrf.mxu0
        %v2258 = vadd.f32 %v2169, %v2257
        %v2259 = vpop.f32.mrf.mxu0
        %v2260 = vadd.f32 %v2171, %v2259
        %2261 = vmatmul.bf16.gmra.mxu0 %v1195
        %v2262 = vpop.f32.mrf.mxu0
        %v2263 = vadd.f32 %v2174, %v2262
        %v2264 = vpop.f32.mrf.mxu0
        %v2265 = vadd.f32 %v2176, %v2264
        %2266 = vmatmul.bf16.gmra.mxu0 %v1197
        %v2267 = vpop.f32.mrf.mxu0
        %v2268 = vadd.f32 %v2179, %v2267
        %v2269 = vpop.f32.mrf.mxu0
        %v2270 = vadd.f32 %v2181, %v2269
        %2271 = vmatmul.bf16.gmra.mxu0 %v1199
        %v2272 = vpop.f32.mrf.mxu0
        %v2273 = vadd.f32 %v2184, %v2272
        %v2274 = vpop.f32.mrf.mxu0
        %v2275 = vadd.f32 %v2186, %v2274
        %2276 = vmatmul.bf16.gmra.mxu0 %v1201
        %v2277 = vpop.f32.mrf.mxu0
        %v2278 = vadd.f32 %v2189, %v2277
        %v2279 = vpop.f32.mrf.mxu0
        %v2280 = vadd.f32 %v2191, %v2279
        %2281 = vmatmul.bf16.gmra.mxu0 %v1203
        %v2282 = vpop.f32.mrf.mxu0
        %v2283 = vadd.f32 %v2194, %v2282
        %v2284 = vpop.f32.mrf.mxu0
        %v2285 = vadd.f32 %v2196, %v2284
        %2286 = vmatmul.bf16.gmra.mxu0 %v1205
        %v2287 = vpop.f32.mrf.mxu0
        %v2288 = vadd.f32 %v2199, %v2287
        %v2289 = vpop.f32.mrf.mxu0
        %v2290 = vadd.f32 %v2201, %v2289
        %2291 = vmatmul.bf16.gmra.mxu0 %v1207
        %v2292 = vpop.f32.mrf.mxu0
        %v2293 = vadd.f32 %v2204, %v2292
        %v2294 = vpop.f32.mrf.mxu0
        %v2295 = vadd.f32 %v2206, %v2294
        %2296 = vmatmul.bf16.gmra.mxu0 %v1209
        %v2297 = vpop.f32.mrf.mxu0
        %v2298 = vadd.f32 %v2209, %v2297
        %v2299 = vpop.f32.mrf.mxu0
        %v2300 = vadd.f32 %v2211, %v2299
        %2301 = vmatmul.bf16.gmra.mxu0 %v1211
        %v2302 = vpop.f32.mrf.mxu0
        %v2303 = vadd.f32 %v2214, %v2302
        %v2304 = vpop.f32.mrf.mxu0
        %v2305 = vadd.f32 %v2216, %v2304
        %2306 = vmatmul.bf16.gmra.mxu0 %v1213
        %v2307 = vpop.f32.mrf.mxu0
        %v2308 = vadd.f32 %v2219, %v2307
        %v2309 = vpop.f32.mrf.mxu0
        %v2310 = vadd.f32 %v2221, %v2309
        %2311 = vmatmul.bf16.gmra.mxu0 %v1215
        %v2312 = vpop.f32.mrf.mxu0
        %v2313 = vadd.f32 %v2224, %v2312
        %v2314 = vpop.f32.mrf.mxu0
        %v2315 = vadd.f32 %v2226, %v2314
        %2316 = vmatmul.bf16.gmra.mxu0 %v1217
        %v2317 = vpop.f32.mrf.mxu0
        %v2318 = vadd.f32 %v2229, %v2317
        %v2319 = vpop.f32.mrf.mxu0
        %v2320 = vadd.f32 %v2231, %v2319
        %2321 = vmatmul.bf16.gmra.mxu0 %v1219
        %v2322 = vpop.f32.mrf.mxu0
        %v2323 = vadd.f32 %v2234, %v2322
        %v2324 = vpop.f32.mrf.mxu0
        %v2325 = vadd.f32 %v2236, %v2324
        %2326 = vmatmul.bf16.gmra.mxu0 %v1221
        %v2327 = vpop.f32.mrf.mxu0
        %v2328 = vadd.f32 %v2239, %v2327
        %v2329 = vpop.f32.mrf.mxu0
        %v2330 = vadd.f32 %v2241, %v2329
        %2331 = vdwg.mxu0
        %2332 = vmatpush.bf16.msra.mxu0 %v1651
        %2333 = vmatpush.bf16.msra.mxu0 %v1645
        %2334 = vmatpush.bf16.msra.mxu0 %v1639
        %2335 = vmatpush.bf16.msra.mxu0 %v1633
        %2336 = vmatpush.bf16.msra.mxu0 %v1627
        %2337 = vmatpush.bf16.msra.mxu0 %v1621
        %2338 = vmatpush.bf16.msra.mxu0 %v1615
        %2339 = vmatpush.bf16.msra.mxu0 %v1609
        %2340 = vmatmul.bf16.gmra.mxu0 %v1190
        %v2341 = vpop.f32.mrf.mxu0
        %v2342 = vadd.f32 0.0, %v2341
        %v2343 = vpop.f32.mrf.mxu0
        %v2344 = vadd.f32 0.0, %v2343
        %2345 = vmatmul.bf16.gmra.mxu0 %v1192
        %v2346 = vpop.f32.mrf.mxu0
        %v2347 = vadd.f32 0.0, %v2346
        %v2348 = vpop.f32.mrf.mxu0
        %v2349 = vadd.f32 0.0, %v2348
        %2350 = vmatmul.bf16.gmra.mxu0 %v1194
        %v2351 = vpop.f32.mrf.mxu0
        %v2352 = vadd.f32 0.0, %v2351
        %v2353 = vpop.f32.mrf.mxu0
        %v2354 = vadd.f32 0.0, %v2353
        %2355 = vmatmul.bf16.gmra.mxu0 %v1196
        %v2356 = vpop.f32.mrf.mxu0
        %v2357 = vadd.f32 0.0, %v2356
        %v2358 = vpop.f32.mrf.mxu0
        %v2359 = vadd.f32 0.0, %v2358
        %2360 = vmatmul.bf16.gmra.mxu0 %v1198
        %v2361 = vpop.f32.mrf.mxu0
        %v2362 = vadd.f32 0.0, %v2361
        %v2363 = vpop.f32.mrf.mxu0
        %v2364 = vadd.f32 0.0, %v2363
        %2365 = vmatmul.bf16.gmra.mxu0 %v1200
        %v2366 = vpop.f32.mrf.mxu0
        %v2367 = vadd.f32 0.0, %v2366
        %v2368 = vpop.f32.mrf.mxu0
        %v2369 = vadd.f32 0.0, %v2368
        %2370 = vmatmul.bf16.gmra.mxu0 %v1202
        %v2371 = vpop.f32.mrf.mxu0
        %v2372 = vadd.f32 0.0, %v2371
        %v2373 = vpop.f32.mrf.mxu0
        %v2374 = vadd.f32 0.0, %v2373
        %2375 = vmatmul.bf16.gmra.mxu0 %v1204
        %v2376 = vpop.f32.mrf.mxu0
        %v2377 = vadd.f32 0.0, %v2376
        %v2378 = vpop.f32.mrf.mxu0
        %v2379 = vadd.f32 0.0, %v2378
        %2380 = vmatmul.bf16.gmra.mxu0 %v1206
        %v2381 = vpop.f32.mrf.mxu0
        %v2382 = vadd.f32 0.0, %v2381
        %v2383 = vpop.f32.mrf.mxu0
        %v2384 = vadd.f32 0.0, %v2383
        %2385 = vmatmul.bf16.gmra.mxu0 %v1208
        %v2386 = vpop.f32.mrf.mxu0
        %v2387 = vadd.f32 0.0, %v2386
        %v2388 = vpop.f32.mrf.mxu0
        %v2389 = vadd.f32 0.0, %v2388
        %2390 = vmatmul.bf16.gmra.mxu0 %v1210
        %v2391 = vpop.f32.mrf.mxu0
        %v2392 = vadd.f32 0.0, %v2391
        %v2393 = vpop.f32.mrf.mxu0
        %v2394 = vadd.f32 0.0, %v2393
        %2395 = vmatmul.bf16.gmra.mxu0 %v1212
        %v2396 = vpop.f32.mrf.mxu0
        %v2397 = vadd.f32 0.0, %v2396
        %v2398 = vpop.f32.mrf.mxu0
        %v2399 = vadd.f32 0.0, %v2398
        %2400 = vmatmul.bf16.gmra.mxu0 %v1214
        %v2401 = vpop.f32.mrf.mxu0
        %v2402 = vadd.f32 0.0, %v2401
        %v2403 = vpop.f32.mrf.mxu0
        %v2404 = vadd.f32 0.0, %v2403
        %2405 = vmatmul.bf16.gmra.mxu0 %v1216
        %v2406 = vpop.f32.mrf.mxu0
        %v2407 = vadd.f32 0.0, %v2406
        %v2408 = vpop.f32.mrf.mxu0
        %v2409 = vadd.f32 0.0, %v2408
        %2410 = vmatmul.bf16.gmra.mxu0 %v1218
        %v2411 = vpop.f32.mrf.mxu0
        %v2412 = vadd.f32 0.0, %v2411
        %v2413 = vpop.f32.mrf.mxu0
        %v2414 = vadd.f32 0.0, %v2413
        %2415 = vmatmul.bf16.gmra.mxu0 %v1220
        %v2416 = vpop.f32.mrf.mxu0
        %v2417 = vadd.f32 0.0, %v2416
        %v2418 = vpop.f32.mrf.mxu0
        %v2419 = vadd.f32 0.0, %v2418
        %2420 = vdwg.mxu0
        %2421 = vmatpush.bf16.msra.mxu0 %v1699
        %2422 = vmatpush.bf16.msra.mxu0 %v1693
        %2423 = vmatpush.bf16.msra.mxu0 %v1687
        %2424 = vmatpush.bf16.msra.mxu0 %v1681
        %2425 = vmatpush.bf16.msra.mxu0 %v1675
        %2426 = vmatpush.bf16.msra.mxu0 %v1669
        %2427 = vmatpush.bf16.msra.mxu0 %v1663
        %2428 = vmatpush.bf16.msra.mxu0 %v1657
        %2429 = vmatmul.bf16.gmra.mxu0 %v1191
        %v2430 = vpop.f32.mrf.mxu0
        %v2431 = vadd.f32 %v2342, %v2430
        %v2432 = vpop.f32.mrf.mxu0
        %v2433 = vadd.f32 %v2344, %v2432
        %2434 = vmatmul.bf16.gmra.mxu0 %v1193
        %v2435 = vpop.f32.mrf.mxu0
        %v2436 = vadd.f32 %v2347, %v2435
        %v2437 = vpop.f32.mrf.mxu0
        %v2438 = vadd.f32 %v2349, %v2437
        %2439 = vmatmul.bf16.gmra.mxu0 %v1195
        %v2440 = vpop.f32.mrf.mxu0
        %v2441 = vadd.f32 %v2352, %v2440
        %v2442 = vpop.f32.mrf.mxu0
        %v2443 = vadd.f32 %v2354, %v2442
        %2444 = vmatmul.bf16.gmra.mxu0 %v1197
        %v2445 = vpop.f32.mrf.mxu0
        %v2446 = vadd.f32 %v2357, %v2445
        %v2447 = vpop.f32.mrf.mxu0
        %v2448 = vadd.f32 %v2359, %v2447
        %2449 = vmatmul.bf16.gmra.mxu0 %v1199
        %v2450 = vpop.f32.mrf.mxu0
        %v2451 = vadd.f32 %v2362, %v2450
        %v2452 = vpop.f32.mrf.mxu0
        %v2453 = vadd.f32 %v2364, %v2452
        %2454 = vmatmul.bf16.gmra.mxu0 %v1201
        %v2455 = vpop.f32.mrf.mxu0
        %v2456 = vadd.f32 %v2367, %v2455
        %v2457 = vpop.f32.mrf.mxu0
        %v2458 = vadd.f32 %v2369, %v2457
        %2459 = vmatmul.bf16.gmra.mxu0 %v1203
        %v2460 = vpop.f32.mrf.mxu0
        %v2461 = vadd.f32 %v2372, %v2460
        %v2462 = vpop.f32.mrf.mxu0
        %v2463 = vadd.f32 %v2374, %v2462
        %2464 = vmatmul.bf16.gmra.mxu0 %v1205
        %v2465 = vpop.f32.mrf.mxu0
        %v2466 = vadd.f32 %v2377, %v2465
        %v2467 = vpop.f32.mrf.mxu0
        %v2468 = vadd.f32 %v2379, %v2467
        %2469 = vmatmul.bf16.gmra.mxu0 %v1207
        %v2470 = vpop.f32.mrf.mxu0
        %v2471 = vadd.f32 %v2382, %v2470
        %v2472 = vpop.f32.mrf.mxu0
        %v2473 = vadd.f32 %v2384, %v2472
        %2474 = vmatmul.bf16.gmra.mxu0 %v1209
        %v2475 = vpop.f32.mrf.mxu0
        %v2476 = vadd.f32 %v2387, %v2475
        %v2477 = vpop.f32.mrf.mxu0
        %v2478 = vadd.f32 %v2389, %v2477
        %2479 = vmatmul.bf16.gmra.mxu0 %v1211
        %v2480 = vpop.f32.mrf.mxu0
        %v2481 = vadd.f32 %v2392, %v2480
        %v2482 = vpop.f32.mrf.mxu0
        %v2483 = vadd.f32 %v2394, %v2482
        %2484 = vmatmul.bf16.gmra.mxu0 %v1213
        %v2485 = vpop.f32.mrf.mxu0
        %v2486 = vadd.f32 %v2397, %v2485
        %v2487 = vpop.f32.mrf.mxu0
        %v2488 = vadd.f32 %v2399, %v2487
        %2489 = vmatmul.bf16.gmra.mxu0 %v1215
        %v2490 = vpop.f32.mrf.mxu0
        %v2491 = vadd.f32 %v2402, %v2490
        %v2492 = vpop.f32.mrf.mxu0
        %v2493 = vadd.f32 %v2404, %v2492
        %2494 = vmatmul.bf16.gmra.mxu0 %v1217
        %v2495 = vpop.f32.mrf.mxu0
        %v2496 = vadd.f32 %v2407, %v2495
        %v2497 = vpop.f32.mrf.mxu0
        %v2498 = vadd.f32 %v2409, %v2497
        %2499 = vmatmul.bf16.gmra.mxu0 %v1219
        %v2500 = vpop.f32.mrf.mxu0
        %v2501 = vadd.f32 %v2412, %v2500
        %v2502 = vpop.f32.mrf.mxu0
        %v2503 = vadd.f32 %v2414, %v2502
        %2504 = vmatmul.bf16.gmra.mxu0 %v1221
        %v2505 = vpop.f32.mrf.mxu0
        %v2506 = vadd.f32 %v2417, %v2505
        %v2507 = vpop.f32.mrf.mxu0
        %v2508 = vadd.f32 %v2419, %v2507
        %2509 = vdwg.mxu0
        %2510 = vmatpush.bf16.msra.mxu0 %v1652
        %2511 = vmatpush.bf16.msra.mxu0 %v1646
        %2512 = vmatpush.bf16.msra.mxu0 %v1640
        %2513 = vmatpush.bf16.msra.mxu0 %v1634
        %2514 = vmatpush.bf16.msra.mxu0 %v1628
        %2515 = vmatpush.bf16.msra.mxu0 %v1622
        %2516 = vmatpush.bf16.msra.mxu0 %v1616
        %2517 = vmatpush.bf16.msra.mxu0 %v1610
        %2518 = vmatmul.bf16.gmra.mxu0 %v1190
        %v2519 = vpop.f32.mrf.mxu0
        %v2520 = vadd.f32 0.0, %v2519
        %v2521 = vpop.f32.mrf.mxu0
        %v2522 = vadd.f32 0.0, %v2521
        %2523 = vmatmul.bf16.gmra.mxu0 %v1192
        %v2524 = vpop.f32.mrf.mxu0
        %v2525 = vadd.f32 0.0, %v2524
        %v2526 = vpop.f32.mrf.mxu0
        %v2527 = vadd.f32 0.0, %v2526
        %2528 = vmatmul.bf16.gmra.mxu0 %v1194
        %v2529 = vpop.f32.mrf.mxu0
        %v2530 = vadd.f32 0.0, %v2529
        %v2531 = vpop.f32.mrf.mxu0
        %v2532 = vadd.f32 0.0, %v2531
        %2533 = vmatmul.bf16.gmra.mxu0 %v1196
        %v2534 = vpop.f32.mrf.mxu0
        %v2535 = vadd.f32 0.0, %v2534
        %v2536 = vpop.f32.mrf.mxu0
        %v2537 = vadd.f32 0.0, %v2536
        %2538 = vmatmul.bf16.gmra.mxu0 %v1198
        %v2539 = vpop.f32.mrf.mxu0
        %v2540 = vadd.f32 0.0, %v2539
        %v2541 = vpop.f32.mrf.mxu0
        %v2542 = vadd.f32 0.0, %v2541
        %2543 = vmatmul.bf16.gmra.mxu0 %v1200
        %v2544 = vpop.f32.mrf.mxu0
        %v2545 = vadd.f32 0.0, %v2544
        %v2546 = vpop.f32.mrf.mxu0
        %v2547 = vadd.f32 0.0, %v2546
        %2548 = vmatmul.bf16.gmra.mxu0 %v1202
        %v2549 = vpop.f32.mrf.mxu0
        %v2550 = vadd.f32 0.0, %v2549
        %v2551 = vpop.f32.mrf.mxu0
        %v2552 = vadd.f32 0.0, %v2551
        %2553 = vmatmul.bf16.gmra.mxu0 %v1204
        %v2554 = vpop.f32.mrf.mxu0
        %v2555 = vadd.f32 0.0, %v2554
        %v2556 = vpop.f32.mrf.mxu0
        %v2557 = vadd.f32 0.0, %v2556
        %2558 = vmatmul.bf16.gmra.mxu0 %v1206
        %v2559 = vpop.f32.mrf.mxu0
        %v2560 = vadd.f32 0.0, %v2559
        %v2561 = vpop.f32.mrf.mxu0
        %v2562 = vadd.f32 0.0, %v2561
        %2563 = vmatmul.bf16.gmra.mxu0 %v1208
        %v2564 = vpop.f32.mrf.mxu0
        %v2565 = vadd.f32 0.0, %v2564
        %v2566 = vpop.f32.mrf.mxu0
        %v2567 = vadd.f32 0.0, %v2566
        %2568 = vmatmul.bf16.gmra.mxu0 %v1210
        %v2569 = vpop.f32.mrf.mxu0
        %v2570 = vadd.f32 0.0, %v2569
        %v2571 = vpop.f32.mrf.mxu0
        %v2572 = vadd.f32 0.0, %v2571
        %2573 = vmatmul.bf16.gmra.mxu0 %v1212
        %v2574 = vpop.f32.mrf.mxu0
        %v2575 = vadd.f32 0.0, %v2574
        %v2576 = vpop.f32.mrf.mxu0
        %v2577 = vadd.f32 0.0, %v2576
        %2578 = vmatmul.bf16.gmra.mxu0 %v1214
        %v2579 = vpop.f32.mrf.mxu0
        %v2580 = vadd.f32 0.0, %v2579
        %v2581 = vpop.f32.mrf.mxu0
        %v2582 = vadd.f32 0.0, %v2581
        %2583 = vmatmul.bf16.gmra.mxu0 %v1216
        %v2584 = vpop.f32.mrf.mxu0
        %v2585 = vadd.f32 0.0, %v2584
        %v2586 = vpop.f32.mrf.mxu0
        %v2587 = vadd.f32 0.0, %v2586
        %2588 = vmatmul.bf16.gmra.mxu0 %v1218
        %v2589 = vpop.f32.mrf.mxu0
        %v2590 = vadd.f32 0.0, %v2589
        %v2591 = vpop.f32.mrf.mxu0
        %v2592 = vadd.f32 0.0, %v2591
        %2593 = vmatmul.bf16.gmra.mxu0 %v1220
        %v2594 = vpop.f32.mrf.mxu0
        %v2595 = vadd.f32 0.0, %v2594
        %v2596 = vpop.f32.mrf.mxu0
        %v2597 = vadd.f32 0.0, %v2596
        %2598 = vdwg.mxu0
        %2599 = vmatpush.bf16.msra.mxu0 %v1700
        %2600 = vmatpush.bf16.msra.mxu0 %v1694
        %2601 = vmatpush.bf16.msra.mxu0 %v1688
        %2602 = vmatpush.bf16.msra.mxu0 %v1682
        %2603 = vmatpush.bf16.msra.mxu0 %v1676
        %2604 = vmatpush.bf16.msra.mxu0 %v1670
        %2605 = vmatpush.bf16.msra.mxu0 %v1664
        %2606 = vmatpush.bf16.msra.mxu0 %v1658
        %2607 = vmatmul.bf16.gmra.mxu0 %v1191
        %v2608 = vpop.f32.mrf.mxu0
        %v2609 = vadd.f32 %v2520, %v2608
        %v2610 = vpop.f32.mrf.mxu0
        %v2611 = vadd.f32 %v2522, %v2610
        %2612 = vmatmul.bf16.gmra.mxu0 %v1193
        %v2613 = vpop.f32.mrf.mxu0
        %v2614 = vadd.f32 %v2525, %v2613
        %v2615 = vpop.f32.mrf.mxu0
        %v2616 = vadd.f32 %v2527, %v2615
        %2617 = vmatmul.bf16.gmra.mxu0 %v1195
        %v2618 = vpop.f32.mrf.mxu0
        %v2619 = vadd.f32 %v2530, %v2618
        %v2620 = vpop.f32.mrf.mxu0
        %v2621 = vadd.f32 %v2532, %v2620
        %2622 = vmatmul.bf16.gmra.mxu0 %v1197
        %v2623 = vpop.f32.mrf.mxu0
        %v2624 = vadd.f32 %v2535, %v2623
        %v2625 = vpop.f32.mrf.mxu0
        %v2626 = vadd.f32 %v2537, %v2625
        %2627 = vmatmul.bf16.gmra.mxu0 %v1199
        %v2628 = vpop.f32.mrf.mxu0
        %v2629 = vadd.f32 %v2540, %v2628
        %v2630 = vpop.f32.mrf.mxu0
        %v2631 = vadd.f32 %v2542, %v2630
        %2632 = vmatmul.bf16.gmra.mxu0 %v1201
        %v2633 = vpop.f32.mrf.mxu0
        %v2634 = vadd.f32 %v2545, %v2633
        %v2635 = vpop.f32.mrf.mxu0
        %v2636 = vadd.f32 %v2547, %v2635
        %2637 = vmatmul.bf16.gmra.mxu0 %v1203
        %v2638 = vpop.f32.mrf.mxu0
        %v2639 = vadd.f32 %v2550, %v2638
        %v2640 = vpop.f32.mrf.mxu0
        %v2641 = vadd.f32 %v2552, %v2640
        %2642 = vmatmul.bf16.gmra.mxu0 %v1205
        %v2643 = vpop.f32.mrf.mxu0
        %v2644 = vadd.f32 %v2555, %v2643
        %v2645 = vpop.f32.mrf.mxu0
        %v2646 = vadd.f32 %v2557, %v2645
        %2647 = vmatmul.bf16.gmra.mxu0 %v1207
        %v2648 = vpop.f32.mrf.mxu0
        %v2649 = vadd.f32 %v2560, %v2648
        %v2650 = vpop.f32.mrf.mxu0
        %v2651 = vadd.f32 %v2562, %v2650
        %2652 = vmatmul.bf16.gmra.mxu0 %v1209
        %v2653 = vpop.f32.mrf.mxu0
        %v2654 = vadd.f32 %v2565, %v2653
        %v2655 = vpop.f32.mrf.mxu0
        %v2656 = vadd.f32 %v2567, %v2655
        %2657 = vmatmul.bf16.gmra.mxu0 %v1211
        %v2658 = vpop.f32.mrf.mxu0
        %v2659 = vadd.f32 %v2570, %v2658
        %v2660 = vpop.f32.mrf.mxu0
        %v2661 = vadd.f32 %v2572, %v2660
        %2662 = vmatmul.bf16.gmra.mxu0 %v1213
        %v2663 = vpop.f32.mrf.mxu0
        %v2664 = vadd.f32 %v2575, %v2663
        %v2665 = vpop.f32.mrf.mxu0
        %v2666 = vadd.f32 %v2577, %v2665
        %2667 = vmatmul.bf16.gmra.mxu0 %v1215
        %v2668 = vpop.f32.mrf.mxu0
        %v2669 = vadd.f32 %v2580, %v2668
        %v2670 = vpop.f32.mrf.mxu0
        %v2671 = vadd.f32 %v2582, %v2670
        %2672 = vmatmul.bf16.gmra.mxu0 %v1217
        %v2673 = vpop.f32.mrf.mxu0
        %v2674 = vadd.f32 %v2585, %v2673
        %v2675 = vpop.f32.mrf.mxu0
        %v2676 = vadd.f32 %v2587, %v2675
        %2677 = vmatmul.bf16.gmra.mxu0 %v1219
        %v2678 = vpop.f32.mrf.mxu0
        %v2679 = vadd.f32 %v2590, %v2678
        %v2680 = vpop.f32.mrf.mxu0
        %v2681 = vadd.f32 %v2592, %v2680
        %2682 = vmatmul.bf16.gmra.mxu0 %v1221
        %v2683 = vpop.f32.mrf.mxu0
        %v2684 = vadd.f32 %v2595, %v2683
        %v2685 = vpop.f32.mrf.mxu0
        %v2686 = vadd.f32 %v2597, %v2685
        %2687 = vdwg.mxu0
        %2688 = vmatpush.bf16.msra.mxu0 %v1653
        %2689 = vmatpush.bf16.msra.mxu0 %v1647
        %2690 = vmatpush.bf16.msra.mxu0 %v1641
        %2691 = vmatpush.bf16.msra.mxu0 %v1635
        %2692 = vmatpush.bf16.msra.mxu0 %v1629
        %2693 = vmatpush.bf16.msra.mxu0 %v1623
        %2694 = vmatpush.bf16.msra.mxu0 %v1617
        %2695 = vmatpush.bf16.msra.mxu0 %v1611
        %2696 = vmatmul.bf16.gmra.mxu0 %v1190
        %v2697 = vpop.f32.mrf.mxu0
        %v2698 = vadd.f32 0.0, %v2697
        %v2699 = vpop.f32.mrf.mxu0
        %v2700 = vadd.f32 0.0, %v2699
        %2701 = vmatmul.bf16.gmra.mxu0 %v1192
        %v2702 = vpop.f32.mrf.mxu0
        %v2703 = vadd.f32 0.0, %v2702
        %v2704 = vpop.f32.mrf.mxu0
        %v2705 = vadd.f32 0.0, %v2704
        %2706 = vmatmul.bf16.gmra.mxu0 %v1194
        %v2707 = vpop.f32.mrf.mxu0
        %v2708 = vadd.f32 0.0, %v2707
        %v2709 = vpop.f32.mrf.mxu0
        %v2710 = vadd.f32 0.0, %v2709
        %2711 = vmatmul.bf16.gmra.mxu0 %v1196
        %v2712 = vpop.f32.mrf.mxu0
        %v2713 = vadd.f32 0.0, %v2712
        %v2714 = vpop.f32.mrf.mxu0
        %v2715 = vadd.f32 0.0, %v2714
        %2716 = vmatmul.bf16.gmra.mxu0 %v1198
        %v2717 = vpop.f32.mrf.mxu0
        %v2718 = vadd.f32 0.0, %v2717
        %v2719 = vpop.f32.mrf.mxu0
        %v2720 = vadd.f32 0.0, %v2719
        %2721 = vmatmul.bf16.gmra.mxu0 %v1200
        %v2722 = vpop.f32.mrf.mxu0
        %v2723 = vadd.f32 0.0, %v2722
        %v2724 = vpop.f32.mrf.mxu0
        %v2725 = vadd.f32 0.0, %v2724
        %2726 = vmatmul.bf16.gmra.mxu0 %v1202
        %v2727 = vpop.f32.mrf.mxu0
        %v2728 = vadd.f32 0.0, %v2727
        %v2729 = vpop.f32.mrf.mxu0
        %v2730 = vadd.f32 0.0, %v2729
        %2731 = vmatmul.bf16.gmra.mxu0 %v1204
        %v2732 = vpop.f32.mrf.mxu0
        %v2733 = vadd.f32 0.0, %v2732
        %v2734 = vpop.f32.mrf.mxu0
        %v2735 = vadd.f32 0.0, %v2734
        %2736 = vmatmul.bf16.gmra.mxu0 %v1206
        %v2737 = vpop.f32.mrf.mxu0
        %v2738 = vadd.f32 0.0, %v2737
        %v2739 = vpop.f32.mrf.mxu0
        %v2740 = vadd.f32 0.0, %v2739
        %2741 = vmatmul.bf16.gmra.mxu0 %v1208
        %v2742 = vpop.f32.mrf.mxu0
        %v2743 = vadd.f32 0.0, %v2742
        %v2744 = vpop.f32.mrf.mxu0
        %v2745 = vadd.f32 0.0, %v2744
        %2746 = vmatmul.bf16.gmra.mxu0 %v1210
        %v2747 = vpop.f32.mrf.mxu0
        %v2748 = vadd.f32 0.0, %v2747
        %v2749 = vpop.f32.mrf.mxu0
        %v2750 = vadd.f32 0.0, %v2749
        %2751 = vmatmul.bf16.gmra.mxu0 %v1212
        %v2752 = vpop.f32.mrf.mxu0
        %v2753 = vadd.f32 0.0, %v2752
        %v2754 = vpop.f32.mrf.mxu0
        %v2755 = vadd.f32 0.0, %v2754
        %2756 = vmatmul.bf16.gmra.mxu0 %v1214
        %v2757 = vpop.f32.mrf.mxu0
        %v2758 = vadd.f32 0.0, %v2757
        %v2759 = vpop.f32.mrf.mxu0
        %v2760 = vadd.f32 0.0, %v2759
        %2761 = vmatmul.bf16.gmra.mxu0 %v1216
        %v2762 = vpop.f32.mrf.mxu0
        %v2763 = vadd.f32 0.0, %v2762
        %v2764 = vpop.f32.mrf.mxu0
        %v2765 = vadd.f32 0.0, %v2764
        %2766 = vmatmul.bf16.gmra.mxu0 %v1218
        %v2767 = vpop.f32.mrf.mxu0
        %v2768 = vadd.f32 0.0, %v2767
        %v2769 = vpop.f32.mrf.mxu0
        %v2770 = vadd.f32 0.0, %v2769
        %2771 = vmatmul.bf16.gmra.mxu0 %v1220
        %v2772 = vpop.f32.mrf.mxu0
        %v2773 = vadd.f32 0.0, %v2772
        %v2774 = vpop.f32.mrf.mxu0
        %v2775 = vadd.f32 0.0, %v2774
        %2776 = vdwg.mxu0
        %2777 = vmatpush.bf16.msra.mxu0 %v1701
        %2778 = vmatpush.bf16.msra.mxu0 %v1695
        %2779 = vmatpush.bf16.msra.mxu0 %v1689
        %2780 = vmatpush.bf16.msra.mxu0 %v1683
        %2781 = vmatpush.bf16.msra.mxu0 %v1677
        %2782 = vmatpush.bf16.msra.mxu0 %v1671
        %2783 = vmatpush.bf16.msra.mxu0 %v1665
        %2784 = vmatpush.bf16.msra.mxu0 %v1659
        %2785 = vmatmul.bf16.gmra.mxu0 %v1191
        %v2786 = vpop.f32.mrf.mxu0
        %v2787 = vadd.f32 %v2698, %v2786
        %v2788 = vpop.f32.mrf.mxu0
        %v2789 = vadd.f32 %v2700, %v2788
        %2790 = vmatmul.bf16.gmra.mxu0 %v1193
        %v2791 = vpop.f32.mrf.mxu0
        %v2792 = vadd.f32 %v2703, %v2791
        %v2793 = vpop.f32.mrf.mxu0
        %v2794 = vadd.f32 %v2705, %v2793
        %2795 = vmatmul.bf16.gmra.mxu0 %v1195
        %v2796 = vpop.f32.mrf.mxu0
        %v2797 = vadd.f32 %v2708, %v2796
        %v2798 = vpop.f32.mrf.mxu0
        %v2799 = vadd.f32 %v2710, %v2798
        %2800 = vmatmul.bf16.gmra.mxu0 %v1197
        %v2801 = vpop.f32.mrf.mxu0
        %v2802 = vadd.f32 %v2713, %v2801
        %v2803 = vpop.f32.mrf.mxu0
        %v2804 = vadd.f32 %v2715, %v2803
        %2805 = vmatmul.bf16.gmra.mxu0 %v1199
        %v2806 = vpop.f32.mrf.mxu0
        %v2807 = vadd.f32 %v2718, %v2806
        %v2808 = vpop.f32.mrf.mxu0
        %v2809 = vadd.f32 %v2720, %v2808
        %2810 = vmatmul.bf16.gmra.mxu0 %v1201
        %v2811 = vpop.f32.mrf.mxu0
        %v2812 = vadd.f32 %v2723, %v2811
        %v2813 = vpop.f32.mrf.mxu0
        %v2814 = vadd.f32 %v2725, %v2813
        %2815 = vmatmul.bf16.gmra.mxu0 %v1203
        %v2816 = vpop.f32.mrf.mxu0
        %v2817 = vadd.f32 %v2728, %v2816
        %v2818 = vpop.f32.mrf.mxu0
        %v2819 = vadd.f32 %v2730, %v2818
        %2820 = vmatmul.bf16.gmra.mxu0 %v1205
        %v2821 = vpop.f32.mrf.mxu0
        %v2822 = vadd.f32 %v2733, %v2821
        %v2823 = vpop.f32.mrf.mxu0
        %v2824 = vadd.f32 %v2735, %v2823
        %2825 = vmatmul.bf16.gmra.mxu0 %v1207
        %v2826 = vpop.f32.mrf.mxu0
        %v2827 = vadd.f32 %v2738, %v2826
        %v2828 = vpop.f32.mrf.mxu0
        %v2829 = vadd.f32 %v2740, %v2828
        %2830 = vmatmul.bf16.gmra.mxu0 %v1209
        %v2831 = vpop.f32.mrf.mxu0
        %v2832 = vadd.f32 %v2743, %v2831
        %v2833 = vpop.f32.mrf.mxu0
        %v2834 = vadd.f32 %v2745, %v2833
        %2835 = vmatmul.bf16.gmra.mxu0 %v1211
        %v2836 = vpop.f32.mrf.mxu0
        %v2837 = vadd.f32 %v2748, %v2836
        %v2838 = vpop.f32.mrf.mxu0
        %v2839 = vadd.f32 %v2750, %v2838
        %2840 = vmatmul.bf16.gmra.mxu0 %v1213
        %v2841 = vpop.f32.mrf.mxu0
        %v2842 = vadd.f32 %v2753, %v2841
        %v2843 = vpop.f32.mrf.mxu0
        %v2844 = vadd.f32 %v2755, %v2843
        %2845 = vmatmul.bf16.gmra.mxu0 %v1215
        %v2846 = vpop.f32.mrf.mxu0
        %v2847 = vadd.f32 %v2758, %v2846
        %v2848 = vpop.f32.mrf.mxu0
        %v2849 = vadd.f32 %v2760, %v2848
        %2850 = vmatmul.bf16.gmra.mxu0 %v1217
        %v2851 = vpop.f32.mrf.mxu0
        %v2852 = vadd.f32 %v2763, %v2851
        %v2853 = vpop.f32.mrf.mxu0
        %v2854 = vadd.f32 %v2765, %v2853
        %2855 = vmatmul.bf16.gmra.mxu0 %v1219
        %v2856 = vpop.f32.mrf.mxu0
        %v2857 = vadd.f32 %v2768, %v2856
        %v2858 = vpop.f32.mrf.mxu0
        %v2859 = vadd.f32 %v2770, %v2858
        %2860 = vmatmul.bf16.gmra.mxu0 %v1221
        %v2861 = vpop.f32.mrf.mxu0
        %v2862 = vadd.f32 %v2773, %v2861
        %v2863 = vpop.f32.mrf.mxu0
        %v2864 = vadd.f32 %v2775, %v2863
        %2865 = vdwg.mxu0
        %v2866 = vld [vmem:[%s373] sm:$0xff]
        %v2867 = vld [vmem:[%s373 + $0x8] sm:$0xff]
        %v2868 = vld [vmem:[%s373 + $0x10] sm:$0xff]
        %v2869 = vld [vmem:[%s373 + $0x18] sm:$0xff]
        %v2870 = vld [vmem:[%s373 + $0x20] sm:$0xff]
        %v2871 = vld [vmem:[%s373 + $0x28] sm:$0xff]
        %v2872 = vld [vmem:[%s373 + $0x30] sm:$0xff]
        %v2873 = vld [vmem:[%s373 + $0x38] sm:$0xff]
        %v2874 = vld [vmem:[%s373 + $0x40] sm:$0xff]
        %v2875 = vld [vmem:[%s373 + $0x48] sm:$0xff]
        %v2876 = vld [vmem:[%s373 + $0x50] sm:$0xff]
        %v2877 = vld [vmem:[%s373 + $0x58] sm:$0xff]
        %v2878 = vld [vmem:[%s373 + $0x60] sm:$0xff]
        %v2879 = vld [vmem:[%s373 + $0x68] sm:$0xff]
        %v2880 = vld [vmem:[%s373 + $0x70] sm:$0xff]
        %v2881 = vld [vmem:[%s373 + $0x78] sm:$0xff]
        %v2882 = vld [vmem:[%s373 + $0x80] sm:$0xff]
        %v2883 = vld [vmem:[%s373 + $0x88] sm:$0xff]
        %v2884 = vld [vmem:[%s373 + $0x90] sm:$0xff]
        %v2885 = vld [vmem:[%s373 + $0x98] sm:$0xff]
        %v2886 = vld [vmem:[%s373 + $0xa0] sm:$0xff]
        %v2887 = vld [vmem:[%s373 + $0xa8] sm:$0xff]
        %v2888 = vld [vmem:[%s373 + $0xb0] sm:$0xff]
        %v2889 = vld [vmem:[%s373 + $0xb8] sm:$0xff]
        %v2890 = vld [vmem:[%s373 + $0xc0] sm:$0xff]
        %v2891 = vld [vmem:[%s373 + $0xc8] sm:$0xff]
        %v2892 = vld [vmem:[%s373 + $0xd0] sm:$0xff]
        %v2893 = vld [vmem:[%s373 + $0xd8] sm:$0xff]
        %v2894 = vld [vmem:[%s373 + $0xe0] sm:$0xff]
        %v2895 = vld [vmem:[%s373 + $0xe8] sm:$0xff]
        %v2896 = vld [vmem:[%s373 + $0xf0] sm:$0xff]
        %v2897 = vld [vmem:[%s373 + $0xf8] sm:$0xff]
        %v2898 = vld [vmem:[%s383] sm:$0xff]
        %v2899 = vld [vmem:[%s383 + $0x8] sm:$0xff]
        %v2900 = vld [vmem:[%s383 + $0x10] sm:$0xff]
        %v2901 = vld [vmem:[%s383 + $0x18] sm:$0xff]
        %v2902 = vld [vmem:[%s383 + $0x20] sm:$0xff]
        %v2903 = vld [vmem:[%s383 + $0x28] sm:$0xff]
        %v2904 = vld [vmem:[%s383 + $0x30] sm:$0xff]
        %v2905 = vld [vmem:[%s383 + $0x38] sm:$0xff]
        %v2906 = vld [vmem:[%s383 + $0x40] sm:$0xff]
        %v2907 = vld [vmem:[%s383 + $0x48] sm:$0xff]
        %v2908 = vld [vmem:[%s383 + $0x50] sm:$0xff]
        %v2909 = vld [vmem:[%s383 + $0x58] sm:$0xff]
        %v2910 = vld [vmem:[%s383 + $0x60] sm:$0xff]
        %v2911 = vld [vmem:[%s383 + $0x68] sm:$0xff]
        %v2912 = vld [vmem:[%s383 + $0x70] sm:$0xff]
        %v2913 = vld [vmem:[%s383 + $0x78] sm:$0xff]
        %v2914 = vld [vmem:[%s383 + $0x80] sm:$0xff]
        %v2915 = vld [vmem:[%s383 + $0x88] sm:$0xff]
        %v2916 = vld [vmem:[%s383 + $0x90] sm:$0xff]
        %v2917 = vld [vmem:[%s383 + $0x98] sm:$0xff]
        %v2918 = vld [vmem:[%s383 + $0xa0] sm:$0xff]
        %v2919 = vld [vmem:[%s383 + $0xa8] sm:$0xff]
        %v2920 = vld [vmem:[%s383 + $0xb0] sm:$0xff]
        %v2921 = vld [vmem:[%s383 + $0xb8] sm:$0xff]
        %v2922 = vld [vmem:[%s383 + $0xc0] sm:$0xff]
        %v2923 = vld [vmem:[%s383 + $0xc8] sm:$0xff]
        %v2924 = vld [vmem:[%s383 + $0xd0] sm:$0xff]
        %v2925 = vld [vmem:[%s383 + $0xd8] sm:$0xff]
        %v2926 = vld [vmem:[%s383 + $0xe0] sm:$0xff]
        %v2927 = vld [vmem:[%s383 + $0xe8] sm:$0xff]
        %v2928 = vld [vmem:[%s383 + $0xf0] sm:$0xff]
        %v2929 = vld [vmem:[%s383 + $0xf8] sm:$0xff]
        %v2930 = vmul.f32 %v1897, %v2866
        %v2931 = vmul.f32 %v1899, %v2867
        %v2932 = vmul.f32 %v1902, %v2868
        %v2933 = vmul.f32 %v1904, %v2869
        %v2934 = vmul.f32 %v1907, %v2870
        %v2935 = vmul.f32 %v1909, %v2871
        %v2936 = vmul.f32 %v1912, %v2872
        %v2937 = vmul.f32 %v1914, %v2873
        %v2938 = vmul.f32 %v1917, %v2874
        %v2939 = vmul.f32 %v1919, %v2875
        %v2940 = vmul.f32 %v1922, %v2876
        %v2941 = vmul.f32 %v1924, %v2877
        %v2942 = vmul.f32 %v1927, %v2878
        %v2943 = vmul.f32 %v1929, %v2879
        %v2944 = vmul.f32 %v1932, %v2880
        %v2945 = vmul.f32 %v1934, %v2881
        %v2946 = vmul.f32 %v1937, %v2882
        %v2947 = vmul.f32 %v1939, %v2883
        %v2948 = vmul.f32 %v1942, %v2884
        %v2949 = vmul.f32 %v1944, %v2885
        %v2950 = vmul.f32 %v1947, %v2886
        %v2951 = vmul.f32 %v1949, %v2887
        %v2952 = vmul.f32 %v1952, %v2888
        %v2953 = vmul.f32 %v1954, %v2889
        %v2954 = vmul.f32 %v1957, %v2890
        %v2955 = vmul.f32 %v1959, %v2891
        %v2956 = vmul.f32 %v1962, %v2892
        %v2957 = vmul.f32 %v1964, %v2893
        %v2958 = vmul.f32 %v1967, %v2894
        %v2959 = vmul.f32 %v1969, %v2895
        %v2960 = vmul.f32 %v1972, %v2896
        %v2961 = vmul.f32 %v1974, %v2897
        %2962 = vrot.lane.b32.xlu0 %v1897, 64
        %v2963 = vpop.permute.xlu0 %2962
        %2964 = vrot.lane.b32.xlu0 %v1899, 64
        %v2965 = vpop.permute.xlu0 %2964
        %2966 = vrot.lane.b32.xlu0 %v1902, 64
        %v2967 = vpop.permute.xlu0 %2966
        %2968 = vrot.lane.b32.xlu0 %v1904, 64
        %v2969 = vpop.permute.xlu0 %2968
        %2970 = vrot.lane.b32.xlu0 %v1907, 64
        %v2971 = vpop.permute.xlu0 %2970
        %2972 = vrot.lane.b32.xlu0 %v1909, 64
        %v2973 = vpop.permute.xlu0 %2972
        %2974 = vrot.lane.b32.xlu0 %v1912, 64
        %v2975 = vpop.permute.xlu0 %2974
        %2976 = vrot.lane.b32.xlu0 %v1914, 64
        %v2977 = vpop.permute.xlu0 %2976
        %2978 = vrot.lane.b32.xlu0 %v1917, 64
        %v2979 = vpop.permute.xlu0 %2978
        %2980 = vrot.lane.b32.xlu0 %v1919, 64
        %v2981 = vpop.permute.xlu0 %2980
        %2982 = vrot.lane.b32.xlu0 %v1922, 64
        %v2983 = vpop.permute.xlu0 %2982
        %2984 = vrot.lane.b32.xlu0 %v1924, 64
        %v2985 = vpop.permute.xlu0 %2984
        %2986 = vrot.lane.b32.xlu0 %v1927, 64
        %v2987 = vpop.permute.xlu0 %2986
        %2988 = vrot.lane.b32.xlu0 %v1929, 64
        %v2989 = vpop.permute.xlu0 %2988
        %2990 = vrot.lane.b32.xlu0 %v1932, 64
        %v2991 = vpop.permute.xlu0 %2990
        %2992 = vrot.lane.b32.xlu0 %v1934, 64
        %v2993 = vpop.permute.xlu0 %2992
        %2994 = vrot.lane.b32.xlu0 %v1937, 64
        %v2995 = vpop.permute.xlu0 %2994
        %2996 = vrot.lane.b32.xlu0 %v1939, 64
        %v2997 = vpop.permute.xlu0 %2996
        %2998 = vrot.lane.b32.xlu0 %v1942, 64
        %v2999 = vpop.permute.xlu0 %2998
        %3000 = vrot.lane.b32.xlu0 %v1944, 64
        %v3001 = vpop.permute.xlu0 %3000
        %3002 = vrot.lane.b32.xlu0 %v1947, 64
        %v3003 = vpop.permute.xlu0 %3002
        %3004 = vrot.lane.b32.xlu0 %v1949, 64
        %v3005 = vpop.permute.xlu0 %3004
        %3006 = vrot.lane.b32.xlu0 %v1952, 64
        %v3007 = vpop.permute.xlu0 %3006
        %3008 = vrot.lane.b32.xlu0 %v1954, 64
        %v3009 = vpop.permute.xlu0 %3008
        %3010 = vrot.lane.b32.xlu0 %v1957, 64
        %v3011 = vpop.permute.xlu0 %3010
        %3012 = vrot.lane.b32.xlu0 %v1959, 64
        %v3013 = vpop.permute.xlu0 %3012
        %3014 = vrot.lane.b32.xlu0 %v1962, 64
        %v3015 = vpop.permute.xlu0 %3014
        %3016 = vrot.lane.b32.xlu0 %v1964, 64
        %v3017 = vpop.permute.xlu0 %3016
        %3018 = vrot.lane.b32.xlu0 %v1967, 64
        %v3019 = vpop.permute.xlu0 %3018
        %3020 = vrot.lane.b32.xlu0 %v1969, 64
        %v3021 = vpop.permute.xlu0 %3020
        %3022 = vrot.lane.b32.xlu0 %v1972, 64
        %v3023 = vpop.permute.xlu0 %3022
        %3024 = vrot.lane.b32.xlu0 %v1974, 64
        %v3025 = vpop.permute.xlu0 %3024
        %v3026 = vmul.f32 %v2963, %v2898
        %v3027 = vmul.f32 %v2965, %v2899
        %v3028 = vmul.f32 %v2967, %v2900
        %v3029 = vmul.f32 %v2969, %v2901
        %v3030 = vmul.f32 %v2971, %v2902
        %v3031 = vmul.f32 %v2973, %v2903
        %v3032 = vmul.f32 %v2975, %v2904
        %v3033 = vmul.f32 %v2977, %v2905
        %v3034 = vmul.f32 %v2979, %v2906
        %v3035 = vmul.f32 %v2981, %v2907
        %v3036 = vmul.f32 %v2983, %v2908
        %v3037 = vmul.f32 %v2985, %v2909
        %v3038 = vmul.f32 %v2987, %v2910
        %v3039 = vmul.f32 %v2989, %v2911
        %v3040 = vmul.f32 %v2991, %v2912
        %v3041 = vmul.f32 %v2993, %v2913
        %v3042 = vmul.f32 %v2995, %v2914
        %v3043 = vmul.f32 %v2997, %v2915
        %v3044 = vmul.f32 %v2999, %v2916
        %v3045 = vmul.f32 %v3001, %v2917
        %v3046 = vmul.f32 %v3003, %v2918
        %v3047 = vmul.f32 %v3005, %v2919
        %v3048 = vmul.f32 %v3007, %v2920
        %v3049 = vmul.f32 %v3009, %v2921
        %v3050 = vmul.f32 %v3011, %v2922
        %v3051 = vmul.f32 %v3013, %v2923
        %v3052 = vmul.f32 %v3015, %v2924
        %v3053 = vmul.f32 %v3017, %v2925
        %v3054 = vmul.f32 %v3019, %v2926
        %v3055 = vmul.f32 %v3021, %v2927
        %v3056 = vmul.f32 %v3023, %v2928
        %v3057 = vmul.f32 %v3025, %v2929
        %v3058 = vadd.f32 %v2930, %v3026
        %v3059 = vadd.f32 %v2931, %v3027
        %v3060 = vadd.f32 %v2932, %v3028
        %v3061 = vadd.f32 %v2933, %v3029
        %v3062 = vadd.f32 %v2934, %v3030
        %v3063 = vadd.f32 %v2935, %v3031
        %v3064 = vadd.f32 %v2936, %v3032
        %v3065 = vadd.f32 %v2937, %v3033
        %v3066 = vadd.f32 %v2938, %v3034
        %v3067 = vadd.f32 %v2939, %v3035
        %v3068 = vadd.f32 %v2940, %v3036
        %v3069 = vadd.f32 %v2941, %v3037
        %v3070 = vadd.f32 %v2942, %v3038
        %v3071 = vadd.f32 %v2943, %v3039
        %v3072 = vadd.f32 %v2944, %v3040
        %v3073 = vadd.f32 %v2945, %v3041
        %v3074 = vadd.f32 %v2946, %v3042
        %v3075 = vadd.f32 %v2947, %v3043
        %v3076 = vadd.f32 %v2948, %v3044
        %v3077 = vadd.f32 %v2949, %v3045
        %v3078 = vadd.f32 %v2950, %v3046
        %v3079 = vadd.f32 %v2951, %v3047
        %v3080 = vadd.f32 %v2952, %v3048
        %v3081 = vadd.f32 %v2953, %v3049
        %v3082 = vadd.f32 %v2954, %v3050
        %v3083 = vadd.f32 %v2955, %v3051
        %v3084 = vadd.f32 %v2956, %v3052
        %v3085 = vadd.f32 %v2957, %v3053
        %v3086 = vadd.f32 %v2958, %v3054
        %v3087 = vadd.f32 %v2959, %v3055
        %v3088 = vadd.f32 %v2960, %v3056
        %v3089 = vadd.f32 %v2961, %v3057
        %v3090 = vmul.f32 %v3058, 0.088388346
        %v3091 = vmul.f32 %v3059, 0.088388346
        %v3092 = vmul.f32 %v3060, 0.088388346
        %v3093 = vmul.f32 %v3061, 0.088388346
        %v3094 = vmul.f32 %v3062, 0.088388346
        %v3095 = vmul.f32 %v3063, 0.088388346
        %v3096 = vmul.f32 %v3064, 0.088388346
        %v3097 = vmul.f32 %v3065, 0.088388346
        %v3098 = vmul.f32 %v3066, 0.088388346
        %v3099 = vmul.f32 %v3067, 0.088388346
        %v3100 = vmul.f32 %v3068, 0.088388346
        %v3101 = vmul.f32 %v3069, 0.088388346
        %v3102 = vmul.f32 %v3070, 0.088388346
        %v3103 = vmul.f32 %v3071, 0.088388346
        %v3104 = vmul.f32 %v3072, 0.088388346
        %v3105 = vmul.f32 %v3073, 0.088388346
        %v3106 = vmul.f32 %v3074, 0.088388346
        %v3107 = vmul.f32 %v3075, 0.088388346
        %v3108 = vmul.f32 %v3076, 0.088388346
        %v3109 = vmul.f32 %v3077, 0.088388346
        %v3110 = vmul.f32 %v3078, 0.088388346
        %v3111 = vmul.f32 %v3079, 0.088388346
        %v3112 = vmul.f32 %v3080, 0.088388346
        %v3113 = vmul.f32 %v3081, 0.088388346
        %v3114 = vmul.f32 %v3082, 0.088388346
        %v3115 = vmul.f32 %v3083, 0.088388346
        %v3116 = vmul.f32 %v3084, 0.088388346
        %v3117 = vmul.f32 %v3085, 0.088388346
        %v3118 = vmul.f32 %v3086, 0.088388346
        %v3119 = vmul.f32 %v3087, 0.088388346
        %v3120 = vmul.f32 %v3088, 0.088388346
        %v3121 = vmul.f32 %v3089, 0.088388346
        %v3122 = vpack.c.bf16 %v3090, %v3090
        %v3123 = vpack.c.bf16 %v3091, %v3091
        %v3124 = vpack.c.bf16 %v3092, %v3092
        %v3125 = vpack.c.bf16 %v3093, %v3093
        %v3126 = vpack.c.bf16 %v3094, %v3094
        %v3127 = vpack.c.bf16 %v3095, %v3095
        %v3128 = vpack.c.bf16 %v3096, %v3096
        %v3129 = vpack.c.bf16 %v3097, %v3097
        %v3130 = vpack.c.bf16 %v3098, %v3098
        %v3131 = vpack.c.bf16 %v3099, %v3099
        %v3132 = vpack.c.bf16 %v3100, %v3100
        %v3133 = vpack.c.bf16 %v3101, %v3101
        %v3134 = vpack.c.bf16 %v3102, %v3102
        %v3135 = vpack.c.bf16 %v3103, %v3103
        %v3136 = vpack.c.bf16 %v3104, %v3104
        %v3137 = vpack.c.bf16 %v3105, %v3105
        %v3138 = vpack.c.bf16 %v3106, %v3106
        %v3139 = vpack.c.bf16 %v3107, %v3107
        %v3140 = vpack.c.bf16 %v3108, %v3108
        %v3141 = vpack.c.bf16 %v3109, %v3109
        %v3142 = vpack.c.bf16 %v3110, %v3110
        %v3143 = vpack.c.bf16 %v3111, %v3111
        %v3144 = vpack.c.bf16 %v3112, %v3112
        %v3145 = vpack.c.bf16 %v3113, %v3113
        %v3146 = vpack.c.bf16 %v3114, %v3114
        %v3147 = vpack.c.bf16 %v3115, %v3115
        %v3148 = vpack.c.bf16 %v3116, %v3116
        %v3149 = vpack.c.bf16 %v3117, %v3117
        %v3150 = vpack.c.bf16 %v3118, %v3118
        %v3151 = vpack.c.bf16 %v3119, %v3119
        %v3152 = vpack.c.bf16 %v3120, %v3120
        %v3153 = vpack.c.bf16 %v3121, %v3121
        %v3154 = vmul.f32 %v2253, %v2866
        %v3155 = vmul.f32 %v2255, %v2867
        %v3156 = vmul.f32 %v2258, %v2868
        %v3157 = vmul.f32 %v2260, %v2869
        %v3158 = vmul.f32 %v2263, %v2870
        %v3159 = vmul.f32 %v2265, %v2871
        %v3160 = vmul.f32 %v2268, %v2872
        %v3161 = vmul.f32 %v2270, %v2873
        %v3162 = vmul.f32 %v2273, %v2874
        %v3163 = vmul.f32 %v2275, %v2875
        %v3164 = vmul.f32 %v2278, %v2876
        %v3165 = vmul.f32 %v2280, %v2877
        %v3166 = vmul.f32 %v2283, %v2878
        %v3167 = vmul.f32 %v2285, %v2879
        %v3168 = vmul.f32 %v2288, %v2880
        %v3169 = vmul.f32 %v2290, %v2881
        %v3170 = vmul.f32 %v2293, %v2882
        %v3171 = vmul.f32 %v2295, %v2883
        %v3172 = vmul.f32 %v2298, %v2884
        %v3173 = vmul.f32 %v2300, %v2885
        %v3174 = vmul.f32 %v2303, %v2886
        %v3175 = vmul.f32 %v2305, %v2887
        %v3176 = vmul.f32 %v2308, %v2888
        %v3177 = vmul.f32 %v2310, %v2889
        %v3178 = vmul.f32 %v2313, %v2890
        %v3179 = vmul.f32 %v2315, %v2891
        %v3180 = vmul.f32 %v2318, %v2892
        %v3181 = vmul.f32 %v2320, %v2893
        %v3182 = vmul.f32 %v2323, %v2894
        %v3183 = vmul.f32 %v2325, %v2895
        %v3184 = vmul.f32 %v2328, %v2896
        %v3185 = vmul.f32 %v2330, %v2897
        %3186 = vrot.lane.b32.xlu0 %v2253, 64
        %v3187 = vpop.permute.xlu0 %3186
        %3188 = vrot.lane.b32.xlu0 %v2255, 64
        %v3189 = vpop.permute.xlu0 %3188
        %3190 = vrot.lane.b32.xlu0 %v2258, 64
        %v3191 = vpop.permute.xlu0 %3190
        %3192 = vrot.lane.b32.xlu0 %v2260, 64
        %v3193 = vpop.permute.xlu0 %3192
        %3194 = vrot.lane.b32.xlu0 %v2263, 64
        %v3195 = vpop.permute.xlu0 %3194
        %3196 = vrot.lane.b32.xlu0 %v2265, 64
        %v3197 = vpop.permute.xlu0 %3196
        %3198 = vrot.lane.b32.xlu0 %v2268, 64
        %v3199 = vpop.permute.xlu0 %3198
        %3200 = vrot.lane.b32.xlu0 %v2270, 64
        %v3201 = vpop.permute.xlu0 %3200
        %3202 = vrot.lane.b32.xlu0 %v2273, 64
        %v3203 = vpop.permute.xlu0 %3202
        %3204 = vrot.lane.b32.xlu0 %v2275, 64
        %v3205 = vpop.permute.xlu0 %3204
        %3206 = vrot.lane.b32.xlu0 %v2278, 64
        %v3207 = vpop.permute.xlu0 %3206
        %3208 = vrot.lane.b32.xlu0 %v2280, 64
        %v3209 = vpop.permute.xlu0 %3208
        %3210 = vrot.lane.b32.xlu0 %v2283, 64
        %v3211 = vpop.permute.xlu0 %3210
        %3212 = vrot.lane.b32.xlu0 %v2285, 64
        %v3213 = vpop.permute.xlu0 %3212
        %3214 = vrot.lane.b32.xlu0 %v2288, 64
        %v3215 = vpop.permute.xlu0 %3214
        %3216 = vrot.lane.b32.xlu0 %v2290, 64
        %v3217 = vpop.permute.xlu0 %3216
        %3218 = vrot.lane.b32.xlu0 %v2293, 64
        %v3219 = vpop.permute.xlu0 %3218
        %3220 = vrot.lane.b32.xlu0 %v2295, 64
        %v3221 = vpop.permute.xlu0 %3220
        %3222 = vrot.lane.b32.xlu0 %v2298, 64
        %v3223 = vpop.permute.xlu0 %3222
        %3224 = vrot.lane.b32.xlu0 %v2300, 64
        %v3225 = vpop.permute.xlu0 %3224
        %3226 = vrot.lane.b32.xlu0 %v2303, 64
        %v3227 = vpop.permute.xlu0 %3226
        %3228 = vrot.lane.b32.xlu0 %v2305, 64
        %v3229 = vpop.permute.xlu0 %3228
        %3230 = vrot.lane.b32.xlu0 %v2308, 64
        %v3231 = vpop.permute.xlu0 %3230
        %3232 = vrot.lane.b32.xlu0 %v2310, 64
        %v3233 = vpop.permute.xlu0 %3232
        %3234 = vrot.lane.b32.xlu0 %v2313, 64
        %v3235 = vpop.permute.xlu0 %3234
        %3236 = vrot.lane.b32.xlu0 %v2315, 64
        %v3237 = vpop.permute.xlu0 %3236
        %3238 = vrot.lane.b32.xlu0 %v2318, 64
        %v3239 = vpop.permute.xlu0 %3238
        %3240 = vrot.lane.b32.xlu0 %v2320, 64
        %v3241 = vpop.permute.xlu0 %3240
        %3242 = vrot.lane.b32.xlu0 %v2323, 64
        %v3243 = vpop.permute.xlu0 %3242
        %3244 = vrot.lane.b32.xlu0 %v2325, 64
        %v3245 = vpop.permute.xlu0 %3244
        %3246 = vrot.lane.b32.xlu0 %v2328, 64
        %v3247 = vpop.permute.xlu0 %3246
        %3248 = vrot.lane.b32.xlu0 %v2330, 64
        %v3249 = vpop.permute.xlu0 %3248
        %v3250 = vmul.f32 %v3187, %v2898
        %v3251 = vmul.f32 %v3189, %v2899
        %v3252 = vmul.f32 %v3191, %v2900
        %v3253 = vmul.f32 %v3193, %v2901
        %v3254 = vmul.f32 %v3195, %v2902
        %v3255 = vmul.f32 %v3197, %v2903
        %v3256 = vmul.f32 %v3199, %v2904
        %v3257 = vmul.f32 %v3201, %v2905
        %v3258 = vmul.f32 %v3203, %v2906
        %v3259 = vmul.f32 %v3205, %v2907
        %v3260 = vmul.f32 %v3207, %v2908
        %v3261 = vmul.f32 %v3209, %v2909
        %v3262 = vmul.f32 %v3211, %v2910
        %v3263 = vmul.f32 %v3213, %v2911
        %v3264 = vmul.f32 %v3215, %v2912
        %v3265 = vmul.f32 %v3217, %v2913
        %v3266 = vmul.f32 %v3219, %v2914
        %v3267 = vmul.f32 %v3221, %v2915
        %v3268 = vmul.f32 %v3223, %v2916
        %v3269 = vmul.f32 %v3225, %v2917
        %v3270 = vmul.f32 %v3227, %v2918
        %v3271 = vmul.f32 %v3229, %v2919
        %v3272 = vmul.f32 %v3231, %v2920
        %v3273 = vmul.f32 %v3233, %v2921
        %v3274 = vmul.f32 %v3235, %v2922
        %v3275 = vmul.f32 %v3237, %v2923
        %v3276 = vmul.f32 %v3239, %v2924
        %v3277 = vmul.f32 %v3241, %v2925
        %v3278 = vmul.f32 %v3243, %v2926
        %v3279 = vmul.f32 %v3245, %v2927
        %v3280 = vmul.f32 %v3247, %v2928
        %v3281 = vmul.f32 %v3249, %v2929
        %v3282 = vadd.f32 %v3154, %v3250
        %v3283 = vadd.f32 %v3155, %v3251
        %v3284 = vadd.f32 %v3156, %v3252
        %v3285 = vadd.f32 %v3157, %v3253
        %v3286 = vadd.f32 %v3158, %v3254
        %v3287 = vadd.f32 %v3159, %v3255
        %v3288 = vadd.f32 %v3160, %v3256
        %v3289 = vadd.f32 %v3161, %v3257
        %v3290 = vadd.f32 %v3162, %v3258
        %v3291 = vadd.f32 %v3163, %v3259
        %v3292 = vadd.f32 %v3164, %v3260
        %v3293 = vadd.f32 %v3165, %v3261
        %v3294 = vadd.f32 %v3166, %v3262
        %v3295 = vadd.f32 %v3167, %v3263
        %v3296 = vadd.f32 %v3168, %v3264
        %v3297 = vadd.f32 %v3169, %v3265
        %v3298 = vadd.f32 %v3170, %v3266
        %v3299 = vadd.f32 %v3171, %v3267
        %v3300 = vadd.f32 %v3172, %v3268
        %v3301 = vadd.f32 %v3173, %v3269
        %v3302 = vadd.f32 %v3174, %v3270
        %v3303 = vadd.f32 %v3175, %v3271
        %v3304 = vadd.f32 %v3176, %v3272
        %v3305 = vadd.f32 %v3177, %v3273
        %v3306 = vadd.f32 %v3178, %v3274
        %v3307 = vadd.f32 %v3179, %v3275
        %v3308 = vadd.f32 %v3180, %v3276
        %v3309 = vadd.f32 %v3181, %v3277
        %v3310 = vadd.f32 %v3182, %v3278
        %v3311 = vadd.f32 %v3183, %v3279
        %v3312 = vadd.f32 %v3184, %v3280
        %v3313 = vadd.f32 %v3185, %v3281
        %v3314 = vpack.c.bf16 %v3282, %v3282
        %v3315 = vpack.c.bf16 %v3283, %v3283
        %v3316 = vpack.c.bf16 %v3284, %v3284
        %v3317 = vpack.c.bf16 %v3285, %v3285
        %v3318 = vpack.c.bf16 %v3286, %v3286
        %v3319 = vpack.c.bf16 %v3287, %v3287
        %v3320 = vpack.c.bf16 %v3288, %v3288
        %v3321 = vpack.c.bf16 %v3289, %v3289
        %v3322 = vpack.c.bf16 %v3290, %v3290
        %v3323 = vpack.c.bf16 %v3291, %v3291
        %v3324 = vpack.c.bf16 %v3292, %v3292
        %v3325 = vpack.c.bf16 %v3293, %v3293
        %v3326 = vpack.c.bf16 %v3294, %v3294
        %v3327 = vpack.c.bf16 %v3295, %v3295
        %v3328 = vpack.c.bf16 %v3296, %v3296
        %v3329 = vpack.c.bf16 %v3297, %v3297
        %v3330 = vpack.c.bf16 %v3298, %v3298
        %v3331 = vpack.c.bf16 %v3299, %v3299
        %v3332 = vpack.c.bf16 %v3300, %v3300
        %v3333 = vpack.c.bf16 %v3301, %v3301
        %v3334 = vpack.c.bf16 %v3302, %v3302
        %v3335 = vpack.c.bf16 %v3303, %v3303
        %v3336 = vpack.c.bf16 %v3304, %v3304
        %v3337 = vpack.c.bf16 %v3305, %v3305
        %v3338 = vpack.c.bf16 %v3306, %v3306
        %v3339 = vpack.c.bf16 %v3307, %v3307
        %v3340 = vpack.c.bf16 %v3308, %v3308
        %v3341 = vpack.c.bf16 %v3309, %v3309
        %v3342 = vpack.c.bf16 %v3310, %v3310
        %v3343 = vpack.c.bf16 %v3311, %v3311
        %v3344 = vpack.c.bf16 %v3312, %v3312
        %v3345 = vpack.c.bf16 %v3313, %v3313
        %v3346 = vmul.f32 %v2075, %v2866
        %v3347 = vmul.f32 %v2077, %v2867
        %v3348 = vmul.f32 %v2080, %v2868
        %v3349 = vmul.f32 %v2082, %v2869
        %v3350 = vmul.f32 %v2085, %v2870
        %v3351 = vmul.f32 %v2087, %v2871
        %v3352 = vmul.f32 %v2090, %v2872
        %v3353 = vmul.f32 %v2092, %v2873
        %v3354 = vmul.f32 %v2095, %v2874
        %v3355 = vmul.f32 %v2097, %v2875
        %v3356 = vmul.f32 %v2100, %v2876
        %v3357 = vmul.f32 %v2102, %v2877
        %v3358 = vmul.f32 %v2105, %v2878
        %v3359 = vmul.f32 %v2107, %v2879
        %v3360 = vmul.f32 %v2110, %v2880
        %v3361 = vmul.f32 %v2112, %v2881
        %v3362 = vmul.f32 %v2115, %v2882
        %v3363 = vmul.f32 %v2117, %v2883
        %v3364 = vmul.f32 %v2120, %v2884
        %v3365 = vmul.f32 %v2122, %v2885
        %v3366 = vmul.f32 %v2125, %v2886
        %v3367 = vmul.f32 %v2127, %v2887
        %v3368 = vmul.f32 %v2130, %v2888
        %v3369 = vmul.f32 %v2132, %v2889
        %v3370 = vmul.f32 %v2135, %v2890
        %v3371 = vmul.f32 %v2137, %v2891
        %v3372 = vmul.f32 %v2140, %v2892
        %v3373 = vmul.f32 %v2142, %v2893
        %v3374 = vmul.f32 %v2145, %v2894
        %v3375 = vmul.f32 %v2147, %v2895
        %v3376 = vmul.f32 %v2150, %v2896
        %v3377 = vmul.f32 %v2152, %v2897
        %3378 = vrot.lane.b32.xlu0 %v2075, 64
        %v3379 = vpop.permute.xlu0 %3378
        %3380 = vrot.lane.b32.xlu0 %v2077, 64
        %v3381 = vpop.permute.xlu0 %3380
        %3382 = vrot.lane.b32.xlu0 %v2080, 64
        %v3383 = vpop.permute.xlu0 %3382
        %3384 = vrot.lane.b32.xlu0 %v2082, 64
        %v3385 = vpop.permute.xlu0 %3384
        %3386 = vrot.lane.b32.xlu0 %v2085, 64
        %v3387 = vpop.permute.xlu0 %3386
        %3388 = vrot.lane.b32.xlu0 %v2087, 64
        %v3389 = vpop.permute.xlu0 %3388
        %3390 = vrot.lane.b32.xlu0 %v2090, 64
        %v3391 = vpop.permute.xlu0 %3390
        %3392 = vrot.lane.b32.xlu0 %v2092, 64
        %v3393 = vpop.permute.xlu0 %3392
        %3394 = vrot.lane.b32.xlu0 %v2095, 64
        %v3395 = vpop.permute.xlu0 %3394
        %3396 = vrot.lane.b32.xlu0 %v2097, 64
        %v3397 = vpop.permute.xlu0 %3396
        %3398 = vrot.lane.b32.xlu0 %v2100, 64
        %v3399 = vpop.permute.xlu0 %3398
        %3400 = vrot.lane.b32.xlu0 %v2102, 64
        %v3401 = vpop.permute.xlu0 %3400
        %3402 = vrot.lane.b32.xlu0 %v2105, 64
        %v3403 = vpop.permute.xlu0 %3402
        %3404 = vrot.lane.b32.xlu0 %v2107, 64
        %v3405 = vpop.permute.xlu0 %3404
        %3406 = vrot.lane.b32.xlu0 %v2110, 64
        %v3407 = vpop.permute.xlu0 %3406
        %3408 = vrot.lane.b32.xlu0 %v2112, 64
        %v3409 = vpop.permute.xlu0 %3408
        %3410 = vrot.lane.b32.xlu0 %v2115, 64
        %v3411 = vpop.permute.xlu0 %3410
        %3412 = vrot.lane.b32.xlu0 %v2117, 64
        %v3413 = vpop.permute.xlu0 %3412
        %3414 = vrot.lane.b32.xlu0 %v2120, 64
        %v3415 = vpop.permute.xlu0 %3414
        %3416 = vrot.lane.b32.xlu0 %v2122, 64
        %v3417 = vpop.permute.xlu0 %3416
        %3418 = vrot.lane.b32.xlu0 %v2125, 64
        %v3419 = vpop.permute.xlu0 %3418
        %3420 = vrot.lane.b32.xlu0 %v2127, 64
        %v3421 = vpop.permute.xlu0 %3420
        %3422 = vrot.lane.b32.xlu0 %v2130, 64
        %v3423 = vpop.permute.xlu0 %3422
        %3424 = vrot.lane.b32.xlu0 %v2132, 64
        %v3425 = vpop.permute.xlu0 %3424
        %3426 = vrot.lane.b32.xlu0 %v2135, 64
        %v3427 = vpop.permute.xlu0 %3426
        %3428 = vrot.lane.b32.xlu0 %v2137, 64
        %v3429 = vpop.permute.xlu0 %3428
        %3430 = vrot.lane.b32.xlu0 %v2140, 64
        %v3431 = vpop.permute.xlu0 %3430
        %3432 = vrot.lane.b32.xlu0 %v2142, 64
        %v3433 = vpop.permute.xlu0 %3432
        %3434 = vrot.lane.b32.xlu0 %v2145, 64
        %v3435 = vpop.permute.xlu0 %3434
        %3436 = vrot.lane.b32.xlu0 %v2147, 64
        %v3437 = vpop.permute.xlu0 %3436
        %3438 = vrot.lane.b32.xlu0 %v2150, 64
        %v3439 = vpop.permute.xlu0 %3438
        %3440 = vrot.lane.b32.xlu0 %v2152, 64
        %v3441 = vpop.permute.xlu0 %3440
        %v3442 = vmul.f32 %v3379, %v2898
        %v3443 = vmul.f32 %v3381, %v2899
        %v3444 = vmul.f32 %v3383, %v2900
        %v3445 = vmul.f32 %v3385, %v2901
        %v3446 = vmul.f32 %v3387, %v2902
        %v3447 = vmul.f32 %v3389, %v2903
        %v3448 = vmul.f32 %v3391, %v2904
        %v3449 = vmul.f32 %v3393, %v2905
        %v3450 = vmul.f32 %v3395, %v2906
        %v3451 = vmul.f32 %v3397, %v2907
        %v3452 = vmul.f32 %v3399, %v2908
        %v3453 = vmul.f32 %v3401, %v2909
        %v3454 = vmul.f32 %v3403, %v2910
        %v3455 = vmul.f32 %v3405, %v2911
        %v3456 = vmul.f32 %v3407, %v2912
        %v3457 = vmul.f32 %v3409, %v2913
        %v3458 = vmul.f32 %v3411, %v2914
        %v3459 = vmul.f32 %v3413, %v2915
        %v3460 = vmul.f32 %v3415, %v2916
        %v3461 = vmul.f32 %v3417, %v2917
        %v3462 = vmul.f32 %v3419, %v2918
        %v3463 = vmul.f32 %v3421, %v2919
        %v3464 = vmul.f32 %v3423, %v2920
        %v3465 = vmul.f32 %v3425, %v2921
        %v3466 = vmul.f32 %v3427, %v2922
        %v3467 = vmul.f32 %v3429, %v2923
        %v3468 = vmul.f32 %v3431, %v2924
        %v3469 = vmul.f32 %v3433, %v2925
        %v3470 = vmul.f32 %v3435, %v2926
        %v3471 = vmul.f32 %v3437, %v2927
        %v3472 = vmul.f32 %v3439, %v2928
        %v3473 = vmul.f32 %v3441, %v2929
        %v3474 = vadd.f32 %v3346, %v3442
        %v3475 = vadd.f32 %v3347, %v3443
        %v3476 = vadd.f32 %v3348, %v3444
        %v3477 = vadd.f32 %v3349, %v3445
        %v3478 = vadd.f32 %v3350, %v3446
        %v3479 = vadd.f32 %v3351, %v3447
        %v3480 = vadd.f32 %v3352, %v3448
        %v3481 = vadd.f32 %v3353, %v3449
        %v3482 = vadd.f32 %v3354, %v3450
        %v3483 = vadd.f32 %v3355, %v3451
        %v3484 = vadd.f32 %v3356, %v3452
        %v3485 = vadd.f32 %v3357, %v3453
        %v3486 = vadd.f32 %v3358, %v3454
        %v3487 = vadd.f32 %v3359, %v3455
        %v3488 = vadd.f32 %v3360, %v3456
        %v3489 = vadd.f32 %v3361, %v3457
        %v3490 = vadd.f32 %v3362, %v3458
        %v3491 = vadd.f32 %v3363, %v3459
        %v3492 = vadd.f32 %v3364, %v3460
        %v3493 = vadd.f32 %v3365, %v3461
        %v3494 = vadd.f32 %v3366, %v3462
        %v3495 = vadd.f32 %v3367, %v3463
        %v3496 = vadd.f32 %v3368, %v3464
        %v3497 = vadd.f32 %v3369, %v3465
        %v3498 = vadd.f32 %v3370, %v3466
        %v3499 = vadd.f32 %v3371, %v3467
        %v3500 = vadd.f32 %v3372, %v3468
        %v3501 = vadd.f32 %v3373, %v3469
        %v3502 = vadd.f32 %v3374, %v3470
        %v3503 = vadd.f32 %v3375, %v3471
        %v3504 = vadd.f32 %v3376, %v3472
        %v3505 = vadd.f32 %v3377, %v3473
        %v3506 = vmul.f32 %v3474, 0.088388346
        %v3507 = vmul.f32 %v3475, 0.088388346
        %v3508 = vmul.f32 %v3476, 0.088388346
        %v3509 = vmul.f32 %v3477, 0.088388346
        %v3510 = vmul.f32 %v3478, 0.088388346
        %v3511 = vmul.f32 %v3479, 0.088388346
        %v3512 = vmul.f32 %v3480, 0.088388346
        %v3513 = vmul.f32 %v3481, 0.088388346
        %v3514 = vmul.f32 %v3482, 0.088388346
        %v3515 = vmul.f32 %v3483, 0.088388346
        %v3516 = vmul.f32 %v3484, 0.088388346
        %v3517 = vmul.f32 %v3485, 0.088388346
        %v3518 = vmul.f32 %v3486, 0.088388346
        %v3519 = vmul.f32 %v3487, 0.088388346
        %v3520 = vmul.f32 %v3488, 0.088388346
        %v3521 = vmul.f32 %v3489, 0.088388346
        %v3522 = vmul.f32 %v3490, 0.088388346
        %v3523 = vmul.f32 %v3491, 0.088388346
        %v3524 = vmul.f32 %v3492, 0.088388346
        %v3525 = vmul.f32 %v3493, 0.088388346
        %v3526 = vmul.f32 %v3494, 0.088388346
        %v3527 = vmul.f32 %v3495, 0.088388346
        %v3528 = vmul.f32 %v3496, 0.088388346
        %v3529 = vmul.f32 %v3497, 0.088388346
        %v3530 = vmul.f32 %v3498, 0.088388346
        %v3531 = vmul.f32 %v3499, 0.088388346
        %v3532 = vmul.f32 %v3500, 0.088388346
        %v3533 = vmul.f32 %v3501, 0.088388346
        %v3534 = vmul.f32 %v3502, 0.088388346
        %v3535 = vmul.f32 %v3503, 0.088388346
        %v3536 = vmul.f32 %v3504, 0.088388346
        %v3537 = vmul.f32 %v3505, 0.088388346
        %v3538 = vpack.c.bf16 %v3506, %v3506
        %v3539 = vpack.c.bf16 %v3507, %v3507
        %v3540 = vpack.c.bf16 %v3508, %v3508
        %v3541 = vpack.c.bf16 %v3509, %v3509
        %v3542 = vpack.c.bf16 %v3510, %v3510
        %v3543 = vpack.c.bf16 %v3511, %v3511
        %v3544 = vpack.c.bf16 %v3512, %v3512
        %v3545 = vpack.c.bf16 %v3513, %v3513
        %v3546 = vpack.c.bf16 %v3514, %v3514
        %v3547 = vpack.c.bf16 %v3515, %v3515
        %v3548 = vpack.c.bf16 %v3516, %v3516
        %v3549 = vpack.c.bf16 %v3517, %v3517
        %v3550 = vpack.c.bf16 %v3518, %v3518
        %v3551 = vpack.c.bf16 %v3519, %v3519
        %v3552 = vpack.c.bf16 %v3520, %v3520
        %v3553 = vpack.c.bf16 %v3521, %v3521
        %v3554 = vpack.c.bf16 %v3522, %v3522
        %v3555 = vpack.c.bf16 %v3523, %v3523
        %v3556 = vpack.c.bf16 %v3524, %v3524
        %v3557 = vpack.c.bf16 %v3525, %v3525
        %v3558 = vpack.c.bf16 %v3526, %v3526
        %v3559 = vpack.c.bf16 %v3527, %v3527
        %v3560 = vpack.c.bf16 %v3528, %v3528
        %v3561 = vpack.c.bf16 %v3529, %v3529
        %v3562 = vpack.c.bf16 %v3530, %v3530
        %v3563 = vpack.c.bf16 %v3531, %v3531
        %v3564 = vpack.c.bf16 %v3532, %v3532
        %v3565 = vpack.c.bf16 %v3533, %v3533
        %v3566 = vpack.c.bf16 %v3534, %v3534
        %v3567 = vpack.c.bf16 %v3535, %v3535
        %v3568 = vpack.c.bf16 %v3536, %v3536
        %v3569 = vpack.c.bf16 %v3537, %v3537
        %v3570 = vmul.f32 %v2431, %v2866
        %v3571 = vmul.f32 %v2433, %v2867
        %v3572 = vmul.f32 %v2436, %v2868
        %v3573 = vmul.f32 %v2438, %v2869
        %v3574 = vmul.f32 %v2441, %v2870
        %v3575 = vmul.f32 %v2443, %v2871
        %v3576 = vmul.f32 %v2446, %v2872
        %v3577 = vmul.f32 %v2448, %v2873
        %v3578 = vmul.f32 %v2451, %v2874
        %v3579 = vmul.f32 %v2453, %v2875
        %v3580 = vmul.f32 %v2456, %v2876
        %v3581 = vmul.f32 %v2458, %v2877
        %v3582 = vmul.f32 %v2461, %v2878
        %v3583 = vmul.f32 %v2463, %v2879
        %v3584 = vmul.f32 %v2466, %v2880
        %v3585 = vmul.f32 %v2468, %v2881
        %v3586 = vmul.f32 %v2471, %v2882
        %v3587 = vmul.f32 %v2473, %v2883
        %v3588 = vmul.f32 %v2476, %v2884
        %v3589 = vmul.f32 %v2478, %v2885
        %v3590 = vmul.f32 %v2481, %v2886
        %v3591 = vmul.f32 %v2483, %v2887
        %v3592 = vmul.f32 %v2486, %v2888
        %v3593 = vmul.f32 %v2488, %v2889
        %v3594 = vmul.f32 %v2491, %v2890
        %v3595 = vmul.f32 %v2493, %v2891
        %v3596 = vmul.f32 %v2496, %v2892
        %v3597 = vmul.f32 %v2498, %v2893
        %v3598 = vmul.f32 %v2501, %v2894
        %v3599 = vmul.f32 %v2503, %v2895
        %v3600 = vmul.f32 %v2506, %v2896
        %v3601 = vmul.f32 %v2508, %v2897
        %3602 = vrot.lane.b32.xlu0 %v2431, 64
        %v3603 = vpop.permute.xlu0 %3602
        %3604 = vrot.lane.b32.xlu0 %v2433, 64
        %v3605 = vpop.permute.xlu0 %3604
        %3606 = vrot.lane.b32.xlu0 %v2436, 64
        %v3607 = vpop.permute.xlu0 %3606
        %3608 = vrot.lane.b32.xlu0 %v2438, 64
        %v3609 = vpop.permute.xlu0 %3608
        %3610 = vrot.lane.b32.xlu0 %v2441, 64
        %v3611 = vpop.permute.xlu0 %3610
        %3612 = vrot.lane.b32.xlu0 %v2443, 64
        %v3613 = vpop.permute.xlu0 %3612
        %3614 = vrot.lane.b32.xlu0 %v2446, 64
        %v3615 = vpop.permute.xlu0 %3614
        %3616 = vrot.lane.b32.xlu0 %v2448, 64
        %v3617 = vpop.permute.xlu0 %3616
        %3618 = vrot.lane.b32.xlu0 %v2451, 64
        %v3619 = vpop.permute.xlu0 %3618
        %3620 = vrot.lane.b32.xlu0 %v2453, 64
        %v3621 = vpop.permute.xlu0 %3620
        %3622 = vrot.lane.b32.xlu0 %v2456, 64
        %v3623 = vpop.permute.xlu0 %3622
        %3624 = vrot.lane.b32.xlu0 %v2458, 64
        %v3625 = vpop.permute.xlu0 %3624
        %3626 = vrot.lane.b32.xlu0 %v2461, 64
        %v3627 = vpop.permute.xlu0 %3626
        %3628 = vrot.lane.b32.xlu0 %v2463, 64
        %v3629 = vpop.permute.xlu0 %3628
        %3630 = vrot.lane.b32.xlu0 %v2466, 64
        %v3631 = vpop.permute.xlu0 %3630
        %3632 = vrot.lane.b32.xlu0 %v2468, 64
        %v3633 = vpop.permute.xlu0 %3632
        %3634 = vrot.lane.b32.xlu0 %v2471, 64
        %v3635 = vpop.permute.xlu0 %3634
        %3636 = vrot.lane.b32.xlu0 %v2473, 64
        %v3637 = vpop.permute.xlu0 %3636
        %3638 = vrot.lane.b32.xlu0 %v2476, 64
        %v3639 = vpop.permute.xlu0 %3638
        %3640 = vrot.lane.b32.xlu0 %v2478, 64
        %v3641 = vpop.permute.xlu0 %3640
        %3642 = vrot.lane.b32.xlu0 %v2481, 64
        %v3643 = vpop.permute.xlu0 %3642
        %3644 = vrot.lane.b32.xlu0 %v2483, 64
        %v3645 = vpop.permute.xlu0 %3644
        %3646 = vrot.lane.b32.xlu0 %v2486, 64
        %v3647 = vpop.permute.xlu0 %3646
        %3648 = vrot.lane.b32.xlu0 %v2488, 64
        %v3649 = vpop.permute.xlu0 %3648
        %3650 = vrot.lane.b32.xlu0 %v2491, 64
        %v3651 = vpop.permute.xlu0 %3650
        %3652 = vrot.lane.b32.xlu0 %v2493, 64
        %v3653 = vpop.permute.xlu0 %3652
        %3654 = vrot.lane.b32.xlu0 %v2496, 64
        %v3655 = vpop.permute.xlu0 %3654
        %3656 = vrot.lane.b32.xlu0 %v2498, 64
        %v3657 = vpop.permute.xlu0 %3656
        %3658 = vrot.lane.b32.xlu0 %v2501, 64
        %v3659 = vpop.permute.xlu0 %3658
        %3660 = vrot.lane.b32.xlu0 %v2503, 64
        %v3661 = vpop.permute.xlu0 %3660
        %3662 = vrot.lane.b32.xlu0 %v2506, 64
        %v3663 = vpop.permute.xlu0 %3662
        %3664 = vrot.lane.b32.xlu0 %v2508, 64
        %v3665 = vpop.permute.xlu0 %3664
        %v3666 = vmul.f32 %v3603, %v2898
        %v3667 = vmul.f32 %v3605, %v2899
        %v3668 = vmul.f32 %v3607, %v2900
        %v3669 = vmul.f32 %v3609, %v2901
        %v3670 = vmul.f32 %v3611, %v2902
        %v3671 = vmul.f32 %v3613, %v2903
        %v3672 = vmul.f32 %v3615, %v2904
        %v3673 = vmul.f32 %v3617, %v2905
        %v3674 = vmul.f32 %v3619, %v2906
        %v3675 = vmul.f32 %v3621, %v2907
        %v3676 = vmul.f32 %v3623, %v2908
        %v3677 = vmul.f32 %v3625, %v2909
        %v3678 = vmul.f32 %v3627, %v2910
        %v3679 = vmul.f32 %v3629, %v2911
        %v3680 = vmul.f32 %v3631, %v2912
        %v3681 = vmul.f32 %v3633, %v2913
        %v3682 = vmul.f32 %v3635, %v2914
        %v3683 = vmul.f32 %v3637, %v2915
        %v3684 = vmul.f32 %v3639, %v2916
        %v3685 = vmul.f32 %v3641, %v2917
        %v3686 = vmul.f32 %v3643, %v2918
        %v3687 = vmul.f32 %v3645, %v2919
        %v3688 = vmul.f32 %v3647, %v2920
        %v3689 = vmul.f32 %v3649, %v2921
        %v3690 = vmul.f32 %v3651, %v2922
        %v3691 = vmul.f32 %v3653, %v2923
        %v3692 = vmul.f32 %v3655, %v2924
        %v3693 = vmul.f32 %v3657, %v2925
        %v3694 = vmul.f32 %v3659, %v2926
        %v3695 = vmul.f32 %v3661, %v2927
        %v3696 = vmul.f32 %v3663, %v2928
        %v3697 = vmul.f32 %v3665, %v2929
        %v3698 = vadd.f32 %v3570, %v3666
        %v3699 = vadd.f32 %v3571, %v3667
        %v3700 = vadd.f32 %v3572, %v3668
        %v3701 = vadd.f32 %v3573, %v3669
        %v3702 = vadd.f32 %v3574, %v3670
        %v3703 = vadd.f32 %v3575, %v3671
        %v3704 = vadd.f32 %v3576, %v3672
        %v3705 = vadd.f32 %v3577, %v3673
        %v3706 = vadd.f32 %v3578, %v3674
        %v3707 = vadd.f32 %v3579, %v3675
        %v3708 = vadd.f32 %v3580, %v3676
        %v3709 = vadd.f32 %v3581, %v3677
        %v3710 = vadd.f32 %v3582, %v3678
        %v3711 = vadd.f32 %v3583, %v3679
        %v3712 = vadd.f32 %v3584, %v3680
        %v3713 = vadd.f32 %v3585, %v3681
        %v3714 = vadd.f32 %v3586, %v3682
        %v3715 = vadd.f32 %v3587, %v3683
        %v3716 = vadd.f32 %v3588, %v3684
        %v3717 = vadd.f32 %v3589, %v3685
        %v3718 = vadd.f32 %v3590, %v3686
        %v3719 = vadd.f32 %v3591, %v3687
        %v3720 = vadd.f32 %v3592, %v3688
        %v3721 = vadd.f32 %v3593, %v3689
        %v3722 = vadd.f32 %v3594, %v3690
        %v3723 = vadd.f32 %v3595, %v3691
        %v3724 = vadd.f32 %v3596, %v3692
        %v3725 = vadd.f32 %v3597, %v3693
        %v3726 = vadd.f32 %v3598, %v3694
        %v3727 = vadd.f32 %v3599, %v3695
        %v3728 = vadd.f32 %v3600, %v3696
        %v3729 = vadd.f32 %v3601, %v3697
        %v3730 = vpack.c.bf16 %v3698, %v3698
        %v3731 = vpack.c.bf16 %v3699, %v3699
        %v3732 = vpack.c.bf16 %v3700, %v3700
        %v3733 = vpack.c.bf16 %v3701, %v3701
        %v3734 = vpack.c.bf16 %v3702, %v3702
        %v3735 = vpack.c.bf16 %v3703, %v3703
        %v3736 = vpack.c.bf16 %v3704, %v3704
        %v3737 = vpack.c.bf16 %v3705, %v3705
        %v3738 = vpack.c.bf16 %v3706, %v3706
        %v3739 = vpack.c.bf16 %v3707, %v3707
        %v3740 = vpack.c.bf16 %v3708, %v3708
        %v3741 = vpack.c.bf16 %v3709, %v3709
        %v3742 = vpack.c.bf16 %v3710, %v3710
        %v3743 = vpack.c.bf16 %v3711, %v3711
        %v3744 = vpack.c.bf16 %v3712, %v3712
        %v3745 = vpack.c.bf16 %v3713, %v3713
        %v3746 = vpack.c.bf16 %v3714, %v3714
        %v3747 = vpack.c.bf16 %v3715, %v3715
        %v3748 = vpack.c.bf16 %v3716, %v3716
        %v3749 = vpack.c.bf16 %v3717, %v3717
        %v3750 = vpack.c.bf16 %v3718, %v3718
        %v3751 = vpack.c.bf16 %v3719, %v3719
        %v3752 = vpack.c.bf16 %v3720, %v3720
        %v3753 = vpack.c.bf16 %v3721, %v3721
        %v3754 = vpack.c.bf16 %v3722, %v3722
        %v3755 = vpack.c.bf16 %v3723, %v3723
        %v3756 = vpack.c.bf16 %v3724, %v3724
        %v3757 = vpack.c.bf16 %v3725, %v3725
        %v3758 = vpack.c.bf16 %v3726, %v3726
        %v3759 = vpack.c.bf16 %v3727, %v3727
        %v3760 = vpack.c.bf16 %v3728, %v3728
        %v3761 = vpack.c.bf16 %v3729, %v3729
        %v3794 = vunpack.c.l.b16 %v3122
        %v3795 = vunpack.c.l.b16 %v3123
        %v3796 = vunpack.c.l.b16 %v3124
        %v3797 = vunpack.c.l.b16 %v3125
        %v3798 = vunpack.c.l.b16 %v3126
        %v3799 = vunpack.c.l.b16 %v3127
        %v3800 = vunpack.c.l.b16 %v3128
        %v3801 = vunpack.c.l.b16 %v3129
        %v3802 = vunpack.c.l.b16 %v3130
        %v3803 = vunpack.c.l.b16 %v3131
        %v3804 = vunpack.c.l.b16 %v3132
        %v3805 = vunpack.c.l.b16 %v3133
        %v3806 = vunpack.c.l.b16 %v3134
        %v3807 = vunpack.c.l.b16 %v3135
        %v3808 = vunpack.c.l.b16 %v3136
        %v3809 = vunpack.c.l.b16 %v3137
        %v3810 = vunpack.c.l.b16 %v3138
        %v3811 = vunpack.c.l.b16 %v3139
        %v3812 = vunpack.c.l.b16 %v3140
        %v3813 = vunpack.c.l.b16 %v3141
        %v3814 = vunpack.c.l.b16 %v3142
        %v3815 = vunpack.c.l.b16 %v3143
        %v3816 = vunpack.c.l.b16 %v3144
        %v3817 = vunpack.c.l.b16 %v3145
        %v3818 = vunpack.c.l.b16 %v3146
        %v3819 = vunpack.c.l.b16 %v3147
        %v3820 = vunpack.c.l.b16 %v3148
        %v3821 = vunpack.c.l.b16 %v3149
        %v3822 = vunpack.c.l.b16 %v3150
        %v3823 = vunpack.c.l.b16 %v3151
        %v3824 = vunpack.c.l.b16 %v3152
        %v3825 = vunpack.c.l.b16 %v3153
        %v3858 = vunpack.c.l.b16 %v3538
        %v3859 = vunpack.c.l.b16 %v3539
        %v3860 = vunpack.c.l.b16 %v3540
        %v3861 = vunpack.c.l.b16 %v3541
        %v3862 = vunpack.c.l.b16 %v3542
        %v3863 = vunpack.c.l.b16 %v3543
        %v3864 = vunpack.c.l.b16 %v3544
        %v3865 = vunpack.c.l.b16 %v3545
        %v3866 = vunpack.c.l.b16 %v3546
        %v3867 = vunpack.c.l.b16 %v3547
        %v3868 = vunpack.c.l.b16 %v3548
        %v3869 = vunpack.c.l.b16 %v3549
        %v3870 = vunpack.c.l.b16 %v3550
        %v3871 = vunpack.c.l.b16 %v3551
        %v3872 = vunpack.c.l.b16 %v3552
        %v3873 = vunpack.c.l.b16 %v3553
        %v3874 = vunpack.c.l.b16 %v3554
        %v3875 = vunpack.c.l.b16 %v3555
        %v3876 = vunpack.c.l.b16 %v3556
        %v3877 = vunpack.c.l.b16 %v3557
        %v3878 = vunpack.c.l.b16 %v3558
        %v3879 = vunpack.c.l.b16 %v3559
        %v3880 = vunpack.c.l.b16 %v3560
        %v3881 = vunpack.c.l.b16 %v3561
        %v3882 = vunpack.c.l.b16 %v3562
        %v3883 = vunpack.c.l.b16 %v3563
        %v3884 = vunpack.c.l.b16 %v3564
        %v3885 = vunpack.c.l.b16 %v3565
        %v3886 = vunpack.c.l.b16 %v3566
        %v3887 = vunpack.c.l.b16 %v3567
        %v3888 = vunpack.c.l.b16 %v3568
        %v3889 = vunpack.c.l.b16 %v3569
        %v3890 = vpack.c.b16 %v3858, %v3794
        %v3891 = vpack.c.b16 %v3859, %v3795
        %v3892 = vpack.c.b16 %v3860, %v3796
        %v3893 = vpack.c.b16 %v3861, %v3797
        %v3894 = vpack.c.b16 %v3862, %v3798
        %v3895 = vpack.c.b16 %v3863, %v3799
        %v3896 = vpack.c.b16 %v3864, %v3800
        %v3897 = vpack.c.b16 %v3865, %v3801
        %v3898 = vpack.c.b16 %v3866, %v3802
        %v3899 = vpack.c.b16 %v3867, %v3803
        %v3900 = vpack.c.b16 %v3868, %v3804
        %v3901 = vpack.c.b16 %v3869, %v3805
        %v3902 = vpack.c.b16 %v3870, %v3806
        %v3903 = vpack.c.b16 %v3871, %v3807
        %v3904 = vpack.c.b16 %v3872, %v3808
        %v3905 = vpack.c.b16 %v3873, %v3809
        %v3906 = vpack.c.b16 %v3874, %v3810
        %v3907 = vpack.c.b16 %v3875, %v3811
        %v3908 = vpack.c.b16 %v3876, %v3812
        %v3909 = vpack.c.b16 %v3877, %v3813
        %v3910 = vpack.c.b16 %v3878, %v3814
        %v3911 = vpack.c.b16 %v3879, %v3815
        %v3912 = vpack.c.b16 %v3880, %v3816
        %v3913 = vpack.c.b16 %v3881, %v3817
        %v3914 = vpack.c.b16 %v3882, %v3818
        %v3915 = vpack.c.b16 %v3883, %v3819
        %v3916 = vpack.c.b16 %v3884, %v3820
        %v3917 = vpack.c.b16 %v3885, %v3821
        %v3918 = vpack.c.b16 %v3886, %v3822
        %v3919 = vpack.c.b16 %v3887, %v3823
        %v3920 = vpack.c.b16 %v3888, %v3824
        %v3921 = vpack.c.b16 %v3889, %v3825
        %3954 = vst [vmem:[%s420] sm:$0xff] %v3890
        %3955 = vst [vmem:[%s420 + $0x8] sm:$0xff] %v3891
        %3956 = vst [vmem:[%s420 + $0x10] sm:$0xff] %v3892
        %3957 = vst [vmem:[%s420 + $0x18] sm:$0xff] %v3893
        %3958 = vst [vmem:[%s420 + $0x20] sm:$0xff] %v3894
        %3959 = vst [vmem:[%s420 + $0x28] sm:$0xff] %v3895
        %3960 = vst [vmem:[%s420 + $0x30] sm:$0xff] %v3896
        %3961 = vst [vmem:[%s420 + $0x38] sm:$0xff] %v3897
        %3962 = vst [vmem:[%s420 + $0x40] sm:$0xff] %v3898
        %3963 = vst [vmem:[%s420 + $0x48] sm:$0xff] %v3899
        %3964 = vst [vmem:[%s420 + $0x50] sm:$0xff] %v3900
        %3965 = vst [vmem:[%s420 + $0x58] sm:$0xff] %v3901
        %3966 = vst [vmem:[%s420 + $0x60] sm:$0xff] %v3902
        %3967 = vst [vmem:[%s420 + $0x68] sm:$0xff] %v3903
        %3968 = vst [vmem:[%s420 + $0x70] sm:$0xff] %v3904
        %3969 = vst [vmem:[%s420 + $0x78] sm:$0xff] %v3905
        %3970 = vst [vmem:[%s420 + $0x80] sm:$0xff] %v3906
        %3971 = vst [vmem:[%s420 + $0x88] sm:$0xff] %v3907
        %3972 = vst [vmem:[%s420 + $0x90] sm:$0xff] %v3908
        %3973 = vst [vmem:[%s420 + $0x98] sm:$0xff] %v3909
        %3974 = vst [vmem:[%s420 + $0xa0] sm:$0xff] %v3910
        %3975 = vst [vmem:[%s420 + $0xa8] sm:$0xff] %v3911
        %3976 = vst [vmem:[%s420 + $0xb0] sm:$0xff] %v3912
        %3977 = vst [vmem:[%s420 + $0xb8] sm:$0xff] %v3913
        %3978 = vst [vmem:[%s420 + $0xc0] sm:$0xff] %v3914
        %3979 = vst [vmem:[%s420 + $0xc8] sm:$0xff] %v3915
        %3980 = vst [vmem:[%s420 + $0xd0] sm:$0xff] %v3916
        %3981 = vst [vmem:[%s420 + $0xd8] sm:$0xff] %v3917
        %3982 = vst [vmem:[%s420 + $0xe0] sm:$0xff] %v3918
        %3983 = vst [vmem:[%s420 + $0xe8] sm:$0xff] %v3919
        %3984 = vst [vmem:[%s420 + $0xf0] sm:$0xff] %v3920
        %3985 = vst [vmem:[%s420 + $0xf8] sm:$0xff] %v3921
        %v4018 = vunpack.c.l.b16 %v3314
        %v4019 = vunpack.c.l.b16 %v3315
        %v4020 = vunpack.c.l.b16 %v3316
        %v4021 = vunpack.c.l.b16 %v3317
        %v4022 = vunpack.c.l.b16 %v3318
        %v4023 = vunpack.c.l.b16 %v3319
        %v4024 = vunpack.c.l.b16 %v3320
        %v4025 = vunpack.c.l.b16 %v3321
        %v4026 = vunpack.c.l.b16 %v3322
        %v4027 = vunpack.c.l.b16 %v3323
        %v4028 = vunpack.c.l.b16 %v3324
        %v4029 = vunpack.c.l.b16 %v3325
        %v4030 = vunpack.c.l.b16 %v3326
        %v4031 = vunpack.c.l.b16 %v3327
        %v4032 = vunpack.c.l.b16 %v3328
        %v4033 = vunpack.c.l.b16 %v3329
        %v4034 = vunpack.c.l.b16 %v3330
        %v4035 = vunpack.c.l.b16 %v3331
        %v4036 = vunpack.c.l.b16 %v3332
        %v4037 = vunpack.c.l.b16 %v3333
        %v4038 = vunpack.c.l.b16 %v3334
        %v4039 = vunpack.c.l.b16 %v3335
        %v4040 = vunpack.c.l.b16 %v3336
        %v4041 = vunpack.c.l.b16 %v3337
        %v4042 = vunpack.c.l.b16 %v3338
        %v4043 = vunpack.c.l.b16 %v3339
        %v4044 = vunpack.c.l.b16 %v3340
        %v4045 = vunpack.c.l.b16 %v3341
        %v4046 = vunpack.c.l.b16 %v3342
        %v4047 = vunpack.c.l.b16 %v3343
        %v4048 = vunpack.c.l.b16 %v3344
        %v4049 = vunpack.c.l.b16 %v3345
        %v4082 = vunpack.c.l.b16 %v3730
        %v4083 = vunpack.c.l.b16 %v3731
        %v4084 = vunpack.c.l.b16 %v3732
        %v4085 = vunpack.c.l.b16 %v3733
        %v4086 = vunpack.c.l.b16 %v3734
        %v4087 = vunpack.c.l.b16 %v3735
        %v4088 = vunpack.c.l.b16 %v3736
        %v4089 = vunpack.c.l.b16 %v3737
        %v4090 = vunpack.c.l.b16 %v3738
        %v4091 = vunpack.c.l.b16 %v3739
        %v4092 = vunpack.c.l.b16 %v3740
        %v4093 = vunpack.c.l.b16 %v3741
        %v4094 = vunpack.c.l.b16 %v3742
        %v4095 = vunpack.c.l.b16 %v3743
        %v4096 = vunpack.c.l.b16 %v3744
        %v4097 = vunpack.c.l.b16 %v3745
        %v4098 = vunpack.c.l.b16 %v3746
        %v4099 = vunpack.c.l.b16 %v3747
        %v4100 = vunpack.c.l.b16 %v3748
        %v4101 = vunpack.c.l.b16 %v3749
        %v4102 = vunpack.c.l.b16 %v3750
        %v4103 = vunpack.c.l.b16 %v3751
        %v4104 = vunpack.c.l.b16 %v3752
        %v4105 = vunpack.c.l.b16 %v3753
        %v4106 = vunpack.c.l.b16 %v3754
        %v4107 = vunpack.c.l.b16 %v3755
        %v4108 = vunpack.c.l.b16 %v3756
        %v4109 = vunpack.c.l.b16 %v3757
        %v4110 = vunpack.c.l.b16 %v3758
        %v4111 = vunpack.c.l.b16 %v3759
        %v4112 = vunpack.c.l.b16 %v3760
        %v4113 = vunpack.c.l.b16 %v3761
        %v4114 = vpack.c.b16 %v4082, %v4018
        %v4115 = vpack.c.b16 %v4083, %v4019
        %v4116 = vpack.c.b16 %v4084, %v4020
        %v4117 = vpack.c.b16 %v4085, %v4021
        %v4118 = vpack.c.b16 %v4086, %v4022
        %v4119 = vpack.c.b16 %v4087, %v4023
        %v4120 = vpack.c.b16 %v4088, %v4024
        %v4121 = vpack.c.b16 %v4089, %v4025
        %v4122 = vpack.c.b16 %v4090, %v4026
        %v4123 = vpack.c.b16 %v4091, %v4027
        %v4124 = vpack.c.b16 %v4092, %v4028
        %v4125 = vpack.c.b16 %v4093, %v4029
        %v4126 = vpack.c.b16 %v4094, %v4030
        %v4127 = vpack.c.b16 %v4095, %v4031
        %v4128 = vpack.c.b16 %v4096, %v4032
        %v4129 = vpack.c.b16 %v4097, %v4033
        %v4130 = vpack.c.b16 %v4098, %v4034
        %v4131 = vpack.c.b16 %v4099, %v4035
        %v4132 = vpack.c.b16 %v4100, %v4036
        %v4133 = vpack.c.b16 %v4101, %v4037
        %v4134 = vpack.c.b16 %v4102, %v4038
        %v4135 = vpack.c.b16 %v4103, %v4039
        %v4136 = vpack.c.b16 %v4104, %v4040
        %v4137 = vpack.c.b16 %v4105, %v4041
        %v4138 = vpack.c.b16 %v4106, %v4042
        %v4139 = vpack.c.b16 %v4107, %v4043
        %v4140 = vpack.c.b16 %v4108, %v4044
        %v4141 = vpack.c.b16 %v4109, %v4045
        %v4142 = vpack.c.b16 %v4110, %v4046
        %v4143 = vpack.c.b16 %v4111, %v4047
        %v4144 = vpack.c.b16 %v4112, %v4048
        %v4145 = vpack.c.b16 %v4113, %v4049
        %4178 = vst [vmem:[%s427] sm:$0xff] %v4114
        %4179 = vst [vmem:[%s427 + $0x8] sm:$0xff] %v4115
        %4180 = vst [vmem:[%s427 + $0x10] sm:$0xff] %v4116
        %4181 = vst [vmem:[%s427 + $0x18] sm:$0xff] %v4117
        %4182 = vst [vmem:[%s427 + $0x20] sm:$0xff] %v4118
        %4183 = vst [vmem:[%s427 + $0x28] sm:$0xff] %v4119
        %4184 = vst [vmem:[%s427 + $0x30] sm:$0xff] %v4120
        %4185 = vst [vmem:[%s427 + $0x38] sm:$0xff] %v4121
        %4186 = vst [vmem:[%s427 + $0x40] sm:$0xff] %v4122
        %4187 = vst [vmem:[%s427 + $0x48] sm:$0xff] %v4123
        %4188 = vst [vmem:[%s427 + $0x50] sm:$0xff] %v4124
        %4189 = vst [vmem:[%s427 + $0x58] sm:$0xff] %v4125
        %4190 = vst [vmem:[%s427 + $0x60] sm:$0xff] %v4126
        %4191 = vst [vmem:[%s427 + $0x68] sm:$0xff] %v4127
        %4192 = vst [vmem:[%s427 + $0x70] sm:$0xff] %v4128
        %4193 = vst [vmem:[%s427 + $0x78] sm:$0xff] %v4129
        %4194 = vst [vmem:[%s427 + $0x80] sm:$0xff] %v4130
        %4195 = vst [vmem:[%s427 + $0x88] sm:$0xff] %v4131
        %4196 = vst [vmem:[%s427 + $0x90] sm:$0xff] %v4132
        %4197 = vst [vmem:[%s427 + $0x98] sm:$0xff] %v4133
        %4198 = vst [vmem:[%s427 + $0xa0] sm:$0xff] %v4134
        %4199 = vst [vmem:[%s427 + $0xa8] sm:$0xff] %v4135
        %4200 = vst [vmem:[%s427 + $0xb0] sm:$0xff] %v4136
        %4201 = vst [vmem:[%s427 + $0xb8] sm:$0xff] %v4137
        %4202 = vst [vmem:[%s427 + $0xc0] sm:$0xff] %v4138
        %4203 = vst [vmem:[%s427 + $0xc8] sm:$0xff] %v4139
        %4204 = vst [vmem:[%s427 + $0xd0] sm:$0xff] %v4140
        %4205 = vst [vmem:[%s427 + $0xd8] sm:$0xff] %v4141
        %4206 = vst [vmem:[%s427 + $0xe0] sm:$0xff] %v4142
        %4207 = vst [vmem:[%s427 + $0xe8] sm:$0xff] %v4143
        %4208 = vst [vmem:[%s427 + $0xf0] sm:$0xff] %v4144
        %4209 = vst [vmem:[%s427 + $0xf8] sm:$0xff] %v4145
        %v4210 = vpack.c.bf16 %v2787, %v2609
        %v4211 = vpack.c.bf16 %v2789, %v2611
        %v4212 = vpack.c.bf16 %v2792, %v2614
        %v4213 = vpack.c.bf16 %v2794, %v2616
        %v4214 = vpack.c.bf16 %v2797, %v2619
        %v4215 = vpack.c.bf16 %v2799, %v2621
        %v4216 = vpack.c.bf16 %v2802, %v2624
        %v4217 = vpack.c.bf16 %v2804, %v2626
        %v4218 = vpack.c.bf16 %v2807, %v2629
        %v4219 = vpack.c.bf16 %v2809, %v2631
        %v4220 = vpack.c.bf16 %v2812, %v2634
        %v4221 = vpack.c.bf16 %v2814, %v2636
        %v4222 = vpack.c.bf16 %v2817, %v2639
        %v4223 = vpack.c.bf16 %v2819, %v2641
        %v4224 = vpack.c.bf16 %v2822, %v2644
        %v4225 = vpack.c.bf16 %v2824, %v2646
        %v4226 = vpack.c.bf16 %v2827, %v2649
        %v4227 = vpack.c.bf16 %v2829, %v2651
        %v4228 = vpack.c.bf16 %v2832, %v2654
        %v4229 = vpack.c.bf16 %v2834, %v2656
        %v4230 = vpack.c.bf16 %v2837, %v2659
        %v4231 = vpack.c.bf16 %v2839, %v2661
        %v4232 = vpack.c.bf16 %v2842, %v2664
        %v4233 = vpack.c.bf16 %v2844, %v2666
        %v4234 = vpack.c.bf16 %v2847, %v2669
        %v4235 = vpack.c.bf16 %v2849, %v2671
        %v4236 = vpack.c.bf16 %v2852, %v2674
        %v4237 = vpack.c.bf16 %v2854, %v2676
        %v4238 = vpack.c.bf16 %v2857, %v2679
        %v4239 = vpack.c.bf16 %v2859, %v2681
        %v4240 = vpack.c.bf16 %v2862, %v2684
        %v4241 = vpack.c.bf16 %v2864, %v2686
        %4242 = vst [vmem:[%s434] sm:$0xff] %v4210
        %4243 = vst [vmem:[%s434 + $0x8] sm:$0xff] %v4211
        %4244 = vst [vmem:[%s434 + $0x10] sm:$0xff] %v4212
        %4245 = vst [vmem:[%s434 + $0x18] sm:$0xff] %v4213
        %4246 = vst [vmem:[%s434 + $0x20] sm:$0xff] %v4214
        %4247 = vst [vmem:[%s434 + $0x28] sm:$0xff] %v4215
        %4248 = vst [vmem:[%s434 + $0x30] sm:$0xff] %v4216
        %4249 = vst [vmem:[%s434 + $0x38] sm:$0xff] %v4217
        %4250 = vst [vmem:[%s434 + $0x40] sm:$0xff] %v4218
        %4251 = vst [vmem:[%s434 + $0x48] sm:$0xff] %v4219
        %4252 = vst [vmem:[%s434 + $0x50] sm:$0xff] %v4220
        %4253 = vst [vmem:[%s434 + $0x58] sm:$0xff] %v4221
        %4254 = vst [vmem:[%s434 + $0x60] sm:$0xff] %v4222
        %4255 = vst [vmem:[%s434 + $0x68] sm:$0xff] %v4223
        %4256 = vst [vmem:[%s434 + $0x70] sm:$0xff] %v4224
        %4257 = vst [vmem:[%s434 + $0x78] sm:$0xff] %v4225
        %4258 = vst [vmem:[%s434 + $0x80] sm:$0xff] %v4226
        %4259 = vst [vmem:[%s434 + $0x88] sm:$0xff] %v4227
        %4260 = vst [vmem:[%s434 + $0x90] sm:$0xff] %v4228
        %4261 = vst [vmem:[%s434 + $0x98] sm:$0xff] %v4229
        %4262 = vst [vmem:[%s434 + $0xa0] sm:$0xff] %v4230
        %4263 = vst [vmem:[%s434 + $0xa8] sm:$0xff] %v4231
        %4264 = vst [vmem:[%s434 + $0xb0] sm:$0xff] %v4232
        %4265 = vst [vmem:[%s434 + $0xb8] sm:$0xff] %v4233
        %4266 = vst [vmem:[%s434 + $0xc0] sm:$0xff] %v4234
        %4267 = vst [vmem:[%s434 + $0xc8] sm:$0xff] %v4235
        %4268 = vst [vmem:[%s434 + $0xd0] sm:$0xff] %v4236
        %4269 = vst [vmem:[%s434 + $0xd8] sm:$0xff] %v4237
        %4270 = vst [vmem:[%s434 + $0xe0] sm:$0xff] %v4238
        %4271 = vst [vmem:[%s434 + $0xe8] sm:$0xff] %v4239
        %4272 = vst [vmem:[%s434 + $0xf0] sm:$0xff] %v4240
        %4273 = vst [vmem:[%s434 + $0xf8] sm:$0xff] %v4241
        %s4274 = sand.u32 %s173, 1
        %s4275 = scalar_lea.sflag [#allocation4], %s4274
        %s4276 = sand.u32 %s173, 1
        %s4277 = smul.addr %s4276, 256
        %s4278 = scalar_lea.vmem [#allocation9], %s4277
        %s4279 = sand.u32 %s29, 1
        %s4280 = scalar_lea.sflag [#allocation11], %s4279
        %s4281 = sand.u32 %s201, 1
        %s4282 = smul.addr %s4281, 256
        %s4283 = scalar_lea.vmem [#allocation10], %s4282
        %s4284 = sand.u32 %s29, 1
        %s4285 = scalar_lea.sflag [#allocation11], %s4284
        %s4286 = sand.u32 %s229, 1
        %s4287 = smul.addr %s4286, 256
        %s4288 = scalar_lea.vmem [#allocation12], %s4287
        // Predicated region
        $region57: #{tpu_custom_call.1} parent=39 // pred_check
          %p4289 = pneg %p183
        $region58: #{tpu_custom_call.1} parent=39 // pred_check_branch
          %4291 = sbr.rel (%p4289) target = $region60
        $region59: #{tpu_custom_call.1} parent=39 // pred_region
          %s4292 = smul.u32 32, %s34
          %4294 = vsyncadd %s4275, 0
          %s4295 = smul.addr %s4292, 2
          %s4296 = smul.addr %s33, 128
          %s4297 = sadd.s32 %s4295, %s4296
          %s4298 = smul.addr %s4297, 4
          %s4299 = scalar_lea.hbm %s5, %s4298
          %s4300 = sshll.u32 %s4278, 4
          %s4301 = int_to_ptr.vmem [resolvable:$true] %s4300
          %s4302 = sshll.u32 %s4299, 4
          %s4303 = int_to_ptr.hbm [resolvable:$true] %s4302
          %4308 = dma.vmem_to_hbm [thread:$0]  %s4301, 4096, %s4303, %s4275, 128, 128, 8
        $region60: #{tpu_custom_call.1} parent=39 // pred_fallthru
          _
        // Predicated region
        $region61: #{tpu_custom_call.1} parent=39 // pred_check
          %p4309 = pneg %p211
        $region62: #{tpu_custom_call.1} parent=39 // pred_check_branch
          %4311 = sbr.rel (%p4309) target = $region64
        $region63: #{tpu_custom_call.1} parent=39 // pred_region
          %s4312 = smul.u32 32, %s34
          %4314 = vsyncadd %s4280, 0
          %s4315 = smul.addr %s4312, 2
          %s4316 = smul.addr %s33, 128
          %s4317 = sadd.s32 %s4315, %s4316
          %s4318 = smul.addr %s4317, 4
          %s4319 = scalar_lea.hbm %s6, %s4318
          %s4320 = sshll.u32 %s4283, 4
          %s4321 = int_to_ptr.vmem [resolvable:$true] %s4320
          %s4322 = sshll.u32 %s4319, 4
          %s4323 = int_to_ptr.hbm [resolvable:$true] %s4322
          %4328 = dma.vmem_to_hbm [thread:$0]  %s4321, 4096, %s4323, %s4280, 128, 128, 8
        $region64: #{tpu_custom_call.1} parent=39 // pred_fallthru
          _
        // Predicated region
        $region65: #{tpu_custom_call.1} parent=39 // pred_check
          %p4329 = pneg %p239
        $region66: #{tpu_custom_call.1} parent=39 // pred_check_branch
          %4331 = sbr.rel (%p4329) target = $region68
        $region67: #{tpu_custom_call.1} parent=39 // pred_region
          %s4332 = smul.u32 32, %s34
          %4334 = vsyncadd %s4285, 0
          %s4335 = smul.addr %s4332, 2
          %s4336 = smul.addr %s33, 128
          %s4337 = sadd.s32 %s4335, %s4336
          %s4338 = smul.addr %s4337, 4
          %s4339 = scalar_lea.hbm %s7, %s4338
          %s4340 = sshll.u32 %s4288, 4
          %s4341 = int_to_ptr.vmem [resolvable:$true] %s4340
          %s4342 = sshll.u32 %s4339, 4
          %s4343 = int_to_ptr.hbm [resolvable:$true] %s4342
          %4348 = dma.vmem_to_hbm [thread:$0]  %s4341, 4096, %s4343, %s4285, 128, 128, 8
        $region68: #{tpu_custom_call.1} parent=39 // pred_fallthru
          _
      $region40: #{tpu_custom_call.1} parent=5 // pred_fallthru
        _
      %p4349 = scmp.le.s32.totalorder 2, %s24
      // Predicated region
      $region69: #{tpu_custom_call.1} parent=5 // pred_check
        %p4350 = pneg %p4349
      $region70: #{tpu_custom_call.1} parent=5 // pred_check_branch
        %4352 = sbr.rel (%p4350) target = $region72
      $region71: #{tpu_custom_call.1} parent=5 // pred_region
        %s4353 = ssub.s32 %s24, 2
        // Predicated region
        $region73: #{tpu_custom_call.1} parent=71 // pred_check
          %p4354 = pneg %p189
        $region74: #{tpu_custom_call.1} parent=71 // pred_check_branch
          %4356 = sbr.rel (%p4354) target = $region76
        $region75: #{tpu_custom_call.1} parent=71 // pred_region
          %s4357 = sand.u32 %s174, 1
          %s4358 = scalar_lea.sflag [#allocation4], %s4357
          %s4359 = sand.u32 %s174, 1
          %s4360 = smul.addr %s4359, 256
          %s4361 = scalar_lea.vmem [#allocation9], %s4360
          %4363 = dma.done %s4358, 4096
        $region76: #{tpu_custom_call.1} parent=71 // pred_fallthru
          _
        // Predicated region
        $region77: #{tpu_custom_call.1} parent=71 // pred_check
          %p4364 = pneg %p217
        $region78: #{tpu_custom_call.1} parent=71 // pred_check_branch
          %4366 = sbr.rel (%p4364) target = $region80
        $region79: #{tpu_custom_call.1} parent=71 // pred_region
          %s4367 = sand.u32 %s30, 1
          %s4368 = scalar_lea.sflag [#allocation11], %s4367
          %s4369 = sand.u32 %s202, 1
          %s4370 = smul.addr %s4369, 256
          %s4371 = scalar_lea.vmem [#allocation10], %s4370
          %4373 = dma.done %s4368, 4096
        $region80: #{tpu_custom_call.1} parent=71 // pred_fallthru
          _
        // Predicated region
        $region81: #{tpu_custom_call.1} parent=71 // pred_check
          %p4374 = pneg %p245
        $region82: #{tpu_custom_call.1} parent=71 // pred_check_branch
          %4376 = sbr.rel (%p4374) target = $region84
        $region83: #{tpu_custom_call.1} parent=71 // pred_region
          %s4377 = sand.u32 %s30, 1
          %s4378 = scalar_lea.sflag [#allocation11], %s4377
          %s4379 = sand.u32 %s230, 1
          %s4380 = smul.addr %s4379, 256
          %s4381 = scalar_lea.vmem [#allocation12], %s4380
          %4383 = dma.done %s4378, 4096
        $region84: #{tpu_custom_call.1} parent=71 // pred_fallthru
          _
      $region72: #{tpu_custom_call.1} parent=5 // pred_fallthru
        _
    $region6: #{tpu_custom_call.1} parent=1 // loop_footer
      %s28 = sadd.s32 1, %s24
    $region7: #{tpu_custom_call.1} parent=1 // loop_footer_branch
      %23 = sbr.rel target = $region3
    $region8: #{tpu_custom_call.1} parent=1 // loop_exit
      _
    %4384 = vsyncpa [#allocation3], 1
    %s4385 = scalar_lea.sflag [#allocation3], 1
    %4386 = vsyncpa %s4385, 1
    %4387 = vsyncpa [#allocation6], 1
    %4388 = vsyncpa [#allocation4], 1
    %s4389 = scalar_lea.sflag [#allocation4], 1
    %4390 = vsyncpa %s4389, 1
    %4391 = vsyncpa [#allocation11], 1
    %s4392 = scalar_lea.sflag [#allocation11], 1
    %4393 = vsyncpa %s4392, 1

</llo_original>
